<compile_context>
chip_gen: v6e
topology: v6e:2x2x1
jax: 0.10.0
libtpu: 0.0.40
codegen_flags: <defaults>
</compile_context>

<pallas_src>
import jax
import jax.numpy as jnp
from jax.experimental import pallas as pl
from jax.experimental.pallas import tpu as pltpu


# ----------------------------------------------------------------------------
# Fused Pallas kernel: one grid step == one batch element of Gru.forward
# ----------------------------------------------------------------------------
def _gru_kernel(xt_ref, xc_ref, yc_ref,
                ws_ref, bs_ref,          # conv_state  (BN folded), [num_s, C] / [num_s, 1]
                wp_ref, bp_ref,          # conv_proj   (BN folded), [C, num_n] / [1, num_n]
                ws2_ref, bs2_ref,        # conv_state2 (BN folded), [C, num_s] / [1, num_s]
                g1w1_ref, g1b1_ref, g1w2_ref,   # GCN1
                g2w1_ref, g2b1_ref, g2w2_ref,   # GCN2
                wfc_ref, bblk_ref,       # fc_2 + blocker BN folded, [C, C] / [1, C]
                o_ref):
    def dot(a, b):
        return jnp.dot(a, b, preferred_element_type=jnp.float32)

    xt = xt_ref[0]          # [C, HW]   (natural NCHW flatten)
    xc = xc_ref[0]          # [HW, C]   (channel-last, lane-dense)
    yc = yc_ref[0]          # [HW, C]
    hw = xt.shape[1]

    # BasicConv2d (1x1 conv, bias=False) + eval-mode BN, folded into W / bias.
    xs = dot(ws_ref[...], xt) + bs_ref[...]       # conv_state  -> [num_s, HW]
    yp = dot(yc, wp_ref[...]) + bp_ref[...]       # conv_proj   -> [HW, num_n]
    xs2 = dot(xc, ws2_ref[...]) + bs2_ref[...]    # conv_state2 -> [HW, num_s]

    # x_n_state2 = bmm(x_state, y_proj^T) / HW    (torch layout [num_s, num_n])
    xn = dot(xs, yp) * (1.0 / hw)                 # [num_s, num_n]

    def gcn(v, w1t_ref, b1_ref, w2_ref):
        # conv1: Conv1d over the node axis (bias=True)
        h = dot(v, w1t_ref[...]) + b1_ref[...]    # [num_s, num_n]
        h = h + v
        h = jnp.where(h >= 0, h, 0.2 * h)         # LeakyReLU(0.2)
        # conv2: Conv1d over the state axis (bias=False)
        return dot(w2_ref[...], h)                # [num_s, num_n]

    xn = gcn(xn, g1w1_ref, g1b1_ref, g1w2_ref)
    xn = gcn(xn, g2w1_ref, g2b1_ref, g2w2_ref)

    # bmm(x_n_rel2^T, x_state_2): x_state[hw, n] = sum_s xs2[hw, s] * xn[s, n]
    # (the torch view(B, 96, 8, 8) is the identity here since num_n==96, HW==64)
    xst = dot(xs2, xn)                            # [HW, num_n] == [HW, num_in]

    # fc_2 (bias=False) + blocker BN, folded
    f = dot(xst, wfc_ref[...]) + bblk_ref[...]    # [HW, num_in]

    # out = x + blocker(fc_2(x_state)) + y
    o_ref[0] = xc + f + yc


# ----------------------------------------------------------------------------
# Wrapper: fold BN into weights, lay out operands, single pallas_call.
# ----------------------------------------------------------------------------
def gru_forward(params, x, y):
    B, C, H, W = x.shape
    HW = H * W
    xt = x.reshape(B, C, HW)                       # [B, C, HW]
    xc = jnp.transpose(xt, (0, 2, 1))              # [B, HW, C]
    yc = jnp.transpose(y.reshape(B, C, HW), (0, 2, 1))

    eps = 1e-5

    def fold(w, bn):                               # w: [Cout, Cin, 1, 1]
        g, b, rm, rv = bn
        s = g / jnp.sqrt(rv + eps)
        wf = w[:, :, 0, 0] * s[:, None]            # [Cout, Cin]
        bias = b - rm * s                          # [Cout]
        return wf, bias

    ws, bs = fold(params["conv_state_w"], params["conv_state_bn"])
    wp, bp = fold(params["conv_proj_w"], params["conv_proj_bn"])
    ws2, bs2 = fold(params["conv_state2_w"], params["conv_state2_bn"])
    wfc, bblk = fold(params["fc2_w"], params["blocker_bn"])

    operands = (
        xt, xc, yc,
        ws, bs[:, None],                           # row-major weight + column bias
        wp.T, bp[None, :],                         # col-major weight + row bias
        ws2.T, bs2[None, :],
        params["gcn1_w1"][:, :, 0].T, params["gcn1_b1"][None, :], params["gcn1_w2"][:, :, 0],
        params["gcn2_w1"][:, :, 0].T, params["gcn2_b1"][None, :], params["gcn2_w2"][:, :, 0],
        wfc.T, bblk[None, :],
    )

    def spec(a):
        if a.ndim == 3:                            # per-batch operand
            return pl.BlockSpec((1,) + a.shape[1:], lambda b: (b, 0, 0))
        return pl.BlockSpec(a.shape, lambda b: (0, 0))   # weights: resident, no re-DMA

    out = pl.pallas_call(
        _gru_kernel,
        out_shape=jax.ShapeDtypeStruct((B, HW, C), jnp.float32),
        grid=(B,),
        in_specs=[spec(a) for a in operands],
        out_specs=pl.BlockSpec((1, HW, C), lambda b: (b, 0, 0)),
        compiler_params=pltpu.CompilerParams(
            dimension_semantics=("parallel",)),
    )(*operands)

    return jnp.transpose(out, (0, 2, 1)).reshape(B, C, H, W)


# ----------------------------------------------------------------------------
# Pure-JAX reference (torch-layout math) for a correctness check.
# ----------------------------------------------------------------------------
def gru_reference(params, x, y):
    B, C, H, W = x.shape
    HW = H * W
    eps = 1e-5

    def basic_conv(inp, w, bnp):
        g, b, rm, rv = bnp
        out = jnp.einsum("oc,bchw->bohw", w[:, :, 0, 0], inp, precision="highest")
        s = g / jnp.sqrt(rv + eps)
        return out * s[None, :, None, None] + (b - rm * s)[None, :, None, None]

    num_s = params["conv_state_w"].shape[0]
    num_n = params["conv_proj_w"].shape[0]

    xs = basic_conv(x, params["conv_state_w"], params["conv_state_bn"]).reshape(B, num_s, HW)
    yp = basic_conv(y, params["conv_proj_w"], params["conv_proj_bn"]).reshape(B, num_n, HW)
    xs2 = basic_conv(x, params["conv_state2_w"], params["conv_state2_bn"]).reshape(B, num_s, HW)

    xn = jnp.einsum("bsk,bnk->bsn", xs, yp, precision="highest") / HW

    def gcn(v, w1, b1, w2):
        h = jnp.einsum("bsn,mn->bsm", v, w1[:, :, 0], precision="highest") + b1[None, None, :]
        h = h + v
        h = jnp.where(h >= 0, h, 0.2 * h)
        return jnp.einsum("ts,bsn->btn", w2[:, :, 0], h, precision="highest")

    xn = gcn(xn, params["gcn1_w1"], params["gcn1_b1"], params["gcn1_w2"])
    xn = gcn(xn, params["gcn2_w1"], params["gcn2_b1"], params["gcn2_w2"])

    xst = jnp.einsum("bsn,bsk->bnk", xn, xs2, precision="highest")   # [B, num_n, HW]
    x_state = xst.reshape(B, num_n, H, W)   # torch's view(B, 96, 8, 8)
    f = basic_conv(x_state, params["fc2_w"], params["blocker_bn"])
    return x + f + y


# ----------------------------------------------------------------------------
# Deterministic parameters (eval-mode BN running stats).
# ----------------------------------------------------------------------------
def make_params(num_in, num_mid, key):
    num_s, num_n = 2 * num_mid, num_mid
    keys = iter(jax.random.split(key, 64))

    def nrm(shape, std=0.05):
        return std * jax.random.normal(next(keys), shape, jnp.float32)

    def bn(c):
        g = 1.0 + 0.1 * jax.random.normal(next(keys), (c,), jnp.float32)
        b = 0.05 * jax.random.normal(next(keys), (c,), jnp.float32)
        rm = 0.05 * jax.random.normal(next(keys), (c,), jnp.float32)
        rv = 1.0 + 0.1 * jnp.abs(jax.random.normal(next(keys), (c,), jnp.float32))
        return (g, b, rm, rv)

    # conv_proj2 exists in the torch module but is never used in forward();
    # BasicConv2d.relu is also unused by its forward().  Both are omitted.
    return dict(
        conv_state_w=nrm((num_s, num_in, 1, 1)), conv_state_bn=bn(num_s),
        conv_proj_w=nrm((num_n, num_in, 1, 1)), conv_proj_bn=bn(num_n),
        conv_state2_w=nrm((num_s, num_in, 1, 1)), conv_state2_bn=bn(num_s),
        gcn1_w1=nrm((num_n, num_n, 1)), gcn1_b1=nrm((num_n,)), gcn1_w2=nrm((num_s, num_s, 1)),
        gcn2_w1=nrm((num_n, num_n, 1)), gcn2_b1=nrm((num_n,)), gcn2_w2=nrm((num_s, num_s, 1)),
        fc2_w=nrm((num_in, num_in, 1, 1)), blocker_bn=bn(num_in),
    )


# ----------------------------------------------------------------------------
if __name__ == "__main__":
    # Shapes pinned by the torch forward's hard-coded view(batch, 96, 8, 8):
    # num_in = 96, num_mid = 96 (num_s = 192, num_n = 96), H = W = 8, kernel=1.
    num_in, num_mid = 96, 96
    B, H, W = 2, 8, 8

    key = jax.random.PRNGKey(0)
    kp, kx, ky = jax.random.split(key, 3)
    params = make_params(num_in, num_mid, kp)
    x = jax.random.normal(kx, (B, num_in, H, W), jnp.float32)
    y = jax.random.normal(ky, (B, num_in, H, W), jnp.float32)

    out = jax.jit(gru_forward)(params, x, y)
    out = jax.block_until_ready(out)

    assert out.shape == (B, num_in, H, W), out.shape
    assert bool(jnp.all(jnp.isfinite(out)))

    ref = gru_reference(params, x, y)
    err = float(jnp.max(jnp.abs(out - ref)))
    assert err < 2e-3, f"max abs err {err}"

    print("KERNEL_OK")
</pallas_src>

<mosaic_0001>
module attributes {stable_mosaic.version = 11 : i64} {
  func.func @_gru_kernel(%arg0: i32, %arg1: memref<1x96x64xf32, #tpu.memory_space<vmem>>, %arg2: memref<1x64x96xf32, #tpu.memory_space<vmem>>, %arg3: memref<1x64x96xf32, #tpu.memory_space<vmem>>, %arg4: memref<192x96xf32, #tpu.memory_space<vmem>>, %arg5: memref<192x1xf32, #tpu.memory_space<vmem>>, %arg6: memref<96x96xf32, #tpu.memory_space<vmem>>, %arg7: memref<1x96xf32, #tpu.memory_space<vmem>>, %arg8: memref<96x192xf32, #tpu.memory_space<vmem>>, %arg9: memref<1x192xf32, #tpu.memory_space<vmem>>, %arg10: memref<96x96xf32, #tpu.memory_space<vmem>>, %arg11: memref<1x96xf32, #tpu.memory_space<vmem>>, %arg12: memref<192x192xf32, #tpu.memory_space<vmem>>, %arg13: memref<96x96xf32, #tpu.memory_space<vmem>>, %arg14: memref<1x96xf32, #tpu.memory_space<vmem>>, %arg15: memref<192x192xf32, #tpu.memory_space<vmem>>, %arg16: memref<96x96xf32, #tpu.memory_space<vmem>>, %arg17: memref<1x96xf32, #tpu.memory_space<vmem>>, %arg18: memref<1x64x96xf32, #tpu.memory_space<vmem>>) attributes {dimension_semantics = [#tpu.dimension_semantics<parallel>], iteration_bounds = array<i64: 2>, scalar_prefetch = 0 : i64, scratch_operands = 0 : i64, tpu.core_type = #tpu.core_type<tc>, window_params = [{transform_indices = @transform_0, window_bounds = array<i64: 1, 96, 64>}, {transform_indices = @transform_1, window_bounds = array<i64: 1, 64, 96>}, {transform_indices = @transform_2, window_bounds = array<i64: 1, 64, 96>}, {pipeline_mode = #tpu.pipeline_mode<synchronous>, transform_indices = @transform_3, window_bounds = array<i64: 192, 96>}, {pipeline_mode = #tpu.pipeline_mode<synchronous>, transform_indices = @transform_4, window_bounds = array<i64: 192, 1>}, {pipeline_mode = #tpu.pipeline_mode<synchronous>, transform_indices = @transform_5, window_bounds = array<i64: 96, 96>}, {pipeline_mode = #tpu.pipeline_mode<synchronous>, transform_indices = @transform_6, window_bounds = array<i64: 1, 96>}, {pipeline_mode = #tpu.pipeline_mode<synchronous>, transform_indices = @transform_7, window_bounds = array<i64: 96, 192>}, {pipeline_mode = #tpu.pipeline_mode<synchronous>, transform_indices = @transform_8, window_bounds = array<i64: 1, 192>}, {pipeline_mode = #tpu.pipeline_mode<synchronous>, transform_indices = @transform_9, window_bounds = array<i64: 96, 96>}, {pipeline_mode = #tpu.pipeline_mode<synchronous>, transform_indices = @transform_10, window_bounds = array<i64: 1, 96>}, {pipeline_mode = #tpu.pipeline_mode<synchronous>, transform_indices = @transform_11, window_bounds = array<i64: 192, 192>}, {pipeline_mode = #tpu.pipeline_mode<synchronous>, transform_indices = @transform_12, window_bounds = array<i64: 96, 96>}, {pipeline_mode = #tpu.pipeline_mode<synchronous>, transform_indices = @transform_13, window_bounds = array<i64: 1, 96>}, {pipeline_mode = #tpu.pipeline_mode<synchronous>, transform_indices = @transform_14, window_bounds = array<i64: 192, 192>}, {pipeline_mode = #tpu.pipeline_mode<synchronous>, transform_indices = @transform_15, window_bounds = array<i64: 96, 96>}, {pipeline_mode = #tpu.pipeline_mode<synchronous>, transform_indices = @transform_16, window_bounds = array<i64: 1, 96>}, {transform_indices = @transform_17, window_bounds = array<i64: 1, 64, 96>}]} {
    %c0 = arith.constant 0 : index
    %c0_0 = arith.constant 0 : index
    %c0_1 = arith.constant 0 : index
    %0 = vector.load %arg1[%c0, %c0_0, %c0_1] : memref<1x96x64xf32, #tpu.memory_space<vmem>>, vector<1x96x64xf32>
    %1 = vector.shape_cast %0 : vector<1x96x64xf32> to vector<96x64xf32>
    %c0_2 = arith.constant 0 : index
    %c0_3 = arith.constant 0 : index
    %c0_4 = arith.constant 0 : index
    %2 = vector.load %arg2[%c0_2, %c0_3, %c0_4] : memref<1x64x96xf32, #tpu.memory_space<vmem>>, vector<1x64x96xf32>
    %3 = vector.shape_cast %2 : vector<1x64x96xf32> to vector<64x96xf32>
    %c0_5 = arith.constant 0 : index
    %c0_6 = arith.constant 0 : index
    %c0_7 = arith.constant 0 : index
    %4 = vector.load %arg3[%c0_5, %c0_6, %c0_7] : memref<1x64x96xf32, #tpu.memory_space<vmem>>, vector<1x64x96xf32>
    %5 = vector.shape_cast %4 : vector<1x64x96xf32> to vector<64x96xf32>
    %c0_8 = arith.constant 0 : index
    %c0_9 = arith.constant 0 : index
    %6 = vector.load %arg4[%c0_8, %c0_9] : memref<192x96xf32, #tpu.memory_space<vmem>>, vector<192x96xf32>
    %cst = arith.constant dense<0.000000e+00> : vector<192x64xf32>
    %7 = tpu.matmul %6, %1, %cst {dimension_numbers = #tpu.dot_dimension_numbers<[1], [0], [0], [1], [0, 0, 1, 1], [], []>} : vector<192x96xf32>, vector<96x64xf32>, vector<192x64xf32> -> vector<192x64xf32>
    %c0_10 = arith.constant 0 : index
    %c0_11 = arith.constant 0 : index
    %8 = vector.load %arg5[%c0_10, %c0_11] : memref<192x1xf32, #tpu.memory_space<vmem>>, vector<192x1xf32>
    %9 = vector.broadcast %8 : vector<192x1xf32> to vector<192x64xf32>
    %10 = arith.addf %7, %9 : vector<192x64xf32>
    %c0_12 = arith.constant 0 : index
    %c0_13 = arith.constant 0 : index
    %11 = vector.load %arg6[%c0_12, %c0_13] : memref<96x96xf32, #tpu.memory_space<vmem>>, vector<96x96xf32>
    %cst_14 = arith.constant dense<0.000000e+00> : vector<64x96xf32>
    %12 = tpu.matmul %5, %11, %cst_14 {dimension_numbers = #tpu.dot_dimension_numbers<[1], [0], [0], [1], [0, 0, 1, 1], [], []>} : vector<64x96xf32>, vector<96x96xf32>, vector<64x96xf32> -> vector<64x96xf32>
    %c0_15 = arith.constant 0 : index
    %c0_16 = arith.constant 0 : index
    %13 = vector.load %arg7[%c0_15, %c0_16] : memref<1x96xf32, #tpu.memory_space<vmem>>, vector<1x96xf32>
    %14 = vector.broadcast %13 : vector<1x96xf32> to vector<64x96xf32>
    %15 = arith.addf %12, %14 : vector<64x96xf32>
    %c0_17 = arith.constant 0 : index
    %c0_18 = arith.constant 0 : index
    %16 = vector.load %arg8[%c0_17, %c0_18] : memref<96x192xf32, #tpu.memory_space<vmem>>, vector<96x192xf32>
    %cst_19 = arith.constant dense<0.000000e+00> : vector<64x192xf32>
    %17 = tpu.matmul %3, %16, %cst_19 {dimension_numbers = #tpu.dot_dimension_numbers<[1], [0], [0], [1], [0, 0, 1, 1], [], []>} : vector<64x96xf32>, vector<96x192xf32>, vector<64x192xf32> -> vector<64x192xf32>
    %c0_20 = arith.constant 0 : index
    %c0_21 = arith.constant 0 : index
    %18 = vector.load %arg9[%c0_20, %c0_21] : memref<1x192xf32, #tpu.memory_space<vmem>>, vector<1x192xf32>
    %19 = vector.broadcast %18 : vector<1x192xf32> to vector<64x192xf32>
    %20 = arith.addf %17, %19 : vector<64x192xf32>
    %cst_22 = arith.constant dense<0.000000e+00> : vector<192x96xf32>
    %21 = tpu.matmul %10, %15, %cst_22 {dimension_numbers = #tpu.dot_dimension_numbers<[1], [0], [0], [1], [0, 0, 1, 1], [], []>} : vector<192x64xf32>, vector<64x96xf32>, vector<192x96xf32> -> vector<192x96xf32>
    %cst_23 = arith.constant 1.562500e-02 : f32
    %22 = vector.broadcast %cst_23 : f32 to vector<192x96xf32>
    %23 = arith.mulf %21, %22 : vector<192x96xf32>
    %c0_24 = arith.constant 0 : index
    %c0_25 = arith.constant 0 : index
    %24 = vector.load %arg10[%c0_24, %c0_25] : memref<96x96xf32, #tpu.memory_space<vmem>>, vector<96x96xf32>
    %cst_26 = arith.constant dense<0.000000e+00> : vector<192x96xf32>
    %25 = tpu.matmul %23, %24, %cst_26 {dimension_numbers = #tpu.dot_dimension_numbers<[1], [0], [0], [1], [0, 0, 1, 1], [], []>} : vector<192x96xf32>, vector<96x96xf32>, vector<192x96xf32> -> vector<192x96xf32>
    %c0_27 = arith.constant 0 : index
    %c0_28 = arith.constant 0 : index
    %26 = vector.load %arg11[%c0_27, %c0_28] : memref<1x96xf32, #tpu.memory_space<vmem>>, vector<1x96xf32>
    %27 = vector.broadcast %26 : vector<1x96xf32> to vector<192x96xf32>
    %28 = arith.addf %25, %27 : vector<192x96xf32>
    %29 = arith.addf %28, %23 : vector<192x96xf32>
    %cst_29 = arith.constant 0.000000e+00 : f32
    %30 = vector.broadcast %cst_29 : f32 to vector<192x96xf32>
    %31 = arith.cmpf oge, %29, %30 : vector<192x96xf32>
    %cst_30 = arith.constant 2.000000e-01 : f32
    %32 = vector.broadcast %cst_30 : f32 to vector<192x96xf32>
    %33 = arith.mulf %32, %29 : vector<192x96xf32>
    %34 = arith.select %31, %29, %33 : vector<192x96xi1>, vector<192x96xf32>
    %c0_31 = arith.constant 0 : index
    %c0_32 = arith.constant 0 : index
    %35 = vector.load %arg12[%c0_31, %c0_32] : memref<192x192xf32, #tpu.memory_space<vmem>>, vector<192x192xf32>
    %cst_33 = arith.constant dense<0.000000e+00> : vector<192x96xf32>
    %36 = tpu.matmul %35, %34, %cst_33 {dimension_numbers = #tpu.dot_dimension_numbers<[1], [0], [0], [1], [0, 0, 1, 1], [], []>} : vector<192x192xf32>, vector<192x96xf32>, vector<192x96xf32> -> vector<192x96xf32>
    %c0_34 = arith.constant 0 : index
    %c0_35 = arith.constant 0 : index
    %37 = vector.load %arg13[%c0_34, %c0_35] : memref<96x96xf32, #tpu.memory_space<vmem>>, vector<96x96xf32>
    %cst_36 = arith.constant dense<0.000000e+00> : vector<192x96xf32>
    %38 = tpu.matmul %36, %37, %cst_36 {dimension_numbers = #tpu.dot_dimension_numbers<[1], [0], [0], [1], [0, 0, 1, 1], [], []>} : vector<192x96xf32>, vector<96x96xf32>, vector<192x96xf32> -> vector<192x96xf32>
    %c0_37 = arith.constant 0 : index
    %c0_38 = arith.constant 0 : index
    %39 = vector.load %arg14[%c0_37, %c0_38] : memref<1x96xf32, #tpu.memory_space<vmem>>, vector<1x96xf32>
    %40 = vector.broadcast %39 : vector<1x96xf32> to vector<192x96xf32>
    %41 = arith.addf %38, %40 : vector<192x96xf32>
    %42 = arith.addf %41, %36 : vector<192x96xf32>
    %cst_39 = arith.constant 0.000000e+00 : f32
    %43 = vector.broadcast %cst_39 : f32 to vector<192x96xf32>
    %44 = arith.cmpf oge, %42, %43 : vector<192x96xf32>
    %cst_40 = arith.constant 2.000000e-01 : f32
    %45 = vector.broadcast %cst_40 : f32 to vector<192x96xf32>
    %46 = arith.mulf %45, %42 : vector<192x96xf32>
    %47 = arith.select %44, %42, %46 : vector<192x96xi1>, vector<192x96xf32>
    %c0_41 = arith.constant 0 : index
    %c0_42 = arith.constant 0 : index
    %48 = vector.load %arg15[%c0_41, %c0_42] : memref<192x192xf32, #tpu.memory_space<vmem>>, vector<192x192xf32>
    %cst_43 = arith.constant dense<0.000000e+00> : vector<192x96xf32>
    %49 = tpu.matmul %48, %47, %cst_43 {dimension_numbers = #tpu.dot_dimension_numbers<[1], [0], [0], [1], [0, 0, 1, 1], [], []>} : vector<192x192xf32>, vector<192x96xf32>, vector<192x96xf32> -> vector<192x96xf32>
    %cst_44 = arith.constant dense<0.000000e+00> : vector<64x96xf32>
    %50 = tpu.matmul %20, %49, %cst_44 {dimension_numbers = #tpu.dot_dimension_numbers<[1], [0], [0], [1], [0, 0, 1, 1], [], []>} : vector<64x192xf32>, vector<192x96xf32>, vector<64x96xf32> -> vector<64x96xf32>
    %c0_45 = arith.constant 0 : index
    %c0_46 = arith.constant 0 : index
    %51 = vector.load %arg16[%c0_45, %c0_46] : memref<96x96xf32, #tpu.memory_space<vmem>>, vector<96x96xf32>
    %cst_47 = arith.constant dense<0.000000e+00> : vector<64x96xf32>
    %52 = tpu.matmul %50, %51, %cst_47 {dimension_numbers = #tpu.dot_dimension_numbers<[1], [0], [0], [1], [0, 0, 1, 1], [], []>} : vector<64x96xf32>, vector<96x96xf32>, vector<64x96xf32> -> vector<64x96xf32>
    %c0_48 = arith.constant 0 : index
    %c0_49 = arith.constant 0 : index
    %53 = vector.load %arg17[%c0_48, %c0_49] : memref<1x96xf32, #tpu.memory_space<vmem>>, vector<1x96xf32>
    %54 = vector.broadcast %53 : vector<1x96xf32> to vector<64x96xf32>
    %55 = arith.addf %52, %54 : vector<64x96xf32>
    %56 = arith.addf %3, %55 : vector<64x96xf32>
    %57 = arith.addf %56, %5 : vector<64x96xf32>
    %c0_50 = arith.constant 0 : index
    %c0_51 = arith.constant 0 : index
    %c0_52 = arith.constant 0 : index
    %58 = vector.load %arg18[%c0_50, %c0_51, %c0_52] : memref<1x64x96xf32, #tpu.memory_space<vmem>>, vector<1x64x96xf32>
    %59 = vector.shape_cast %58 : vector<1x64x96xf32> to vector<64x96xf32>
    %60 = vector.shape_cast %57 : vector<64x96xf32> to vector<1x64x96xf32>
    tpu.vector_store %arg18[%c0_50, %c0_51, %c0_52], %60 {strides = array<i32>} : memref<1x64x96xf32, #tpu.memory_space<vmem>>, vector<1x64x96xf32>,
    return
  }
  func.func @transform_0(%arg0: i32) -> (i32, i32, i32) {
    %c0_i32 = arith.constant 0 : i32
    %c0_i32_0 = arith.constant 0 : i32
    %c0_i32_1 = arith.constant 0 : i32
    return %arg0, %c0_i32, %c0_i32_0 : i32, i32, i32
  }
  func.func @transform_1(%arg0: i32) -> (i32, i32, i32) {
    %c0_i32 = arith.constant 0 : i32
    %c0_i32_0 = arith.constant 0 : i32
    %c0_i32_1 = arith.constant 0 : i32
    return %arg0, %c0_i32, %c0_i32_0 : i32, i32, i32
  }
  func.func @transform_2(%arg0: i32) -> (i32, i32, i32) {
    %c0_i32 = arith.constant 0 : i32
    %c0_i32_0 = arith.constant 0 : i32
    %c0_i32_1 = arith.constant 0 : i32
    return %arg0, %c0_i32, %c0_i32_0 : i32, i32, i32
  }
  func.func @transform_3(%arg0: i32) -> (i32, i32) {
    %c0_i32 = arith.constant 0 : i32
    %c0_i32_0 = arith.constant 0 : i32
    %c0_i32_1 = arith.constant 0 : i32
    return %c0_i32, %c0_i32_0 : i32, i32
  }
  func.func @transform_4(%arg0: i32) -> (i32, i32) {
    %c0_i32 = arith.constant 0 : i32
    %c0_i32_0 = arith.constant 0 : i32
    %c0_i32_1 = arith.constant 0 : i32
    return %c0_i32, %c0_i32_0 : i32, i32
  }
  func.func @transform_5(%arg0: i32) -> (i32, i32) {
    %c0_i32 = arith.constant 0 : i32
    %c0_i32_0 = arith.constant 0 : i32
    %c0_i32_1 = arith.constant 0 : i32
    return %c0_i32, %c0_i32_0 : i32, i32
  }
  func.func @transform_6(%arg0: i32) -> (i32, i32) {
    %c0_i32 = arith.constant 0 : i32
    %c0_i32_0 = arith.constant 0 : i32
    %c0_i32_1 = arith.constant 0 : i32
    return %c0_i32, %c0_i32_0 : i32, i32
  }
  func.func @transform_7(%arg0: i32) -> (i32, i32) {
    %c0_i32 = arith.constant 0 : i32
    %c0_i32_0 = arith.constant 0 : i32
    %c0_i32_1 = arith.constant 0 : i32
    return %c0_i32, %c0_i32_0 : i32, i32
  }
  func.func @transform_8(%arg0: i32) -> (i32, i32) {
    %c0_i32 = arith.constant 0 : i32
    %c0_i32_0 = arith.constant 0 : i32
    %c0_i32_1 = arith.constant 0 : i32
    return %c0_i32, %c0_i32_0 : i32, i32
  }
  func.func @transform_9(%arg0: i32) -> (i32, i32) {
    %c0_i32 = arith.constant 0 : i32
    %c0_i32_0 = arith.constant 0 : i32
    %c0_i32_1 = arith.constant 0 : i32
    return %c0_i32, %c0_i32_0 : i32, i32
  }
  func.func @transform_10(%arg0: i32) -> (i32, i32) {
    %c0_i32 = arith.constant 0 : i32
    %c0_i32_0 = arith.constant 0 : i32
    %c0_i32_1 = arith.constant 0 : i32
    return %c0_i32, %c0_i32_0 : i32, i32
  }
  func.func @transform_11(%arg0: i32) -> (i32, i32) {
    %c0_i32 = arith.constant 0 : i32
    %c0_i32_0 = arith.constant 0 : i32
    %c0_i32_1 = arith.constant 0 : i32
    return %c0_i32, %c0_i32_0 : i32, i32
  }
  func.func @transform_12(%arg0: i32) -> (i32, i32) {
    %c0_i32 = arith.constant 0 : i32
    %c0_i32_0 = arith.constant 0 : i32
    %c0_i32_1 = arith.constant 0 : i32
    return %c0_i32, %c0_i32_0 : i32, i32
  }
  func.func @transform_13(%arg0: i32) -> (i32, i32) {
    %c0_i32 = arith.constant 0 : i32
    %c0_i32_0 = arith.constant 0 : i32
    %c0_i32_1 = arith.constant 0 : i32
    return %c0_i32, %c0_i32_0 : i32, i32
  }
  func.func @transform_14(%arg0: i32) -> (i32, i32) {
    %c0_i32 = arith.constant 0 : i32
    %c0_i32_0 = arith.constant 0 : i32
    %c0_i32_1 = arith.constant 0 : i32
    return %c0_i32, %c0_i32_0 : i32, i32
  }
  func.func @transform_15(%arg0: i32) -> (i32, i32) {
    %c0_i32 = arith.constant 0 : i32
    %c0_i32_0 = arith.constant 0 : i32
    %c0_i32_1 = arith.constant 0 : i32
    return %c0_i32, %c0_i32_0 : i32, i32
  }
  func.func @transform_16(%arg0: i32) -> (i32, i32) {
    %c0_i32 = arith.constant 0 : i32
    %c0_i32_0 = arith.constant 0 : i32
    %c0_i32_1 = arith.constant 0 : i32
    return %c0_i32, %c0_i32_0 : i32, i32
  }
  func.func @transform_17(%arg0: i32) -> (i32, i32, i32) {
    %c0_i32 = arith.constant 0 : i32
    %c0_i32_0 = arith.constant 0 : i32
    %c0_i32_1 = arith.constant 0 : i32
    return %arg0, %c0_i32, %c0_i32_0 : i32, i32, i32
  }
}

</mosaic_0001>

<llo_original>
// kernel: gru_forward.1
$region0: #{gru_forward.1}
  #allocation0 [shape = 'u32[]', space=smem, size = 0x4, offset = 0x4, fixed_abs, tag = 'smem constant byte address 0x4 - core index']
  #allocation1 [shape = 'u32[144,128]{1,0:T(1,128)}', space=vmem, size = 0x12000, scoped, tag = 'internal scratch']
  %s0 = inlined_call_operand.vmem [shape: f32[2,96,64], index: 0, kind: input, shape index: {}]
  %s1 = inlined_call_operand.vmem [shape: f32[2,64,96], index: 1, kind: input, shape index: {}]
  %s2 = inlined_call_operand.vmem [shape: f32[2,64,96], index: 2, kind: input, shape index: {}]
  %s3 = inlined_call_operand.vmem [shape: f32[192,96], index: 3, kind: input, shape index: {}]
  %s4 = inlined_call_operand.vmem [shape: f32[192,1], index: 4, kind: input, shape index: {}]
  %s5 = inlined_call_operand.vmem [shape: f32[96,96], index: 5, kind: input, shape index: {}]
  %s6 = inlined_call_operand.vmem [shape: f32[1,96], index: 6, kind: input, shape index: {}]
  %s7 = inlined_call_operand.vmem [shape: f32[96,192], index: 7, kind: input, shape index: {}]
  %s8 = inlined_call_operand.vmem [shape: f32[1,192], index: 8, kind: input, shape index: {}]
  %s9 = inlined_call_operand.vmem [shape: f32[96,96], index: 9, kind: input, shape index: {}]
  %s10 = inlined_call_operand.vmem [shape: f32[1,96], index: 10, kind: input, shape index: {}]
  %s11 = inlined_call_operand.vmem [shape: f32[192,192], index: 11, kind: input, shape index: {}]
  %s12 = inlined_call_operand.vmem [shape: f32[96,96], index: 12, kind: input, shape index: {}]
  %s13 = inlined_call_operand.vmem [shape: f32[1,96], index: 13, kind: input, shape index: {}]
  %s14 = inlined_call_operand.vmem [shape: f32[192,192], index: 14, kind: input, shape index: {}]
  %s15 = inlined_call_operand.vmem [shape: f32[96,96], index: 15, kind: input, shape index: {}]
  %s16 = inlined_call_operand.vmem [shape: f32[1,96], index: 16, kind: input, shape index: {}]
  %s17 = inlined_call_operand.hbm [shape: f32[2,64,96], index: 17, kind: output, shape index: {}]
  %s18 = sld [smem:[#allocation0]]
  $region101: #{gru_forward.1} parent=0
    _
  %s20 = ssub.s32 1, %s18
  %s21 = scalar_select 0, %s20, %s18
  $region1: #{gru_forward.1} parent=0
    #allocation2 [shape = 'u8[65536]{0}', space=vmem, size = 0x10000, scoped, tag = 'output window, operand 0']
    #allocation3 [shape = 's32[2]{0}', space=sflag, size = 0x8, scoped, tag = 'scoped memory for gru_forward.1']
    %22 = vsyncpa [#allocation3], 0
    %s23 = scalar_lea.sflag [#allocation3], 1
    %24 = vsyncpa %s23, 0
    loop: start=0, step=1, limit=4
    $region2: #{gru_forward.1} parent=1 // loop_pre_header
      _
    $region3: #{gru_forward.1} parent=1 // loop_header
      %s26 = sphi 0, %s30
      %p27 = scmp.ge.s32.totalorder %s26, 4
      %s36 = sphi 0, %s38
      %s39 = sphi 0, %s36
      %s40 = sphi 0, %s39
      %s56 = sphi 0, %s40
      %s62 = sphi 0, %s64
      %s65 = sphi 0, %s62
      %s66 = sphi 0, %s65
      %s82 = sphi 0, %s66
      %s88 = sphi 0, %s90
      %s91 = sphi 0, %s88
      %s92 = sphi 0, %s91
      %s108 = sphi 0, %s92
      %s112 = sphi 0, %s112
      %s114 = sphi 0, %s112
      %s115 = sphi 0, %s114
      %s129 = sphi 0, %s115
      %s133 = sphi 0, %s133
      %s135 = sphi 0, %s133
      %s136 = sphi 0, %s135
      %s150 = sphi 0, %s136
      %s154 = sphi 0, %s154
      %s156 = sphi 0, %s154
      %s157 = sphi 0, %s156
      %s171 = sphi 0, %s157
      %s175 = sphi 0, %s175
      %s177 = sphi 0, %s175
      %s178 = sphi 0, %s177
      %s192 = sphi 0, %s178
      %s196 = sphi 0, %s196
      %s198 = sphi 0, %s196
      %s199 = sphi 0, %s198
      %s213 = sphi 0, %s199
      %s217 = sphi 0, %s217
      %s219 = sphi 0, %s217
      %s220 = sphi 0, %s219
      %s234 = sphi 0, %s220
      %s238 = sphi 0, %s238
      %s240 = sphi 0, %s238
      %s241 = sphi 0, %s240
      %s255 = sphi 0, %s241
      %s259 = sphi 0, %s259
      %s261 = sphi 0, %s259
      %s262 = sphi 0, %s261
      %s276 = sphi 0, %s262
      %s280 = sphi 0, %s280
      %s282 = sphi 0, %s280
      %s283 = sphi 0, %s282
      %s297 = sphi 0, %s283
      %s301 = sphi 0, %s301
      %s303 = sphi 0, %s301
      %s304 = sphi 0, %s303
      %s318 = sphi 0, %s304
      %s322 = sphi 0, %s322
      %s324 = sphi 0, %s322
      %s325 = sphi 0, %s324
      %s339 = sphi 0, %s325
      %s343 = sphi 0, %s343
      %s345 = sphi 0, %s343
      %s346 = sphi 0, %s345
      %s360 = sphi 0, %s346
      %s364 = sphi 0, %s364
      %s366 = sphi 0, %s364
      %s367 = sphi 0, %s366
      %s381 = sphi 0, %s367
      %s385 = sphi 0, %s385
      %s387 = sphi 0, %s385
      %s388 = sphi 0, %s387
      %s402 = sphi 0, %s388
      %s408 = sphi 0, %s410
      %s411 = sphi 0, %s408
      %s412 = sphi 0, %s411
      %s428 = sphi 0, %s412
    $region4: #{gru_forward.1} parent=1 // loop_header_branch
      %29 = sbr.rel (%p27) target = $region8
    $region5: #{gru_forward.1} parent=1 // loop_body
      %s31 = ssub.s32 %s26, 1
      %s32 = ssub.s32 %s26, 2
      %s33 = sadd.s32 %s26, 1
      %s34 = ssub.s32 %s26, %s33
      %p35 = scmp.eq.s32.totalorder %s34, 0
      %s37 = sadd.s32 %s36, 1
      %s38 = scalar_select %p35, %s36, %s37
      %p41 = pneg %p35
      %p42 = scmp.eq.s32.totalorder %s26, 1
      %p43 = por %p41, %p42
      %p44 = scmp.ne.s32.totalorder %s36, %s39
      %p45 = scmp.eq.s32.totalorder %s26, 0
      %p46 = por %p44, %p45
      %p47 = scmp.ne.s32.totalorder %s36, %s39
      %p48 = scmp.eq.s32.totalorder %s31, 1
      %p49 = por %p47, %p48
      %p50 = scmp.ne.s32.totalorder %s39, %s40
      %p51 = scmp.eq.s32.totalorder %s31, 0
      %p52 = por %p50, %p51
      %p53 = scmp.ne.s32.totalorder %s39, %s40
      %p54 = scmp.eq.s32.totalorder %s32, 1
      %p55 = por %p53, %p54
      %p57 = scmp.ne.s32.totalorder %s40, %s56
      %p58 = scmp.eq.s32.totalorder %s32, 0
      %p59 = por %p57, %p58
      %s60 = ssub.s32 %s26, %s33
      %p61 = scmp.eq.s32.totalorder %s60, 0
      %s63 = sadd.s32 %s62, 1
      %s64 = scalar_select %p61, %s62, %s63
      %p67 = pneg %p61
      %p68 = scmp.eq.s32.totalorder %s26, 1
      %p69 = por %p67, %p68
      %p70 = scmp.ne.s32.totalorder %s62, %s65
      %p71 = scmp.eq.s32.totalorder %s26, 0
      %p72 = por %p70, %p71
      %p73 = scmp.ne.s32.totalorder %s62, %s65
      %p74 = scmp.eq.s32.totalorder %s31, 1
      %p75 = por %p73, %p74
      %p76 = scmp.ne.s32.totalorder %s65, %s66
      %p77 = scmp.eq.s32.totalorder %s31, 0
      %p78 = por %p76, %p77
      %p79 = scmp.ne.s32.totalorder %s65, %s66
      %p80 = scmp.eq.s32.totalorder %s32, 1
      %p81 = por %p79, %p80
      %p83 = scmp.ne.s32.totalorder %s66, %s82
      %p84 = scmp.eq.s32.totalorder %s32, 0
      %p85 = por %p83, %p84
      %s86 = ssub.s32 %s26, %s33
      %p87 = scmp.eq.s32.totalorder %s86, 0
      %s89 = sadd.s32 %s88, 1
      %s90 = scalar_select %p87, %s88, %s89
      %p93 = pneg %p87
      %p94 = scmp.eq.s32.totalorder %s26, 1
      %p95 = por %p93, %p94
      %p96 = scmp.ne.s32.totalorder %s88, %s91
      %p97 = scmp.eq.s32.totalorder %s26, 0
      %p98 = por %p96, %p97
      %p99 = scmp.ne.s32.totalorder %s88, %s91
      %p100 = scmp.eq.s32.totalorder %s31, 1
      %p101 = por %p99, %p100
      %p102 = scmp.ne.s32.totalorder %s91, %s92
      %p103 = scmp.eq.s32.totalorder %s31, 0
      %p104 = por %p102, %p103
      %p105 = scmp.ne.s32.totalorder %s91, %s92
      %p106 = scmp.eq.s32.totalorder %s32, 1
      %p107 = por %p105, %p106
      %p109 = scmp.ne.s32.totalorder %s92, %s108
      %p110 = scmp.eq.s32.totalorder %s32, 0
      %p111 = por %p109, %p110
      %s113 = sadd.s32 %s112, 1
      %p116 = scmp.eq.s32.totalorder %s26, 1
      %p117 = scmp.ne.s32.totalorder %s112, %s114
      %p118 = scmp.eq.s32.totalorder %s26, 0
      %p119 = por %p117, %p118
      %p120 = scmp.ne.s32.totalorder %s112, %s114
      %p121 = scmp.eq.s32.totalorder %s31, 1
      %p122 = por %p120, %p121
      %p123 = scmp.ne.s32.totalorder %s114, %s115
      %p124 = scmp.eq.s32.totalorder %s31, 0
      %p125 = por %p123, %p124
      %p126 = scmp.ne.s32.totalorder %s114, %s115
      %p127 = scmp.eq.s32.totalorder %s32, 1
      %p128 = por %p126, %p127
      %p130 = scmp.ne.s32.totalorder %s115, %s129
      %p131 = scmp.eq.s32.totalorder %s32, 0
      %p132 = por %p130, %p131
      %s134 = sadd.s32 %s133, 1
      %p137 = scmp.eq.s32.totalorder %s26, 1
      %p138 = scmp.ne.s32.totalorder %s133, %s135
      %p139 = scmp.eq.s32.totalorder %s26, 0
      %p140 = por %p138, %p139
      %p141 = scmp.ne.s32.totalorder %s133, %s135
      %p142 = scmp.eq.s32.totalorder %s31, 1
      %p143 = por %p141, %p142
      %p144 = scmp.ne.s32.totalorder %s135, %s136
      %p145 = scmp.eq.s32.totalorder %s31, 0
      %p146 = por %p144, %p145
      %p147 = scmp.ne.s32.totalorder %s135, %s136
      %p148 = scmp.eq.s32.totalorder %s32, 1
      %p149 = por %p147, %p148
      %p151 = scmp.ne.s32.totalorder %s136, %s150
      %p152 = scmp.eq.s32.totalorder %s32, 0
      %p153 = por %p151, %p152
      %s155 = sadd.s32 %s154, 1
      %p158 = scmp.eq.s32.totalorder %s26, 1
      %p159 = scmp.ne.s32.totalorder %s154, %s156
      %p160 = scmp.eq.s32.totalorder %s26, 0
      %p161 = por %p159, %p160
      %p162 = scmp.ne.s32.totalorder %s154, %s156
      %p163 = scmp.eq.s32.totalorder %s31, 1
      %p164 = por %p162, %p163
      %p165 = scmp.ne.s32.totalorder %s156, %s157
      %p166 = scmp.eq.s32.totalorder %s31, 0
      %p167 = por %p165, %p166
      %p168 = scmp.ne.s32.totalorder %s156, %s157
      %p169 = scmp.eq.s32.totalorder %s32, 1
      %p170 = por %p168, %p169
      %p172 = scmp.ne.s32.totalorder %s157, %s171
      %p173 = scmp.eq.s32.totalorder %s32, 0
      %p174 = por %p172, %p173
      %s176 = sadd.s32 %s175, 1
      %p179 = scmp.eq.s32.totalorder %s26, 1
      %p180 = scmp.ne.s32.totalorder %s175, %s177
      %p181 = scmp.eq.s32.totalorder %s26, 0
      %p182 = por %p180, %p181
      %p183 = scmp.ne.s32.totalorder %s175, %s177
      %p184 = scmp.eq.s32.totalorder %s31, 1
      %p185 = por %p183, %p184
      %p186 = scmp.ne.s32.totalorder %s177, %s178
      %p187 = scmp.eq.s32.totalorder %s31, 0
      %p188 = por %p186, %p187
      %p189 = scmp.ne.s32.totalorder %s177, %s178
      %p190 = scmp.eq.s32.totalorder %s32, 1
      %p191 = por %p189, %p190
      %p193 = scmp.ne.s32.totalorder %s178, %s192
      %p194 = scmp.eq.s32.totalorder %s32, 0
      %p195 = por %p193, %p194
      %s197 = sadd.s32 %s196, 1
      %p200 = scmp.eq.s32.totalorder %s26, 1
      %p201 = scmp.ne.s32.totalorder %s196, %s198
      %p202 = scmp.eq.s32.totalorder %s26, 0
      %p203 = por %p201, %p202
      %p204 = scmp.ne.s32.totalorder %s196, %s198
      %p205 = scmp.eq.s32.totalorder %s31, 1
      %p206 = por %p204, %p205
      %p207 = scmp.ne.s32.totalorder %s198, %s199
      %p208 = scmp.eq.s32.totalorder %s31, 0
      %p209 = por %p207, %p208
      %p210 = scmp.ne.s32.totalorder %s198, %s199
      %p211 = scmp.eq.s32.totalorder %s32, 1
      %p212 = por %p210, %p211
      %p214 = scmp.ne.s32.totalorder %s199, %s213
      %p215 = scmp.eq.s32.totalorder %s32, 0
      %p216 = por %p214, %p215
      %s218 = sadd.s32 %s217, 1
      %p221 = scmp.eq.s32.totalorder %s26, 1
      %p222 = scmp.ne.s32.totalorder %s217, %s219
      %p223 = scmp.eq.s32.totalorder %s26, 0
      %p224 = por %p222, %p223
      %p225 = scmp.ne.s32.totalorder %s217, %s219
      %p226 = scmp.eq.s32.totalorder %s31, 1
      %p227 = por %p225, %p226
      %p228 = scmp.ne.s32.totalorder %s219, %s220
      %p229 = scmp.eq.s32.totalorder %s31, 0
      %p230 = por %p228, %p229
      %p231 = scmp.ne.s32.totalorder %s219, %s220
      %p232 = scmp.eq.s32.totalorder %s32, 1
      %p233 = por %p231, %p232
      %p235 = scmp.ne.s32.totalorder %s220, %s234
      %p236 = scmp.eq.s32.totalorder %s32, 0
      %p237 = por %p235, %p236
      %s239 = sadd.s32 %s238, 1
      %p242 = scmp.eq.s32.totalorder %s26, 1
      %p243 = scmp.ne.s32.totalorder %s238, %s240
      %p244 = scmp.eq.s32.totalorder %s26, 0
      %p245 = por %p243, %p244
      %p246 = scmp.ne.s32.totalorder %s238, %s240
      %p247 = scmp.eq.s32.totalorder %s31, 1
      %p248 = por %p246, %p247
      %p249 = scmp.ne.s32.totalorder %s240, %s241
      %p250 = scmp.eq.s32.totalorder %s31, 0
      %p251 = por %p249, %p250
      %p252 = scmp.ne.s32.totalorder %s240, %s241
      %p253 = scmp.eq.s32.totalorder %s32, 1
      %p254 = por %p252, %p253
      %p256 = scmp.ne.s32.totalorder %s241, %s255
      %p257 = scmp.eq.s32.totalorder %s32, 0
      %p258 = por %p256, %p257
      %s260 = sadd.s32 %s259, 1
      %p263 = scmp.eq.s32.totalorder %s26, 1
      %p264 = scmp.ne.s32.totalorder %s259, %s261
      %p265 = scmp.eq.s32.totalorder %s26, 0
      %p266 = por %p264, %p265
      %p267 = scmp.ne.s32.totalorder %s259, %s261
      %p268 = scmp.eq.s32.totalorder %s31, 1
      %p269 = por %p267, %p268
      %p270 = scmp.ne.s32.totalorder %s261, %s262
      %p271 = scmp.eq.s32.totalorder %s31, 0
      %p272 = por %p270, %p271
      %p273 = scmp.ne.s32.totalorder %s261, %s262
      %p274 = scmp.eq.s32.totalorder %s32, 1
      %p275 = por %p273, %p274
      %p277 = scmp.ne.s32.totalorder %s262, %s276
      %p278 = scmp.eq.s32.totalorder %s32, 0
      %p279 = por %p277, %p278
      %s281 = sadd.s32 %s280, 1
      %p284 = scmp.eq.s32.totalorder %s26, 1
      %p285 = scmp.ne.s32.totalorder %s280, %s282
      %p286 = scmp.eq.s32.totalorder %s26, 0
      %p287 = por %p285, %p286
      %p288 = scmp.ne.s32.totalorder %s280, %s282
      %p289 = scmp.eq.s32.totalorder %s31, 1
      %p290 = por %p288, %p289
      %p291 = scmp.ne.s32.totalorder %s282, %s283
      %p292 = scmp.eq.s32.totalorder %s31, 0
      %p293 = por %p291, %p292
      %p294 = scmp.ne.s32.totalorder %s282, %s283
      %p295 = scmp.eq.s32.totalorder %s32, 1
      %p296 = por %p294, %p295
      %p298 = scmp.ne.s32.totalorder %s283, %s297
      %p299 = scmp.eq.s32.totalorder %s32, 0
      %p300 = por %p298, %p299
      %s302 = sadd.s32 %s301, 1
      %p305 = scmp.eq.s32.totalorder %s26, 1
      %p306 = scmp.ne.s32.totalorder %s301, %s303
      %p307 = scmp.eq.s32.totalorder %s26, 0
      %p308 = por %p306, %p307
      %p309 = scmp.ne.s32.totalorder %s301, %s303
      %p310 = scmp.eq.s32.totalorder %s31, 1
      %p311 = por %p309, %p310
      %p312 = scmp.ne.s32.totalorder %s303, %s304
      %p313 = scmp.eq.s32.totalorder %s31, 0
      %p314 = por %p312, %p313
      %p315 = scmp.ne.s32.totalorder %s303, %s304
      %p316 = scmp.eq.s32.totalorder %s32, 1
      %p317 = por %p315, %p316
      %p319 = scmp.ne.s32.totalorder %s304, %s318
      %p320 = scmp.eq.s32.totalorder %s32, 0
      %p321 = por %p319, %p320
      %s323 = sadd.s32 %s322, 1
      %p326 = scmp.eq.s32.totalorder %s26, 1
      %p327 = scmp.ne.s32.totalorder %s322, %s324
      %p328 = scmp.eq.s32.totalorder %s26, 0
      %p329 = por %p327, %p328
      %p330 = scmp.ne.s32.totalorder %s322, %s324
      %p331 = scmp.eq.s32.totalorder %s31, 1
      %p332 = por %p330, %p331
      %p333 = scmp.ne.s32.totalorder %s324, %s325
      %p334 = scmp.eq.s32.totalorder %s31, 0
      %p335 = por %p333, %p334
      %p336 = scmp.ne.s32.totalorder %s324, %s325
      %p337 = scmp.eq.s32.totalorder %s32, 1
      %p338 = por %p336, %p337
      %p340 = scmp.ne.s32.totalorder %s325, %s339
      %p341 = scmp.eq.s32.totalorder %s32, 0
      %p342 = por %p340, %p341
      %s344 = sadd.s32 %s343, 1
      %p347 = scmp.eq.s32.totalorder %s26, 1
      %p348 = scmp.ne.s32.totalorder %s343, %s345
      %p349 = scmp.eq.s32.totalorder %s26, 0
      %p350 = por %p348, %p349
      %p351 = scmp.ne.s32.totalorder %s343, %s345
      %p352 = scmp.eq.s32.totalorder %s31, 1
      %p353 = por %p351, %p352
      %p354 = scmp.ne.s32.totalorder %s345, %s346
      %p355 = scmp.eq.s32.totalorder %s31, 0
      %p356 = por %p354, %p355
      %p357 = scmp.ne.s32.totalorder %s345, %s346
      %p358 = scmp.eq.s32.totalorder %s32, 1
      %p359 = por %p357, %p358
      %p361 = scmp.ne.s32.totalorder %s346, %s360
      %p362 = scmp.eq.s32.totalorder %s32, 0
      %p363 = por %p361, %p362
      %s365 = sadd.s32 %s364, 1
      %p368 = scmp.eq.s32.totalorder %s26, 1
      %p369 = scmp.ne.s32.totalorder %s364, %s366
      %p370 = scmp.eq.s32.totalorder %s26, 0
      %p371 = por %p369, %p370
      %p372 = scmp.ne.s32.totalorder %s364, %s366
      %p373 = scmp.eq.s32.totalorder %s31, 1
      %p374 = por %p372, %p373
      %p375 = scmp.ne.s32.totalorder %s366, %s367
      %p376 = scmp.eq.s32.totalorder %s31, 0
      %p377 = por %p375, %p376
      %p378 = scmp.ne.s32.totalorder %s366, %s367
      %p379 = scmp.eq.s32.totalorder %s32, 1
      %p380 = por %p378, %p379
      %p382 = scmp.ne.s32.totalorder %s367, %s381
      %p383 = scmp.eq.s32.totalorder %s32, 0
      %p384 = por %p382, %p383
      %s386 = sadd.s32 %s385, 1
      %p389 = scmp.eq.s32.totalorder %s26, 1
      %p390 = scmp.ne.s32.totalorder %s385, %s387
      %p391 = scmp.eq.s32.totalorder %s26, 0
      %p392 = por %p390, %p391
      %p393 = scmp.ne.s32.totalorder %s385, %s387
      %p394 = scmp.eq.s32.totalorder %s31, 1
      %p395 = por %p393, %p394
      %p396 = scmp.ne.s32.totalorder %s387, %s388
      %p397 = scmp.eq.s32.totalorder %s31, 0
      %p398 = por %p396, %p397
      %p399 = scmp.ne.s32.totalorder %s387, %s388
      %p400 = scmp.eq.s32.totalorder %s32, 1
      %p401 = por %p399, %p400
      %p403 = scmp.ne.s32.totalorder %s388, %s402
      %p404 = scmp.eq.s32.totalorder %s32, 0
      %p405 = por %p403, %p404
      %s406 = ssub.s32 %s26, %s33
      %p407 = scmp.eq.s32.totalorder %s406, 0
      %s409 = sadd.s32 %s408, 1
      %s410 = scalar_select %p407, %s408, %s409
      %p413 = pneg %p407
      %p414 = scmp.eq.s32.totalorder %s26, 1
      %p415 = por %p413, %p414
      %p416 = scmp.ne.s32.totalorder %s408, %s411
      %p417 = scmp.eq.s32.totalorder %s26, 0
      %p418 = por %p416, %p417
      %p419 = scmp.ne.s32.totalorder %s408, %s411
      %p420 = scmp.eq.s32.totalorder %s31, 1
      %p421 = por %p419, %p420
      %p422 = scmp.ne.s32.totalorder %s411, %s412
      %p423 = scmp.eq.s32.totalorder %s31, 0
      %p424 = por %p422, %p423
      %p425 = scmp.ne.s32.totalorder %s411, %s412
      %p426 = scmp.eq.s32.totalorder %s32, 1
      %p427 = por %p425, %p426
      %p429 = scmp.ne.s32.totalorder %s412, %s428
      %p430 = scmp.eq.s32.totalorder %s32, 0
      %p431 = por %p429, %p430
      %p432 = scmp.le.s32.totalorder 1, %s26
      %p433 = scmp.lt.s32.totalorder %s26, 3
      %p434 = pnand %p432, %p433
      %p435 = pneg %p434
      // Predicated region
      $region9: #{gru_forward.1} parent=5 // pred_check
        _
      $region10: #{gru_forward.1} parent=5 // pred_check_branch
        %437 = sbr.rel (%p434) target = $region12
      $region11: #{gru_forward.1} parent=5 // pred_region
        %s438 = ssub.s32 %s26, 1
        // Predicated region
        $region13: #{gru_forward.1} parent=11 // pred_check
          %p439 = pneg %p125
        $region14: #{gru_forward.1} parent=11 // pred_check_branch
          %441 = sbr.rel (%p439) target = $region16
        $region15: #{gru_forward.1} parent=11 // pred_region
          _
        $region16: #{gru_forward.1} parent=11 // pred_fallthru
          _
        // Predicated region
        $region17: #{gru_forward.1} parent=11 // pred_check
          %p442 = pneg %p146
        $region18: #{gru_forward.1} parent=11 // pred_check_branch
          %444 = sbr.rel (%p442) target = $region20
        $region19: #{gru_forward.1} parent=11 // pred_region
          _
        $region20: #{gru_forward.1} parent=11 // pred_fallthru
          _
        // Predicated region
        $region21: #{gru_forward.1} parent=11 // pred_check
          %p445 = pneg %p167
        $region22: #{gru_forward.1} parent=11 // pred_check_branch
          %447 = sbr.rel (%p445) target = $region24
        $region23: #{gru_forward.1} parent=11 // pred_region
          _
        $region24: #{gru_forward.1} parent=11 // pred_fallthru
          _
        // Predicated region
        $region25: #{gru_forward.1} parent=11 // pred_check
          %p448 = pneg %p188
        $region26: #{gru_forward.1} parent=11 // pred_check_branch
          %450 = sbr.rel (%p448) target = $region28
        $region27: #{gru_forward.1} parent=11 // pred_region
          _
        $region28: #{gru_forward.1} parent=11 // pred_fallthru
          _
        // Predicated region
        $region29: #{gru_forward.1} parent=11 // pred_check
          %p451 = pneg %p209
        $region30: #{gru_forward.1} parent=11 // pred_check_branch
          %453 = sbr.rel (%p451) target = $region32
        $region31: #{gru_forward.1} parent=11 // pred_region
          _
        $region32: #{gru_forward.1} parent=11 // pred_fallthru
          _
        // Predicated region
        $region33: #{gru_forward.1} parent=11 // pred_check
          %p454 = pneg %p230
        $region34: #{gru_forward.1} parent=11 // pred_check_branch
          %456 = sbr.rel (%p454) target = $region36
        $region35: #{gru_forward.1} parent=11 // pred_region
          _
        $region36: #{gru_forward.1} parent=11 // pred_fallthru
          _
        // Predicated region
        $region37: #{gru_forward.1} parent=11 // pred_check
          %p457 = pneg %p251
        $region38: #{gru_forward.1} parent=11 // pred_check_branch
          %459 = sbr.rel (%p457) target = $region40
        $region39: #{gru_forward.1} parent=11 // pred_region
          _
        $region40: #{gru_forward.1} parent=11 // pred_fallthru
          _
        // Predicated region
        $region41: #{gru_forward.1} parent=11 // pred_check
          %p460 = pneg %p272
        $region42: #{gru_forward.1} parent=11 // pred_check_branch
          %462 = sbr.rel (%p460) target = $region44
        $region43: #{gru_forward.1} parent=11 // pred_region
          _
        $region44: #{gru_forward.1} parent=11 // pred_fallthru
          _
        // Predicated region
        $region45: #{gru_forward.1} parent=11 // pred_check
          %p463 = pneg %p293
        $region46: #{gru_forward.1} parent=11 // pred_check_branch
          %465 = sbr.rel (%p463) target = $region48
        $region47: #{gru_forward.1} parent=11 // pred_region
          _
        $region48: #{gru_forward.1} parent=11 // pred_fallthru
          _
        // Predicated region
        $region49: #{gru_forward.1} parent=11 // pred_check
          %p466 = pneg %p314
        $region50: #{gru_forward.1} parent=11 // pred_check_branch
          %468 = sbr.rel (%p466) target = $region52
        $region51: #{gru_forward.1} parent=11 // pred_region
          _
        $region52: #{gru_forward.1} parent=11 // pred_fallthru
          _
        // Predicated region
        $region53: #{gru_forward.1} parent=11 // pred_check
          %p469 = pneg %p335
        $region54: #{gru_forward.1} parent=11 // pred_check_branch
          %471 = sbr.rel (%p469) target = $region56
        $region55: #{gru_forward.1} parent=11 // pred_region
          _
        $region56: #{gru_forward.1} parent=11 // pred_fallthru
          _
        // Predicated region
        $region57: #{gru_forward.1} parent=11 // pred_check
          %p472 = pneg %p356
        $region58: #{gru_forward.1} parent=11 // pred_check_branch
          %474 = sbr.rel (%p472) target = $region60
        $region59: #{gru_forward.1} parent=11 // pred_region
          _
        $region60: #{gru_forward.1} parent=11 // pred_fallthru
          _
        // Predicated region
        $region61: #{gru_forward.1} parent=11 // pred_check
          %p475 = pneg %p377
        $region62: #{gru_forward.1} parent=11 // pred_check_branch
          %477 = sbr.rel (%p475) target = $region64
        $region63: #{gru_forward.1} parent=11 // pred_region
          _
        $region64: #{gru_forward.1} parent=11 // pred_fallthru
          _
        // Predicated region
        $region65: #{gru_forward.1} parent=11 // pred_check
          %p478 = pneg %p398
        $region66: #{gru_forward.1} parent=11 // pred_check_branch
          %480 = sbr.rel (%p478) target = $region68
        $region67: #{gru_forward.1} parent=11 // pred_region
          _
        $region68: #{gru_forward.1} parent=11 // pred_fallthru
          _
      $region12: #{gru_forward.1} parent=5 // pred_fallthru
        _
      %p481 = scmp.lt.s32.totalorder %s26, 2
      // Predicated region
      $region69: #{gru_forward.1} parent=5 // pred_check
        %p482 = pneg %p481
      $region70: #{gru_forward.1} parent=5 // pred_check_branch
        %484 = sbr.rel (%p482) target = $region72
      $region71: #{gru_forward.1} parent=5 // pred_region
        // Predicated region
        $region73: #{gru_forward.1} parent=71 // pred_check
          %p485 = pneg %p46
        $region74: #{gru_forward.1} parent=71 // pred_check_branch
          %487 = sbr.rel (%p485) target = $region76
        $region75: #{gru_forward.1} parent=71 // pred_region
          %p488 = scmp.lt.s32.totalorder %s26, 1
          %s489 = scalar_select %p488, %s26, 1
          %s490 = smul.addr %s489, 12
          %s491 = smul.addr %s490, 8
          %s492 = scalar_lea.vmem %s0, %s491
        $region76: #{gru_forward.1} parent=71 // pred_fallthru
          _
        // Predicated region
        $region77: #{gru_forward.1} parent=71 // pred_check
          %p493 = pneg %p72
        $region78: #{gru_forward.1} parent=71 // pred_check_branch
          %495 = sbr.rel (%p493) target = $region80
        $region79: #{gru_forward.1} parent=71 // pred_region
          %p496 = scmp.lt.s32.totalorder %s26, 1
          %s497 = scalar_select %p496, %s26, 1
          %s498 = smul.addr %s497, 8
          %s499 = smul.addr %s498, 8
          %s500 = scalar_lea.vmem %s1, %s499
        $region80: #{gru_forward.1} parent=71 // pred_fallthru
          _
        // Predicated region
        $region81: #{gru_forward.1} parent=71 // pred_check
          %p501 = pneg %p98
        $region82: #{gru_forward.1} parent=71 // pred_check_branch
          %503 = sbr.rel (%p501) target = $region84
        $region83: #{gru_forward.1} parent=71 // pred_region
          %p504 = scmp.lt.s32.totalorder %s26, 1
          %s505 = scalar_select %p504, %s26, 1
          %s506 = smul.addr %s505, 8
          %s507 = smul.addr %s506, 8
          %s508 = scalar_lea.vmem %s2, %s507
        $region84: #{gru_forward.1} parent=71 // pred_fallthru
          _
      $region72: #{gru_forward.1} parent=5 // pred_fallthru
        _
      %p509 = scmp.le.s32.totalorder 1, %s26
      %p510 = scmp.lt.s32.totalorder %s26, 3
      %p511 = pnand %p509, %p510
      %p512 = pneg %p511
      // Predicated region
      $region85: #{gru_forward.1} parent=5 // pred_check
        _
      $region86: #{gru_forward.1} parent=5 // pred_check_branch
        %514 = sbr.rel (%p511) target = $region88
      $region87: #{gru_forward.1} parent=5 // pred_region
        %s515 = ssub.s32 %s26, 1
        %p516 = scmp.lt.s32.totalorder %s31, 1
        %s517 = scalar_select %p516, %s31, 1
        %s518 = smul.addr %s517, 12
        %s519 = smul.addr %s518, 8
        %s520 = scalar_lea.vmem %s0, %s519
        %p521 = pneg %p52
        %p522 = pneg %p49
        %p523 = scmp.lt.s32.totalorder %s31, 1
        %s524 = scalar_select %p523, %s31, 1
        %s525 = smul.addr %s524, 8
        %s526 = smul.addr %s525, 8
        %s527 = scalar_lea.vmem %s1, %s526
        %p528 = pneg %p78
        %p529 = pneg %p75
        %p530 = scmp.lt.s32.totalorder %s31, 1
        %s531 = scalar_select %p530, %s31, 1
        %s532 = smul.addr %s531, 8
        %s533 = smul.addr %s532, 8
        %s534 = scalar_lea.vmem %s2, %s533
        %p535 = pneg %p104
        %p536 = pneg %p101
        %p537 = pneg %p125
        %p538 = pneg %p122
        %p539 = pneg %p146
        %p540 = pneg %p143
        %p541 = pneg %p167
        %p542 = pneg %p164
        %p543 = pneg %p188
        %p544 = pneg %p185
        %p545 = pneg %p209
        %p546 = pneg %p206
        %p547 = pneg %p230
        %p548 = pneg %p227
        %p549 = pneg %p251
        %p550 = pneg %p248
        %p551 = pneg %p272
        %p552 = pneg %p269
        %p553 = pneg %p293
        %p554 = pneg %p290
        %p555 = pneg %p314
        %p556 = pneg %p311
        %p557 = pneg %p335
        %p558 = pneg %p332
        %p559 = pneg %p356
        %p560 = pneg %p353
        %p561 = pneg %p377
        %p562 = pneg %p374
        %p563 = pneg %p398
        %p564 = pneg %p395
        %p565 = pneg %p424
        %p566 = pneg %p421
        %s567 = sand.u32 %s411, 1
        %s568 = scalar_lea.sflag [#allocation3], %s567
        %s569 = sand.u32 %s411, 1
        %s570 = smul.addr %s569, 64
        %s571 = scalar_lea.vmem [#allocation2], %s570
        %p572 = scmp.lt.s32.totalorder %s31, 1
        %s573 = scalar_select %p572, %s31, 1
        %s574 = smul.addr %s573, 12
        %s575 = smul.addr %s574, 8
        %s576 = scalar_lea.vmem %s0, %s575
        %p577 = scmp.lt.s32.totalorder %s31, 1
        %s578 = scalar_select %p577, %s31, 1
        %s579 = smul.addr %s578, 8
        %s580 = smul.addr %s579, 8
        %s581 = scalar_lea.vmem %s1, %s580
        %p582 = scmp.lt.s32.totalorder %s31, 1
        %s583 = scalar_select %p582, %s31, 1
        %s584 = smul.addr %s583, 8
        %s585 = smul.addr %s584, 8
        %s586 = scalar_lea.vmem %s2, %s585
        %v587 = vld [vmem:[%s576] sm:$0xff]
        %v588 = vld [vmem:[%s576 + $0x8] sm:$0xff]
        %v589 = vld [vmem:[%s576 + $0x10] sm:$0xff]
        %v590 = vld [vmem:[%s576 + $0x18] sm:$0xff]
        %v591 = vld [vmem:[%s576 + $0x20] sm:$0xff]
        %v592 = vld [vmem:[%s576 + $0x28] sm:$0xff]
        %v593 = vld [vmem:[%s576 + $0x30] sm:$0xff]
        %v594 = vld [vmem:[%s576 + $0x38] sm:$0xff]
        %v595 = vld [vmem:[%s576 + $0x40] sm:$0xff]
        %v596 = vld [vmem:[%s576 + $0x48] sm:$0xff]
        %v597 = vld [vmem:[%s576 + $0x50] sm:$0xff]
        %v598 = vld [vmem:[%s576 + $0x58] sm:$0xff]
        %v599 = vld [vmem:[%s581] sm:$0xff]
        %v600 = vld [vmem:[%s581 + $0x8] sm:$0xff]
        %v601 = vld [vmem:[%s581 + $0x10] sm:$0xff]
        %v602 = vld [vmem:[%s581 + $0x18] sm:$0xff]
        %v603 = vld [vmem:[%s581 + $0x20] sm:$0xff]
        %v604 = vld [vmem:[%s581 + $0x28] sm:$0xff]
        %v605 = vld [vmem:[%s581 + $0x30] sm:$0xff]
        %v606 = vld [vmem:[%s581 + $0x38] sm:$0xff]
        %v607 = vld [vmem:[%s586] sm:$0xff]
        %v608 = vld [vmem:[%s586 + $0x8] sm:$0xff]
        %v609 = vld [vmem:[%s586 + $0x10] sm:$0xff]
        %v610 = vld [vmem:[%s586 + $0x18] sm:$0xff]
        %v611 = vld [vmem:[%s586 + $0x20] sm:$0xff]
        %v612 = vld [vmem:[%s586 + $0x28] sm:$0xff]
        %v613 = vld [vmem:[%s586 + $0x30] sm:$0xff]
        %v614 = vld [vmem:[%s586 + $0x38] sm:$0xff]
        %v615 = vld [vmem:[%s3] sm:$0xff]
        %v616 = vld [vmem:[%s3 + $0x8] sm:$0xff]
        %v617 = vld [vmem:[%s3 + $0x10] sm:$0xff]
        %v618 = vld [vmem:[%s3 + $0x18] sm:$0xff]
        %v619 = vld [vmem:[%s3 + $0x20] sm:$0xff]
        %v620 = vld [vmem:[%s3 + $0x28] sm:$0xff]
        %v621 = vld [vmem:[%s3 + $0x30] sm:$0xff]
        %v622 = vld [vmem:[%s3 + $0x38] sm:$0xff]
        %v623 = vld [vmem:[%s3 + $0x40] sm:$0xff]
        %v624 = vld [vmem:[%s3 + $0x48] sm:$0xff]
        %v625 = vld [vmem:[%s3 + $0x50] sm:$0xff]
        %v626 = vld [vmem:[%s3 + $0x58] sm:$0xff]
        %v627 = vld [vmem:[%s3 + $0x60] sm:$0xff]
        %v628 = vld [vmem:[%s3 + $0x68] sm:$0xff]
        %v629 = vld [vmem:[%s3 + $0x70] sm:$0xff]
        %v630 = vld [vmem:[%s3 + $0x78] sm:$0xff]
        %v631 = vld [vmem:[%s3 + $0x80] sm:$0xff]
        %v632 = vld [vmem:[%s3 + $0x88] sm:$0xff]
        %v633 = vld [vmem:[%s3 + $0x90] sm:$0xff]
        %v634 = vld [vmem:[%s3 + $0x98] sm:$0xff]
        %v635 = vld [vmem:[%s3 + $0xa0] sm:$0xff]
        %v636 = vld [vmem:[%s3 + $0xa8] sm:$0xff]
        %v637 = vld [vmem:[%s3 + $0xb0] sm:$0xff]
        %v638 = vld [vmem:[%s3 + $0xb8] sm:$0xff]
        %v639 = vld [vmem:[%s4] sm:$0xff]
        %v640 = vld [vmem:[%s4 + $0x8] sm:$0xff]
        %v641 = vld [vmem:[%s4 + $0x10] sm:$0xff]
        %v642 = vld [vmem:[%s4 + $0x18] sm:$0xff]
        %v643 = vld [vmem:[%s4 + $0x20] sm:$0xff]
        %v644 = vld [vmem:[%s4 + $0x28] sm:$0xff]
        %v645 = vld [vmem:[%s4 + $0x30] sm:$0xff]
        %v646 = vld [vmem:[%s4 + $0x38] sm:$0xff]
        %v647 = vld [vmem:[%s4 + $0x40] sm:$0xff]
        %v648 = vld [vmem:[%s4 + $0x48] sm:$0xff]
        %v649 = vld [vmem:[%s4 + $0x50] sm:$0xff]
        %v650 = vld [vmem:[%s4 + $0x58] sm:$0xff]
        %v651 = vld [vmem:[%s4 + $0x60] sm:$0xff]
        %v652 = vld [vmem:[%s4 + $0x68] sm:$0xff]
        %v653 = vld [vmem:[%s4 + $0x70] sm:$0xff]
        %v654 = vld [vmem:[%s4 + $0x78] sm:$0xff]
        %v655 = vld [vmem:[%s4 + $0x80] sm:$0xff]
        %v656 = vld [vmem:[%s4 + $0x88] sm:$0xff]
        %v657 = vld [vmem:[%s4 + $0x90] sm:$0xff]
        %v658 = vld [vmem:[%s4 + $0x98] sm:$0xff]
        %v659 = vld [vmem:[%s4 + $0xa0] sm:$0xff]
        %v660 = vld [vmem:[%s4 + $0xa8] sm:$0xff]
        %v661 = vld [vmem:[%s4 + $0xb0] sm:$0xff]
        %v662 = vld [vmem:[%s4 + $0xb8] sm:$0xff]
        %664 = vset.pattern.permute.xlu0 0
        %665 = vperm.xlu0 %664, %v639
        %v666 = vpop.permute.xlu0 %665
        %669 = vset.pattern.permute.xlu0 0
        %670 = vperm.xlu0 %669, %v640
        %v671 = vpop.permute.xlu0 %670
        %674 = vset.pattern.permute.xlu0 0
        %675 = vperm.xlu0 %674, %v641
        %v676 = vpop.permute.xlu0 %675
        %679 = vset.pattern.permute.xlu0 0
        %680 = vperm.xlu0 %679, %v642
        %v681 = vpop.permute.xlu0 %680
        %684 = vset.pattern.permute.xlu0 0
        %685 = vperm.xlu0 %684, %v643
        %v686 = vpop.permute.xlu0 %685
        %689 = vset.pattern.permute.xlu0 0
        %690 = vperm.xlu0 %689, %v644
        %v691 = vpop.permute.xlu0 %690
        %694 = vset.pattern.permute.xlu0 0
        %695 = vperm.xlu0 %694, %v645
        %v696 = vpop.permute.xlu0 %695
        %699 = vset.pattern.permute.xlu0 0
        %700 = vperm.xlu0 %699, %v646
        %v701 = vpop.permute.xlu0 %700
        %704 = vset.pattern.permute.xlu0 0
        %705 = vperm.xlu0 %704, %v647
        %v706 = vpop.permute.xlu0 %705
        %709 = vset.pattern.permute.xlu0 0
        %710 = vperm.xlu0 %709, %v648
        %v711 = vpop.permute.xlu0 %710
        %714 = vset.pattern.permute.xlu0 0
        %715 = vperm.xlu0 %714, %v649
        %v716 = vpop.permute.xlu0 %715
        %719 = vset.pattern.permute.xlu0 0
        %720 = vperm.xlu0 %719, %v650
        %v721 = vpop.permute.xlu0 %720
        %724 = vset.pattern.permute.xlu0 0
        %725 = vperm.xlu0 %724, %v651
        %v726 = vpop.permute.xlu0 %725
        %729 = vset.pattern.permute.xlu0 0
        %730 = vperm.xlu0 %729, %v652
        %v731 = vpop.permute.xlu0 %730
        %734 = vset.pattern.permute.xlu0 0
        %735 = vperm.xlu0 %734, %v653
        %v736 = vpop.permute.xlu0 %735
        %739 = vset.pattern.permute.xlu0 0
        %740 = vperm.xlu0 %739, %v654
        %v741 = vpop.permute.xlu0 %740
        %744 = vset.pattern.permute.xlu0 0
        %745 = vperm.xlu0 %744, %v655
        %v746 = vpop.permute.xlu0 %745
        %749 = vset.pattern.permute.xlu0 0
        %750 = vperm.xlu0 %749, %v656
        %v751 = vpop.permute.xlu0 %750
        %754 = vset.pattern.permute.xlu0 0
        %755 = vperm.xlu0 %754, %v657
        %v756 = vpop.permute.xlu0 %755
        %759 = vset.pattern.permute.xlu0 0
        %760 = vperm.xlu0 %759, %v658
        %v761 = vpop.permute.xlu0 %760
        %764 = vset.pattern.permute.xlu0 0
        %765 = vperm.xlu0 %764, %v659
        %v766 = vpop.permute.xlu0 %765
        %769 = vset.pattern.permute.xlu0 0
        %770 = vperm.xlu0 %769, %v660
        %v771 = vpop.permute.xlu0 %770
        %774 = vset.pattern.permute.xlu0 0
        %775 = vperm.xlu0 %774, %v661
        %v776 = vpop.permute.xlu0 %775
        %779 = vset.pattern.permute.xlu0 0
        %780 = vperm.xlu0 %779, %v662
        %v781 = vpop.permute.xlu0 %780
        %vm783 = vcmask 785408
        %v785 = vsel %vm783, %v615, 0
        %v788 = vsel %vm783, %v616, 0
        %v791 = vsel %vm783, %v617, 0
        %v794 = vsel %vm783, %v618, 0
        %v797 = vsel %vm783, %v619, 0
        %v800 = vsel %vm783, %v620, 0
        %v803 = vsel %vm783, %v621, 0
        %v806 = vsel %vm783, %v622, 0
        %v809 = vsel %vm783, %v623, 0
        %v812 = vsel %vm783, %v624, 0
        %v815 = vsel %vm783, %v625, 0
        %v818 = vsel %vm783, %v626, 0
        %v821 = vsel %vm783, %v627, 0
        %v824 = vsel %vm783, %v628, 0
        %v827 = vsel %vm783, %v629, 0
        %v830 = vsel %vm783, %v630, 0
        %v833 = vsel %vm783, %v631, 0
        %v836 = vsel %vm783, %v632, 0
        %v839 = vsel %vm783, %v633, 0
        %v842 = vsel %vm783, %v634, 0
        %v845 = vsel %vm783, %v635, 0
        %v848 = vsel %vm783, %v636, 0
        %v851 = vsel %vm783, %v637, 0
        %v854 = vsel %vm783, %v638, 0
        %856 = vmatprep.subr.mxu0 0.0
        %857 = vmatpush1.msra.mxu0 0.0
        %858 = vmatprep.subr.mxu0 0.0
        %859 = vmatpush1.msra.mxu0 0.0
        %860 = vmatprep.subr.mxu0 0.0
        %861 = vmatpush1.msra.mxu0 0.0
        %862 = vmatprep.subr.mxu0 0.0
        %863 = vmatpush1.msra.mxu0 0.0
        %864 = vmatprep.subr.mxu0 0.0
        %865 = vmatpush1.msra.mxu0 %v598
        %866 = vmatprep.subr.mxu0 0.0
        %867 = vmatpush1.msra.mxu0 %v597
        %868 = vmatprep.subr.mxu0 0.0
        %869 = vmatpush1.msra.mxu0 %v596
        %870 = vmatprep.subr.mxu0 0.0
        %871 = vmatpush1.msra.mxu0 %v595
        %872 = vmatprep.subr.mxu0 0.0
        %873 = vmatpush1.msra.mxu0 %v594
        %874 = vmatprep.subr.mxu0 0.0
        %875 = vmatpush1.msra.mxu0 %v593
        %876 = vmatprep.subr.mxu0 0.0
        %877 = vmatpush1.msra.mxu0 %v592
        %878 = vmatprep.subr.mxu0 0.0
        %879 = vmatpush1.msra.mxu0 %v591
        %880 = vmatprep.subr.mxu0 0.0
        %881 = vmatpush1.msra.mxu0 %v590
        %882 = vmatprep.subr.mxu0 0.0
        %883 = vmatpush1.msra.mxu0 %v589
        %884 = vmatprep.subr.mxu0 0.0
        %885 = vmatpush1.msra.mxu0 %v588
        %886 = vmatprep.subr.mxu0 0.0
        %887 = vmatpush1.msra.mxu0 %v587
        %888 = vmatprep.subr.mxu0 0.0
        %889 = vmatpush2.msra.mxu0 0.0
        %890 = vmatprep.subr.mxu0 0.0
        %891 = vmatpush2.msra.mxu0 0.0
        %892 = vmatprep.subr.mxu0 0.0
        %893 = vmatpush2.msra.mxu0 0.0
        %894 = vmatprep.subr.mxu0 0.0
        %895 = vmatpush2.msra.mxu0 0.0
        %896 = vmatprep.subr.mxu0 0.0
        %897 = vmatpush2.msra.mxu0 0.0
        %898 = vmatprep.subr.mxu0 0.0
        %899 = vmatpush2.msra.mxu0 0.0
        %900 = vmatprep.subr.mxu0 0.0
        %901 = vmatpush2.msra.mxu0 0.0
        %902 = vmatprep.subr.mxu0 0.0
        %903 = vmatpush2.msra.mxu0 0.0
        %904 = vmatprep.subr.mxu0 0.0
        %905 = vmatpush2.msra.mxu0 0.0
        %906 = vmatprep.subr.mxu0 0.0
        %907 = vmatpush2.msra.mxu0 0.0
        %908 = vmatprep.subr.mxu0 0.0
        %909 = vmatpush2.msra.mxu0 0.0
        %910 = vmatprep.subr.mxu0 0.0
        %911 = vmatpush2.msra.mxu0 0.0
        %912 = vmatprep.subr.mxu0 0.0
        %913 = vmatpush2.msra.mxu0 0.0
        %914 = vmatprep.subr.mxu0 0.0
        %915 = vmatpush2.msra.mxu0 0.0
        %916 = vmatprep.subr.mxu0 0.0
        %917 = vmatpush2.msra.mxu0 0.0
        %918 = vmatprep.subr.mxu0 0.0
        %919 = vmatpush2.msra.mxu0 0.0
        %920 = vmatprep.mubr.f32.mxu0 0.0
        %921 = vmatmul.mubr.f32.gmra.mxu0 %v785
        %v922 = vpop.f32.mrf.mxu0
        %v923 = vadd.f32 %v666, %v922
        %v924 = vpop.f32.mrf.mxu0
        %925 = vmatprep.mubr.f32.mxu0 0.0
        %926 = vmatmul.mubr.f32.gmra.mxu0 %v788
        %v927 = vpop.f32.mrf.mxu0
        %v928 = vadd.f32 %v671, %v927
        %v929 = vpop.f32.mrf.mxu0
        %930 = vmatprep.mubr.f32.mxu0 0.0
        %931 = vmatmul.mubr.f32.gmra.mxu0 %v791
        %v932 = vpop.f32.mrf.mxu0
        %v933 = vadd.f32 %v676, %v932
        %v934 = vpop.f32.mrf.mxu0
        %935 = vmatprep.mubr.f32.mxu0 0.0
        %936 = vmatmul.mubr.f32.gmra.mxu0 %v794
        %v937 = vpop.f32.mrf.mxu0
        %v938 = vadd.f32 %v681, %v937
        %v939 = vpop.f32.mrf.mxu0
        %940 = vmatprep.mubr.f32.mxu0 0.0
        %941 = vmatmul.mubr.f32.gmra.mxu0 %v797
        %v942 = vpop.f32.mrf.mxu0
        %v943 = vadd.f32 %v686, %v942
        %v944 = vpop.f32.mrf.mxu0
        %945 = vmatprep.mubr.f32.mxu0 0.0
        %946 = vmatmul.mubr.f32.gmra.mxu0 %v800
        %v947 = vpop.f32.mrf.mxu0
        %v948 = vadd.f32 %v691, %v947
        %v949 = vpop.f32.mrf.mxu0
        %950 = vmatprep.mubr.f32.mxu0 0.0
        %951 = vmatmul.mubr.f32.gmra.mxu0 %v803
        %v952 = vpop.f32.mrf.mxu0
        %v953 = vadd.f32 %v696, %v952
        %v954 = vpop.f32.mrf.mxu0
        %955 = vmatprep.mubr.f32.mxu0 0.0
        %956 = vmatmul.mubr.f32.gmra.mxu0 %v806
        %v957 = vpop.f32.mrf.mxu0
        %v958 = vadd.f32 %v701, %v957
        %v959 = vpop.f32.mrf.mxu0
        %960 = vmatprep.mubr.f32.mxu0 0.0
        %961 = vmatmul.mubr.f32.gmra.mxu0 %v809
        %v962 = vpop.f32.mrf.mxu0
        %v963 = vadd.f32 %v706, %v962
        %v964 = vpop.f32.mrf.mxu0
        %965 = vmatprep.mubr.f32.mxu0 0.0
        %966 = vmatmul.mubr.f32.gmra.mxu0 %v812
        %v967 = vpop.f32.mrf.mxu0
        %v968 = vadd.f32 %v711, %v967
        %v969 = vpop.f32.mrf.mxu0
        %970 = vmatprep.mubr.f32.mxu0 0.0
        %971 = vmatmul.mubr.f32.gmra.mxu0 %v815
        %v972 = vpop.f32.mrf.mxu0
        %v973 = vadd.f32 %v716, %v972
        %v974 = vpop.f32.mrf.mxu0
        %975 = vmatprep.mubr.f32.mxu0 0.0
        %976 = vmatmul.mubr.f32.gmra.mxu0 %v818
        %v977 = vpop.f32.mrf.mxu0
        %v978 = vadd.f32 %v721, %v977
        %v979 = vpop.f32.mrf.mxu0
        %980 = vmatprep.mubr.f32.mxu0 0.0
        %981 = vmatmul.mubr.f32.gmra.mxu0 %v821
        %v982 = vpop.f32.mrf.mxu0
        %v983 = vadd.f32 %v726, %v982
        %v984 = vpop.f32.mrf.mxu0
        %985 = vmatprep.mubr.f32.mxu0 0.0
        %986 = vmatmul.mubr.f32.gmra.mxu0 %v824
        %v987 = vpop.f32.mrf.mxu0
        %v988 = vadd.f32 %v731, %v987
        %v989 = vpop.f32.mrf.mxu0
        %990 = vmatprep.mubr.f32.mxu0 0.0
        %991 = vmatmul.mubr.f32.gmra.mxu0 %v827
        %v992 = vpop.f32.mrf.mxu0
        %v993 = vadd.f32 %v736, %v992
        %v994 = vpop.f32.mrf.mxu0
        %995 = vmatprep.mubr.f32.mxu0 0.0
        %996 = vmatmul.mubr.f32.gmra.mxu0 %v830
        %v997 = vpop.f32.mrf.mxu0
        %v998 = vadd.f32 %v741, %v997
        %v999 = vpop.f32.mrf.mxu0
        %1000 = vmatprep.mubr.f32.mxu0 0.0
        %1001 = vmatmul.mubr.f32.gmra.mxu0 %v833
        %v1002 = vpop.f32.mrf.mxu0
        %v1003 = vadd.f32 %v746, %v1002
        %v1004 = vpop.f32.mrf.mxu0
        %1005 = vmatprep.mubr.f32.mxu0 0.0
        %1006 = vmatmul.mubr.f32.gmra.mxu0 %v836
        %v1007 = vpop.f32.mrf.mxu0
        %v1008 = vadd.f32 %v751, %v1007
        %v1009 = vpop.f32.mrf.mxu0
        %1010 = vmatprep.mubr.f32.mxu0 0.0
        %1011 = vmatmul.mubr.f32.gmra.mxu0 %v839
        %v1012 = vpop.f32.mrf.mxu0
        %v1013 = vadd.f32 %v756, %v1012
        %v1014 = vpop.f32.mrf.mxu0
        %1015 = vmatprep.mubr.f32.mxu0 0.0
        %1016 = vmatmul.mubr.f32.gmra.mxu0 %v842
        %v1017 = vpop.f32.mrf.mxu0
        %v1018 = vadd.f32 %v761, %v1017
        %v1019 = vpop.f32.mrf.mxu0
        %1020 = vmatprep.mubr.f32.mxu0 0.0
        %1021 = vmatmul.mubr.f32.gmra.mxu0 %v845
        %v1022 = vpop.f32.mrf.mxu0
        %v1023 = vadd.f32 %v766, %v1022
        %v1024 = vpop.f32.mrf.mxu0
        %1025 = vmatprep.mubr.f32.mxu0 0.0
        %1026 = vmatmul.mubr.f32.gmra.mxu0 %v848
        %v1027 = vpop.f32.mrf.mxu0
        %v1028 = vadd.f32 %v771, %v1027
        %v1029 = vpop.f32.mrf.mxu0
        %1030 = vmatprep.mubr.f32.mxu0 0.0
        %1031 = vmatmul.mubr.f32.gmra.mxu0 %v851
        %v1032 = vpop.f32.mrf.mxu0
        %v1033 = vadd.f32 %v776, %v1032
        %v1034 = vpop.f32.mrf.mxu0
        %1035 = vmatprep.mubr.f32.mxu0 0.0
        %1036 = vmatmul.mubr.f32.gmra.mxu0 %v854
        %v1037 = vpop.f32.mrf.mxu0
        %v1038 = vadd.f32 %v781, %v1037
        %v1039 = vpop.f32.mrf.mxu0
        %1040 = vdwg.mxu0
        %v1041 = vld [vmem:[%s5] sm:$0xff]
        %v1042 = vld [vmem:[%s5 + $0x8] sm:$0xff]
        %v1043 = vld [vmem:[%s5 + $0x10] sm:$0xff]
        %v1044 = vld [vmem:[%s5 + $0x18] sm:$0xff]
        %v1045 = vld [vmem:[%s5 + $0x20] sm:$0xff]
        %v1046 = vld [vmem:[%s5 + $0x28] sm:$0xff]
        %v1047 = vld [vmem:[%s5 + $0x30] sm:$0xff]
        %v1048 = vld [vmem:[%s5 + $0x38] sm:$0xff]
        %v1049 = vld [vmem:[%s5 + $0x40] sm:$0xff]
        %v1050 = vld [vmem:[%s5 + $0x48] sm:$0xff]
        %v1051 = vld [vmem:[%s5 + $0x50] sm:$0xff]
        %v1052 = vld [vmem:[%s5 + $0x58] sm:$0xff]
        %v1053 = vld [vmem:[%s6] sm:$0x1]
        %v1055 = vlaneseq
        %v1056 = vshrl.u32 %v1055, 7
        %v1057 = vsub.s32 0, %v1056
        %v1058 = vrot.slane %v1053, %v1057
        %v1061 = vsel %vm783, %v607, 0
        %v1064 = vsel %vm783, %v608, 0
        %v1067 = vsel %vm783, %v609, 0
        %v1070 = vsel %vm783, %v610, 0
        %v1073 = vsel %vm783, %v611, 0
        %v1076 = vsel %vm783, %v612, 0
        %v1079 = vsel %vm783, %v613, 0
        %v1082 = vsel %vm783, %v614, 0
        %1084 = vmatprep.subr.mxu0 0.0
        %1085 = vmatpush1.msra.mxu0 0.0
        %1086 = vmatprep.subr.mxu0 0.0
        %1087 = vmatpush1.msra.mxu0 0.0
        %1088 = vmatprep.subr.mxu0 0.0
        %1089 = vmatpush1.msra.mxu0 0.0
        %1090 = vmatprep.subr.mxu0 0.0
        %1091 = vmatpush1.msra.mxu0 0.0
        %1092 = vmatprep.subr.mxu0 0.0
        %1093 = vmatpush1.msra.mxu0 %v1052
        %1094 = vmatprep.subr.mxu0 0.0
        %1095 = vmatpush1.msra.mxu0 %v1051
        %1096 = vmatprep.subr.mxu0 0.0
        %1097 = vmatpush1.msra.mxu0 %v1050
        %1098 = vmatprep.subr.mxu0 0.0
        %1099 = vmatpush1.msra.mxu0 %v1049
        %1100 = vmatprep.subr.mxu0 0.0
        %1101 = vmatpush1.msra.mxu0 %v1048
        %1102 = vmatprep.subr.mxu0 0.0
        %1103 = vmatpush1.msra.mxu0 %v1047
        %1104 = vmatprep.subr.mxu0 0.0
        %1105 = vmatpush1.msra.mxu0 %v1046
        %1106 = vmatprep.subr.mxu0 0.0
        %1107 = vmatpush1.msra.mxu0 %v1045
        %1108 = vmatprep.subr.mxu0 0.0
        %1109 = vmatpush1.msra.mxu0 %v1044
        %1110 = vmatprep.subr.mxu0 0.0
        %1111 = vmatpush1.msra.mxu0 %v1043
        %1112 = vmatprep.subr.mxu0 0.0
        %1113 = vmatpush1.msra.mxu0 %v1042
        %1114 = vmatprep.subr.mxu0 0.0
        %1115 = vmatpush1.msra.mxu0 %v1041
        %1116 = vmatprep.subr.mxu0 0.0
        %1117 = vmatpush2.msra.mxu0 0.0
        %1118 = vmatprep.subr.mxu0 0.0
        %1119 = vmatpush2.msra.mxu0 0.0
        %1120 = vmatprep.subr.mxu0 0.0
        %1121 = vmatpush2.msra.mxu0 0.0
        %1122 = vmatprep.subr.mxu0 0.0
        %1123 = vmatpush2.msra.mxu0 0.0
        %1124 = vmatprep.subr.mxu0 0.0
        %1125 = vmatpush2.msra.mxu0 0.0
        %1126 = vmatprep.subr.mxu0 0.0
        %1127 = vmatpush2.msra.mxu0 0.0
        %1128 = vmatprep.subr.mxu0 0.0
        %1129 = vmatpush2.msra.mxu0 0.0
        %1130 = vmatprep.subr.mxu0 0.0
        %1131 = vmatpush2.msra.mxu0 0.0
        %1132 = vmatprep.subr.mxu0 0.0
        %1133 = vmatpush2.msra.mxu0 0.0
        %1134 = vmatprep.subr.mxu0 0.0
        %1135 = vmatpush2.msra.mxu0 0.0
        %1136 = vmatprep.subr.mxu0 0.0
        %1137 = vmatpush2.msra.mxu0 0.0
        %1138 = vmatprep.subr.mxu0 0.0
        %1139 = vmatpush2.msra.mxu0 0.0
        %1140 = vmatprep.subr.mxu0 0.0
        %1141 = vmatpush2.msra.mxu0 0.0
        %1142 = vmatprep.subr.mxu0 0.0
        %1143 = vmatpush2.msra.mxu0 0.0
        %1144 = vmatprep.subr.mxu0 0.0
        %1145 = vmatpush2.msra.mxu0 0.0
        %1146 = vmatprep.subr.mxu0 0.0
        %1147 = vmatpush2.msra.mxu0 0.0
        %1148 = vmatprep.mubr.f32.mxu0 0.0
        %1149 = vmatmul.mubr.f32.gmra.mxu0 %v1061
        %v1150 = vpop.f32.mrf.mxu0
        %v1151 = vadd.f32 %v1058, %v1150
        %v1152 = vpop.f32.mrf.mxu0
        %1153 = vmatprep.mubr.f32.mxu0 0.0
        %1154 = vmatmul.mubr.f32.gmra.mxu0 %v1064
        %v1155 = vpop.f32.mrf.mxu0
        %v1156 = vadd.f32 %v1058, %v1155
        %v1157 = vpop.f32.mrf.mxu0
        %1158 = vmatprep.mubr.f32.mxu0 0.0
        %1159 = vmatmul.mubr.f32.gmra.mxu0 %v1067
        %v1160 = vpop.f32.mrf.mxu0
        %v1161 = vadd.f32 %v1058, %v1160
        %v1162 = vpop.f32.mrf.mxu0
        %1163 = vmatprep.mubr.f32.mxu0 0.0
        %1164 = vmatmul.mubr.f32.gmra.mxu0 %v1070
        %v1165 = vpop.f32.mrf.mxu0
        %v1166 = vadd.f32 %v1058, %v1165
        %v1167 = vpop.f32.mrf.mxu0
        %1168 = vmatprep.mubr.f32.mxu0 0.0
        %1169 = vmatmul.mubr.f32.gmra.mxu0 %v1073
        %v1170 = vpop.f32.mrf.mxu0
        %v1171 = vadd.f32 %v1058, %v1170
        %v1172 = vpop.f32.mrf.mxu0
        %1173 = vmatprep.mubr.f32.mxu0 0.0
        %1174 = vmatmul.mubr.f32.gmra.mxu0 %v1076
        %v1175 = vpop.f32.mrf.mxu0
        %v1176 = vadd.f32 %v1058, %v1175
        %v1177 = vpop.f32.mrf.mxu0
        %1178 = vmatprep.mubr.f32.mxu0 0.0
        %1179 = vmatmul.mubr.f32.gmra.mxu0 %v1079
        %v1180 = vpop.f32.mrf.mxu0
        %v1181 = vadd.f32 %v1058, %v1180
        %v1182 = vpop.f32.mrf.mxu0
        %1183 = vmatprep.mubr.f32.mxu0 0.0
        %1184 = vmatmul.mubr.f32.gmra.mxu0 %v1082
        %v1185 = vpop.f32.mrf.mxu0
        %v1186 = vadd.f32 %v1058, %v1185
        %v1187 = vpop.f32.mrf.mxu0
        %1188 = vdwg.mxu0
        %v1189 = vld [vmem:[%s7] sm:$0xff]
        %v1190 = vld [vmem:[%s7 + $0x8] sm:$0xff]
        %v1191 = vld [vmem:[%s7 + $0x10] sm:$0xff]
        %v1192 = vld [vmem:[%s7 + $0x18] sm:$0xff]
        %v1193 = vld [vmem:[%s7 + $0x20] sm:$0xff]
        %v1194 = vld [vmem:[%s7 + $0x28] sm:$0xff]
        %v1195 = vld [vmem:[%s7 + $0x30] sm:$0xff]
        %v1196 = vld [vmem:[%s7 + $0x38] sm:$0xff]
        %v1197 = vld [vmem:[%s7 + $0x40] sm:$0xff]
        %v1198 = vld [vmem:[%s7 + $0x48] sm:$0xff]
        %v1199 = vld [vmem:[%s7 + $0x50] sm:$0xff]
        %v1200 = vld [vmem:[%s7 + $0x58] sm:$0xff]
        %v1201 = vld [vmem:[%s7 + $0x60] sm:$0xff]
        %v1202 = vld [vmem:[%s7 + $0x68] sm:$0xff]
        %v1203 = vld [vmem:[%s7 + $0x70] sm:$0xff]
        %v1204 = vld [vmem:[%s7 + $0x78] sm:$0xff]
        %v1205 = vld [vmem:[%s7 + $0x80] sm:$0xff]
        %v1206 = vld [vmem:[%s7 + $0x88] sm:$0xff]
        %v1207 = vld [vmem:[%s7 + $0x90] sm:$0xff]
        %v1208 = vld [vmem:[%s7 + $0x98] sm:$0xff]
        %v1209 = vld [vmem:[%s7 + $0xa0] sm:$0xff]
        %v1210 = vld [vmem:[%s7 + $0xa8] sm:$0xff]
        %v1211 = vld [vmem:[%s7 + $0xb0] sm:$0xff]
        %v1212 = vld [vmem:[%s7 + $0xb8] sm:$0xff]
        %v1213 = vld [vmem:[%s8] sm:$0x3]
        %v1215 = vlaneseq
        %v1216 = vshrl.u32 %v1215, 7
        %v1217 = vsub.s32 0, %v1216
        %v1218 = vrot.slane %v1213, %v1217
        %v1219 = vlaneseq
        %v1220 = vshrl.u32 %v1219, 7
        %v1221 = vsub.s32 1, %v1220
        %v1222 = vrot.slane %v1213, %v1221
        %v1226 = vsel %vm783, %v599, 0
        %v1229 = vsel %vm783, %v600, 0
        %v1232 = vsel %vm783, %v601, 0
        %v1235 = vsel %vm783, %v602, 0
        %v1238 = vsel %vm783, %v603, 0
        %v1241 = vsel %vm783, %v604, 0
        %v1244 = vsel %vm783, %v605, 0
        %v1247 = vsel %vm783, %v606, 0
        %1249 = vmatprep.subr.mxu0 0.0
        %1250 = vmatpush1.msra.mxu0 0.0
        %1251 = vmatprep.subr.mxu0 0.0
        %1252 = vmatpush1.msra.mxu0 0.0
        %1253 = vmatprep.subr.mxu0 0.0
        %1254 = vmatpush1.msra.mxu0 0.0
        %1255 = vmatprep.subr.mxu0 0.0
        %1256 = vmatpush1.msra.mxu0 0.0
        %1257 = vmatprep.subr.mxu0 %v1212
        %1258 = vmatpush1.msra.mxu0 %v1211
        %1259 = vmatprep.subr.mxu0 %v1210
        %1260 = vmatpush1.msra.mxu0 %v1209
        %1261 = vmatprep.subr.mxu0 %v1208
        %1262 = vmatpush1.msra.mxu0 %v1207
        %1263 = vmatprep.subr.mxu0 %v1206
        %1264 = vmatpush1.msra.mxu0 %v1205
        %1265 = vmatprep.subr.mxu0 %v1204
        %1266 = vmatpush1.msra.mxu0 %v1203
        %1267 = vmatprep.subr.mxu0 %v1202
        %1268 = vmatpush1.msra.mxu0 %v1201
        %1269 = vmatprep.subr.mxu0 %v1200
        %1270 = vmatpush1.msra.mxu0 %v1199
        %1271 = vmatprep.subr.mxu0 %v1198
        %1272 = vmatpush1.msra.mxu0 %v1197
        %1273 = vmatprep.subr.mxu0 %v1196
        %1274 = vmatpush1.msra.mxu0 %v1195
        %1275 = vmatprep.subr.mxu0 %v1194
        %1276 = vmatpush1.msra.mxu0 %v1193
        %1277 = vmatprep.subr.mxu0 %v1192
        %1278 = vmatpush1.msra.mxu0 %v1191
        %1279 = vmatprep.subr.mxu0 %v1190
        %1280 = vmatpush1.msra.mxu0 %v1189
        %1281 = vmatprep.subr.mxu0 0.0
        %1282 = vmatpush2.msra.mxu0 0.0
        %1283 = vmatprep.subr.mxu0 0.0
        %1284 = vmatpush2.msra.mxu0 0.0
        %1285 = vmatprep.subr.mxu0 0.0
        %1286 = vmatpush2.msra.mxu0 0.0
        %1287 = vmatprep.subr.mxu0 0.0
        %1288 = vmatpush2.msra.mxu0 0.0
        %1289 = vmatprep.subr.mxu0 0.0
        %1290 = vmatpush2.msra.mxu0 0.0
        %1291 = vmatprep.subr.mxu0 0.0
        %1292 = vmatpush2.msra.mxu0 0.0
        %1293 = vmatprep.subr.mxu0 0.0
        %1294 = vmatpush2.msra.mxu0 0.0
        %1295 = vmatprep.subr.mxu0 0.0
        %1296 = vmatpush2.msra.mxu0 0.0
        %1297 = vmatprep.subr.mxu0 0.0
        %1298 = vmatpush2.msra.mxu0 0.0
        %1299 = vmatprep.subr.mxu0 0.0
        %1300 = vmatpush2.msra.mxu0 0.0
        %1301 = vmatprep.subr.mxu0 0.0
        %1302 = vmatpush2.msra.mxu0 0.0
        %1303 = vmatprep.subr.mxu0 0.0
        %1304 = vmatpush2.msra.mxu0 0.0
        %1305 = vmatprep.subr.mxu0 0.0
        %1306 = vmatpush2.msra.mxu0 0.0
        %1307 = vmatprep.subr.mxu0 0.0
        %1308 = vmatpush2.msra.mxu0 0.0
        %1309 = vmatprep.subr.mxu0 0.0
        %1310 = vmatpush2.msra.mxu0 0.0
        %1311 = vmatprep.subr.mxu0 0.0
        %1312 = vmatpush2.msra.mxu0 0.0
        %1313 = vmatprep.mubr.f32.mxu0 0.0
        %1314 = vmatmul.mubr.f32.gmra.mxu0 %v1226
        %v1315 = vpop.f32.mrf.mxu0
        %v1316 = vadd.f32 %v1218, %v1315
        %v1317 = vpop.f32.mrf.mxu0
        %v1318 = vadd.f32 %v1222, %v1317
        %1319 = vmatprep.mubr.f32.mxu0 0.0
        %1320 = vmatmul.mubr.f32.gmra.mxu0 %v1229
        %v1321 = vpop.f32.mrf.mxu0
        %v1322 = vadd.f32 %v1218, %v1321
        %v1323 = vpop.f32.mrf.mxu0
        %v1324 = vadd.f32 %v1222, %v1323
        %1325 = vmatprep.mubr.f32.mxu0 0.0
        %1326 = vmatmul.mubr.f32.gmra.mxu0 %v1232
        %v1327 = vpop.f32.mrf.mxu0
        %v1328 = vadd.f32 %v1218, %v1327
        %v1329 = vpop.f32.mrf.mxu0
        %v1330 = vadd.f32 %v1222, %v1329
        %1331 = vmatprep.mubr.f32.mxu0 0.0
        %1332 = vmatmul.mubr.f32.gmra.mxu0 %v1235
        %v1333 = vpop.f32.mrf.mxu0
        %v1334 = vadd.f32 %v1218, %v1333
        %v1335 = vpop.f32.mrf.mxu0
        %v1336 = vadd.f32 %v1222, %v1335
        %1337 = vmatprep.mubr.f32.mxu0 0.0
        %1338 = vmatmul.mubr.f32.gmra.mxu0 %v1238
        %v1339 = vpop.f32.mrf.mxu0
        %v1340 = vadd.f32 %v1218, %v1339
        %v1341 = vpop.f32.mrf.mxu0
        %v1342 = vadd.f32 %v1222, %v1341
        %1343 = vmatprep.mubr.f32.mxu0 0.0
        %1344 = vmatmul.mubr.f32.gmra.mxu0 %v1241
        %v1345 = vpop.f32.mrf.mxu0
        %v1346 = vadd.f32 %v1218, %v1345
        %v1347 = vpop.f32.mrf.mxu0
        %v1348 = vadd.f32 %v1222, %v1347
        %1349 = vmatprep.mubr.f32.mxu0 0.0
        %1350 = vmatmul.mubr.f32.gmra.mxu0 %v1244
        %v1351 = vpop.f32.mrf.mxu0
        %v1352 = vadd.f32 %v1218, %v1351
        %v1353 = vpop.f32.mrf.mxu0
        %v1354 = vadd.f32 %v1222, %v1353
        %1355 = vmatprep.mubr.f32.mxu0 0.0
        %1356 = vmatmul.mubr.f32.gmra.mxu0 %v1247
        %v1357 = vpop.f32.mrf.mxu0
        %v1358 = vadd.f32 %v1218, %v1357
        %v1359 = vpop.f32.mrf.mxu0
        %v1360 = vadd.f32 %v1222, %v1359
        %1361 = vdwg.mxu0
        %vm1362 = vcmask 523264
        %v1364 = vsel %vm1362, %v923, 0
        %v1367 = vsel %vm1362, %v928, 0
        %v1370 = vsel %vm1362, %v933, 0
        %v1373 = vsel %vm1362, %v938, 0
        %v1376 = vsel %vm1362, %v943, 0
        %v1379 = vsel %vm1362, %v948, 0
        %v1382 = vsel %vm1362, %v953, 0
        %v1385 = vsel %vm1362, %v958, 0
        %v1388 = vsel %vm1362, %v963, 0
        %v1391 = vsel %vm1362, %v968, 0
        %v1394 = vsel %vm1362, %v973, 0
        %v1397 = vsel %vm1362, %v978, 0
        %v1400 = vsel %vm1362, %v983, 0
        %v1403 = vsel %vm1362, %v988, 0
        %v1406 = vsel %vm1362, %v993, 0
        %v1409 = vsel %vm1362, %v998, 0
        %v1412 = vsel %vm1362, %v1003, 0
        %v1415 = vsel %vm1362, %v1008, 0
        %v1418 = vsel %vm1362, %v1013, 0
        %v1421 = vsel %vm1362, %v1018, 0
        %v1424 = vsel %vm1362, %v1023, 0
        %v1427 = vsel %vm1362, %v1028, 0
        %v1430 = vsel %vm1362, %v1033, 0
        %v1433 = vsel %vm1362, %v1038, 0
        %1435 = vmatprep.subr.mxu0 0.0
        %1436 = vmatpush1.msra.mxu0 0.0
        %1437 = vmatprep.subr.mxu0 0.0
        %1438 = vmatpush1.msra.mxu0 0.0
        %1439 = vmatprep.subr.mxu0 0.0
        %1440 = vmatpush1.msra.mxu0 0.0
        %1441 = vmatprep.subr.mxu0 0.0
        %1442 = vmatpush1.msra.mxu0 0.0
        %1443 = vmatprep.subr.mxu0 0.0
        %1444 = vmatpush1.msra.mxu0 0.0
        %1445 = vmatprep.subr.mxu0 0.0
        %1446 = vmatpush1.msra.mxu0 0.0
        %1447 = vmatprep.subr.mxu0 0.0
        %1448 = vmatpush1.msra.mxu0 0.0
        %1449 = vmatprep.subr.mxu0 0.0
        %1450 = vmatpush1.msra.mxu0 0.0
        %1451 = vmatprep.subr.mxu0 0.0
        %1452 = vmatpush1.msra.mxu0 %v1186
        %1453 = vmatprep.subr.mxu0 0.0
        %1454 = vmatpush1.msra.mxu0 %v1181
        %1455 = vmatprep.subr.mxu0 0.0
        %1456 = vmatpush1.msra.mxu0 %v1176
        %1457 = vmatprep.subr.mxu0 0.0
        %1458 = vmatpush1.msra.mxu0 %v1171
        %1459 = vmatprep.subr.mxu0 0.0
        %1460 = vmatpush1.msra.mxu0 %v1166
        %1461 = vmatprep.subr.mxu0 0.0
        %1462 = vmatpush1.msra.mxu0 %v1161
        %1463 = vmatprep.subr.mxu0 0.0
        %1464 = vmatpush1.msra.mxu0 %v1156
        %1465 = vmatprep.subr.mxu0 0.0
        %1466 = vmatpush1.msra.mxu0 %v1151
        %1467 = vmatprep.subr.mxu0 0.0
        %1468 = vmatpush2.msra.mxu0 0.0
        %1469 = vmatprep.subr.mxu0 0.0
        %1470 = vmatpush2.msra.mxu0 0.0
        %1471 = vmatprep.subr.mxu0 0.0
        %1472 = vmatpush2.msra.mxu0 0.0
        %1473 = vmatprep.subr.mxu0 0.0
        %1474 = vmatpush2.msra.mxu0 0.0
        %1475 = vmatprep.subr.mxu0 0.0
        %1476 = vmatpush2.msra.mxu0 0.0
        %1477 = vmatprep.subr.mxu0 0.0
        %1478 = vmatpush2.msra.mxu0 0.0
        %1479 = vmatprep.subr.mxu0 0.0
        %1480 = vmatpush2.msra.mxu0 0.0
        %1481 = vmatprep.subr.mxu0 0.0
        %1482 = vmatpush2.msra.mxu0 0.0
        %1483 = vmatprep.subr.mxu0 0.0
        %1484 = vmatpush2.msra.mxu0 0.0
        %1485 = vmatprep.subr.mxu0 0.0
        %1486 = vmatpush2.msra.mxu0 0.0
        %1487 = vmatprep.subr.mxu0 0.0
        %1488 = vmatpush2.msra.mxu0 0.0
        %1489 = vmatprep.subr.mxu0 0.0
        %1490 = vmatpush2.msra.mxu0 0.0
        %1491 = vmatprep.subr.mxu0 0.0
        %1492 = vmatpush2.msra.mxu0 0.0
        %1493 = vmatprep.subr.mxu0 0.0
        %1494 = vmatpush2.msra.mxu0 0.0
        %1495 = vmatprep.subr.mxu0 0.0
        %1496 = vmatpush2.msra.mxu0 0.0
        %1497 = vmatprep.subr.mxu0 0.0
        %1498 = vmatpush2.msra.mxu0 0.0
        %1499 = vmatprep.mubr.f32.mxu0 0.0
        %1500 = vmatmul.mubr.f32.gmra.mxu0 %v1364
        %v1501 = vpop.f32.mrf.mxu0
        %v1502 = vadd.f32 0.0, %v1501
        %v1503 = vpop.f32.mrf.mxu0
        %1504 = vmatprep.mubr.f32.mxu0 0.0
        %1505 = vmatmul.mubr.f32.gmra.mxu0 %v1367
        %v1506 = vpop.f32.mrf.mxu0
        %v1507 = vadd.f32 0.0, %v1506
        %v1508 = vpop.f32.mrf.mxu0
        %1509 = vmatprep.mubr.f32.mxu0 0.0
        %1510 = vmatmul.mubr.f32.gmra.mxu0 %v1370
        %v1511 = vpop.f32.mrf.mxu0
        %v1512 = vadd.f32 0.0, %v1511
        %v1513 = vpop.f32.mrf.mxu0
        %1514 = vmatprep.mubr.f32.mxu0 0.0
        %1515 = vmatmul.mubr.f32.gmra.mxu0 %v1373
        %v1516 = vpop.f32.mrf.mxu0
        %v1517 = vadd.f32 0.0, %v1516
        %v1518 = vpop.f32.mrf.mxu0
        %1519 = vmatprep.mubr.f32.mxu0 0.0
        %1520 = vmatmul.mubr.f32.gmra.mxu0 %v1376
        %v1521 = vpop.f32.mrf.mxu0
        %v1522 = vadd.f32 0.0, %v1521
        %v1523 = vpop.f32.mrf.mxu0
        %1524 = vmatprep.mubr.f32.mxu0 0.0
        %1525 = vmatmul.mubr.f32.gmra.mxu0 %v1379
        %v1526 = vpop.f32.mrf.mxu0
        %v1527 = vadd.f32 0.0, %v1526
        %v1528 = vpop.f32.mrf.mxu0
        %1529 = vmatprep.mubr.f32.mxu0 0.0
        %1530 = vmatmul.mubr.f32.gmra.mxu0 %v1382
        %v1531 = vpop.f32.mrf.mxu0
        %v1532 = vadd.f32 0.0, %v1531
        %v1533 = vpop.f32.mrf.mxu0
        %1534 = vmatprep.mubr.f32.mxu0 0.0
        %1535 = vmatmul.mubr.f32.gmra.mxu0 %v1385
        %v1536 = vpop.f32.mrf.mxu0
        %v1537 = vadd.f32 0.0, %v1536
        %v1538 = vpop.f32.mrf.mxu0
        %1539 = vmatprep.mubr.f32.mxu0 0.0
        %1540 = vmatmul.mubr.f32.gmra.mxu0 %v1388
        %v1541 = vpop.f32.mrf.mxu0
        %v1542 = vadd.f32 0.0, %v1541
        %v1543 = vpop.f32.mrf.mxu0
        %1544 = vmatprep.mubr.f32.mxu0 0.0
        %1545 = vmatmul.mubr.f32.gmra.mxu0 %v1391
        %v1546 = vpop.f32.mrf.mxu0
        %v1547 = vadd.f32 0.0, %v1546
        %v1548 = vpop.f32.mrf.mxu0
        %1549 = vmatprep.mubr.f32.mxu0 0.0
        %1550 = vmatmul.mubr.f32.gmra.mxu0 %v1394
        %v1551 = vpop.f32.mrf.mxu0
        %v1552 = vadd.f32 0.0, %v1551
        %v1553 = vpop.f32.mrf.mxu0
        %1554 = vmatprep.mubr.f32.mxu0 0.0
        %1555 = vmatmul.mubr.f32.gmra.mxu0 %v1397
        %v1556 = vpop.f32.mrf.mxu0
        %v1557 = vadd.f32 0.0, %v1556
        %v1558 = vpop.f32.mrf.mxu0
        %1559 = vmatprep.mubr.f32.mxu0 0.0
        %1560 = vmatmul.mubr.f32.gmra.mxu0 %v1400
        %v1561 = vpop.f32.mrf.mxu0
        %v1562 = vadd.f32 0.0, %v1561
        %v1563 = vpop.f32.mrf.mxu0
        %1564 = vmatprep.mubr.f32.mxu0 0.0
        %1565 = vmatmul.mubr.f32.gmra.mxu0 %v1403
        %v1566 = vpop.f32.mrf.mxu0
        %v1567 = vadd.f32 0.0, %v1566
        %v1568 = vpop.f32.mrf.mxu0
        %1569 = vmatprep.mubr.f32.mxu0 0.0
        %1570 = vmatmul.mubr.f32.gmra.mxu0 %v1406
        %v1571 = vpop.f32.mrf.mxu0
        %v1572 = vadd.f32 0.0, %v1571
        %v1573 = vpop.f32.mrf.mxu0
        %1574 = vmatprep.mubr.f32.mxu0 0.0
        %1575 = vmatmul.mubr.f32.gmra.mxu0 %v1409
        %v1576 = vpop.f32.mrf.mxu0
        %v1577 = vadd.f32 0.0, %v1576
        %v1578 = vpop.f32.mrf.mxu0
        %1579 = vmatprep.mubr.f32.mxu0 0.0
        %1580 = vmatmul.mubr.f32.gmra.mxu0 %v1412
        %v1581 = vpop.f32.mrf.mxu0
        %v1582 = vadd.f32 0.0, %v1581
        %v1583 = vpop.f32.mrf.mxu0
        %1584 = vmatprep.mubr.f32.mxu0 0.0
        %1585 = vmatmul.mubr.f32.gmra.mxu0 %v1415
        %v1586 = vpop.f32.mrf.mxu0
        %v1587 = vadd.f32 0.0, %v1586
        %v1588 = vpop.f32.mrf.mxu0
        %1589 = vmatprep.mubr.f32.mxu0 0.0
        %1590 = vmatmul.mubr.f32.gmra.mxu0 %v1418
        %v1591 = vpop.f32.mrf.mxu0
        %v1592 = vadd.f32 0.0, %v1591
        %v1593 = vpop.f32.mrf.mxu0
        %1594 = vmatprep.mubr.f32.mxu0 0.0
        %1595 = vmatmul.mubr.f32.gmra.mxu0 %v1421
        %v1596 = vpop.f32.mrf.mxu0
        %v1597 = vadd.f32 0.0, %v1596
        %v1598 = vpop.f32.mrf.mxu0
        %1599 = vmatprep.mubr.f32.mxu0 0.0
        %1600 = vmatmul.mubr.f32.gmra.mxu0 %v1424
        %v1601 = vpop.f32.mrf.mxu0
        %v1602 = vadd.f32 0.0, %v1601
        %v1603 = vpop.f32.mrf.mxu0
        %1604 = vmatprep.mubr.f32.mxu0 0.0
        %1605 = vmatmul.mubr.f32.gmra.mxu0 %v1427
        %v1606 = vpop.f32.mrf.mxu0
        %v1607 = vadd.f32 0.0, %v1606
        %v1608 = vpop.f32.mrf.mxu0
        %1609 = vmatprep.mubr.f32.mxu0 0.0
        %1610 = vmatmul.mubr.f32.gmra.mxu0 %v1430
        %v1611 = vpop.f32.mrf.mxu0
        %v1612 = vadd.f32 0.0, %v1611
        %v1613 = vpop.f32.mrf.mxu0
        %1614 = vmatprep.mubr.f32.mxu0 0.0
        %1615 = vmatmul.mubr.f32.gmra.mxu0 %v1433
        %v1616 = vpop.f32.mrf.mxu0
        %v1617 = vadd.f32 0.0, %v1616
        %v1618 = vpop.f32.mrf.mxu0
        %1619 = vdwg.mxu0
        %v1620 = vmul.f32 %v1502, 0.015625
        %v1621 = vmul.f32 %v1507, 0.015625
        %v1622 = vmul.f32 %v1512, 0.015625
        %v1623 = vmul.f32 %v1517, 0.015625
        %v1624 = vmul.f32 %v1522, 0.015625
        %v1625 = vmul.f32 %v1527, 0.015625
        %v1626 = vmul.f32 %v1532, 0.015625
        %v1627 = vmul.f32 %v1537, 0.015625
        %v1628 = vmul.f32 %v1542, 0.015625
        %v1629 = vmul.f32 %v1547, 0.015625
        %v1630 = vmul.f32 %v1552, 0.015625
        %v1631 = vmul.f32 %v1557, 0.015625
        %v1632 = vmul.f32 %v1562, 0.015625
        %v1633 = vmul.f32 %v1567, 0.015625
        %v1634 = vmul.f32 %v1572, 0.015625
        %v1635 = vmul.f32 %v1577, 0.015625
        %v1636 = vmul.f32 %v1582, 0.015625
        %v1637 = vmul.f32 %v1587, 0.015625
        %v1638 = vmul.f32 %v1592, 0.015625
        %v1639 = vmul.f32 %v1597, 0.015625
        %v1640 = vmul.f32 %v1602, 0.015625
        %v1641 = vmul.f32 %v1607, 0.015625
        %v1642 = vmul.f32 %v1612, 0.015625
        %v1643 = vmul.f32 %v1617, 0.015625
        %v1644 = vld [vmem:[%s9] sm:$0xff]
        %v1645 = vld [vmem:[%s9 + $0x8] sm:$0xff]
        %v1646 = vld [vmem:[%s9 + $0x10] sm:$0xff]
        %v1647 = vld [vmem:[%s9 + $0x18] sm:$0xff]
        %v1648 = vld [vmem:[%s9 + $0x20] sm:$0xff]
        %v1649 = vld [vmem:[%s9 + $0x28] sm:$0xff]
        %v1650 = vld [vmem:[%s9 + $0x30] sm:$0xff]
        %v1651 = vld [vmem:[%s9 + $0x38] sm:$0xff]
        %v1652 = vld [vmem:[%s9 + $0x40] sm:$0xff]
        %v1653 = vld [vmem:[%s9 + $0x48] sm:$0xff]
        %v1654 = vld [vmem:[%s9 + $0x50] sm:$0xff]
        %v1655 = vld [vmem:[%s9 + $0x58] sm:$0xff]
        %v1656 = vld [vmem:[%s10] sm:$0x1]
        %v1658 = vlaneseq
        %v1659 = vshrl.u32 %v1658, 7
        %v1660 = vsub.s32 0, %v1659
        %v1661 = vrot.slane %v1656, %v1660
        %v1664 = vsel %vm783, %v1620, 0
        %v1667 = vsel %vm783, %v1621, 0
        %v1670 = vsel %vm783, %v1622, 0
        %v1673 = vsel %vm783, %v1623, 0
        %v1676 = vsel %vm783, %v1624, 0
        %v1679 = vsel %vm783, %v1625, 0
        %v1682 = vsel %vm783, %v1626, 0
        %v1685 = vsel %vm783, %v1627, 0
        %v1688 = vsel %vm783, %v1628, 0
        %v1691 = vsel %vm783, %v1629, 0
        %v1694 = vsel %vm783, %v1630, 0
        %v1697 = vsel %vm783, %v1631, 0
        %v1700 = vsel %vm783, %v1632, 0
        %v1703 = vsel %vm783, %v1633, 0
        %v1706 = vsel %vm783, %v1634, 0
        %v1709 = vsel %vm783, %v1635, 0
        %v1712 = vsel %vm783, %v1636, 0
        %v1715 = vsel %vm783, %v1637, 0
        %v1718 = vsel %vm783, %v1638, 0
        %v1721 = vsel %vm783, %v1639, 0
        %v1724 = vsel %vm783, %v1640, 0
        %v1727 = vsel %vm783, %v1641, 0
        %v1730 = vsel %vm783, %v1642, 0
        %v1733 = vsel %vm783, %v1643, 0
        %1735 = vmatprep.subr.mxu0 0.0
        %1736 = vmatpush1.msra.mxu0 0.0
        %1737 = vmatprep.subr.mxu0 0.0
        %1738 = vmatpush1.msra.mxu0 0.0
        %1739 = vmatprep.subr.mxu0 0.0
        %1740 = vmatpush1.msra.mxu0 0.0
        %1741 = vmatprep.subr.mxu0 0.0
        %1742 = vmatpush1.msra.mxu0 0.0
        %1743 = vmatprep.subr.mxu0 0.0
        %1744 = vmatpush1.msra.mxu0 %v1655
        %1745 = vmatprep.subr.mxu0 0.0
        %1746 = vmatpush1.msra.mxu0 %v1654
        %1747 = vmatprep.subr.mxu0 0.0
        %1748 = vmatpush1.msra.mxu0 %v1653
        %1749 = vmatprep.subr.mxu0 0.0
        %1750 = vmatpush1.msra.mxu0 %v1652
        %1751 = vmatprep.subr.mxu0 0.0
        %1752 = vmatpush1.msra.mxu0 %v1651
        %1753 = vmatprep.subr.mxu0 0.0
        %1754 = vmatpush1.msra.mxu0 %v1650
        %1755 = vmatprep.subr.mxu0 0.0
        %1756 = vmatpush1.msra.mxu0 %v1649
        %1757 = vmatprep.subr.mxu0 0.0
        %1758 = vmatpush1.msra.mxu0 %v1648
        %1759 = vmatprep.subr.mxu0 0.0
        %1760 = vmatpush1.msra.mxu0 %v1647
        %1761 = vmatprep.subr.mxu0 0.0
        %1762 = vmatpush1.msra.mxu0 %v1646
        %1763 = vmatprep.subr.mxu0 0.0
        %1764 = vmatpush1.msra.mxu0 %v1645
        %1765 = vmatprep.subr.mxu0 0.0
        %1766 = vmatpush1.msra.mxu0 %v1644
        %1767 = vmatprep.subr.mxu0 0.0
        %1768 = vmatpush2.msra.mxu0 0.0
        %1769 = vmatprep.subr.mxu0 0.0
        %1770 = vmatpush2.msra.mxu0 0.0
        %1771 = vmatprep.subr.mxu0 0.0
        %1772 = vmatpush2.msra.mxu0 0.0
        %1773 = vmatprep.subr.mxu0 0.0
        %1774 = vmatpush2.msra.mxu0 0.0
        %1775 = vmatprep.subr.mxu0 0.0
        %1776 = vmatpush2.msra.mxu0 0.0
        %1777 = vmatprep.subr.mxu0 0.0
        %1778 = vmatpush2.msra.mxu0 0.0
        %1779 = vmatprep.subr.mxu0 0.0
        %1780 = vmatpush2.msra.mxu0 0.0
        %1781 = vmatprep.subr.mxu0 0.0
        %1782 = vmatpush2.msra.mxu0 0.0
        %1783 = vmatprep.subr.mxu0 0.0
        %1784 = vmatpush2.msra.mxu0 0.0
        %1785 = vmatprep.subr.mxu0 0.0
        %1786 = vmatpush2.msra.mxu0 0.0
        %1787 = vmatprep.subr.mxu0 0.0
        %1788 = vmatpush2.msra.mxu0 0.0
        %1789 = vmatprep.subr.mxu0 0.0
        %1790 = vmatpush2.msra.mxu0 0.0
        %1791 = vmatprep.subr.mxu0 0.0
        %1792 = vmatpush2.msra.mxu0 0.0
        %1793 = vmatprep.subr.mxu0 0.0
        %1794 = vmatpush2.msra.mxu0 0.0
        %1795 = vmatprep.subr.mxu0 0.0
        %1796 = vmatpush2.msra.mxu0 0.0
        %1797 = vmatprep.subr.mxu0 0.0
        %1798 = vmatpush2.msra.mxu0 0.0
        %1799 = vmatprep.mubr.f32.mxu0 0.0
        %1800 = vmatmul.mubr.f32.gmra.mxu0 %v1664
        %v1801 = vpop.f32.mrf.mxu0
        %v1802 = vadd.f32 %v1661, %v1801
        %v1803 = vpop.f32.mrf.mxu0
        %1804 = vmatprep.mubr.f32.mxu0 0.0
        %1805 = vmatmul.mubr.f32.gmra.mxu0 %v1667
        %v1806 = vpop.f32.mrf.mxu0
        %v1807 = vadd.f32 %v1661, %v1806
        %v1808 = vpop.f32.mrf.mxu0
        %1809 = vmatprep.mubr.f32.mxu0 0.0
        %1810 = vmatmul.mubr.f32.gmra.mxu0 %v1670
        %v1811 = vpop.f32.mrf.mxu0
        %v1812 = vadd.f32 %v1661, %v1811
        %v1813 = vpop.f32.mrf.mxu0
        %1814 = vmatprep.mubr.f32.mxu0 0.0
        %1815 = vmatmul.mubr.f32.gmra.mxu0 %v1673
        %v1816 = vpop.f32.mrf.mxu0
        %v1817 = vadd.f32 %v1661, %v1816
        %v1818 = vpop.f32.mrf.mxu0
        %1819 = vmatprep.mubr.f32.mxu0 0.0
        %1820 = vmatmul.mubr.f32.gmra.mxu0 %v1676
        %v1821 = vpop.f32.mrf.mxu0
        %v1822 = vadd.f32 %v1661, %v1821
        %v1823 = vpop.f32.mrf.mxu0
        %1824 = vmatprep.mubr.f32.mxu0 0.0
        %1825 = vmatmul.mubr.f32.gmra.mxu0 %v1679
        %v1826 = vpop.f32.mrf.mxu0
        %v1827 = vadd.f32 %v1661, %v1826
        %v1828 = vpop.f32.mrf.mxu0
        %1829 = vmatprep.mubr.f32.mxu0 0.0
        %1830 = vmatmul.mubr.f32.gmra.mxu0 %v1682
        %v1831 = vpop.f32.mrf.mxu0
        %v1832 = vadd.f32 %v1661, %v1831
        %v1833 = vpop.f32.mrf.mxu0
        %1834 = vmatprep.mubr.f32.mxu0 0.0
        %1835 = vmatmul.mubr.f32.gmra.mxu0 %v1685
        %v1836 = vpop.f32.mrf.mxu0
        %v1837 = vadd.f32 %v1661, %v1836
        %v1838 = vpop.f32.mrf.mxu0
        %1839 = vmatprep.mubr.f32.mxu0 0.0
        %1840 = vmatmul.mubr.f32.gmra.mxu0 %v1688
        %v1841 = vpop.f32.mrf.mxu0
        %v1842 = vadd.f32 %v1661, %v1841
        %v1843 = vpop.f32.mrf.mxu0
        %1844 = vmatprep.mubr.f32.mxu0 0.0
        %1845 = vmatmul.mubr.f32.gmra.mxu0 %v1691
        %v1846 = vpop.f32.mrf.mxu0
        %v1847 = vadd.f32 %v1661, %v1846
        %v1848 = vpop.f32.mrf.mxu0
        %1849 = vmatprep.mubr.f32.mxu0 0.0
        %1850 = vmatmul.mubr.f32.gmra.mxu0 %v1694
        %v1851 = vpop.f32.mrf.mxu0
        %v1852 = vadd.f32 %v1661, %v1851
        %v1853 = vpop.f32.mrf.mxu0
        %1854 = vmatprep.mubr.f32.mxu0 0.0
        %1855 = vmatmul.mubr.f32.gmra.mxu0 %v1697
        %v1856 = vpop.f32.mrf.mxu0
        %v1857 = vadd.f32 %v1661, %v1856
        %v1858 = vpop.f32.mrf.mxu0
        %1859 = vmatprep.mubr.f32.mxu0 0.0
        %1860 = vmatmul.mubr.f32.gmra.mxu0 %v1700
        %v1861 = vpop.f32.mrf.mxu0
        %v1862 = vadd.f32 %v1661, %v1861
        %v1863 = vpop.f32.mrf.mxu0
        %1864 = vmatprep.mubr.f32.mxu0 0.0
        %1865 = vmatmul.mubr.f32.gmra.mxu0 %v1703
        %v1866 = vpop.f32.mrf.mxu0
        %v1867 = vadd.f32 %v1661, %v1866
        %v1868 = vpop.f32.mrf.mxu0
        %1869 = vmatprep.mubr.f32.mxu0 0.0
        %1870 = vmatmul.mubr.f32.gmra.mxu0 %v1706
        %v1871 = vpop.f32.mrf.mxu0
        %v1872 = vadd.f32 %v1661, %v1871
        %v1873 = vpop.f32.mrf.mxu0
        %1874 = vmatprep.mubr.f32.mxu0 0.0
        %1875 = vmatmul.mubr.f32.gmra.mxu0 %v1709
        %v1876 = vpop.f32.mrf.mxu0
        %v1877 = vadd.f32 %v1661, %v1876
        %v1878 = vpop.f32.mrf.mxu0
        %1879 = vmatprep.mubr.f32.mxu0 0.0
        %1880 = vmatmul.mubr.f32.gmra.mxu0 %v1712
        %v1881 = vpop.f32.mrf.mxu0
        %v1882 = vadd.f32 %v1661, %v1881
        %v1883 = vpop.f32.mrf.mxu0
        %1884 = vmatprep.mubr.f32.mxu0 0.0
        %1885 = vmatmul.mubr.f32.gmra.mxu0 %v1715
        %v1886 = vpop.f32.mrf.mxu0
        %v1887 = vadd.f32 %v1661, %v1886
        %v1888 = vpop.f32.mrf.mxu0
        %1889 = vmatprep.mubr.f32.mxu0 0.0
        %1890 = vmatmul.mubr.f32.gmra.mxu0 %v1718
        %v1891 = vpop.f32.mrf.mxu0
        %v1892 = vadd.f32 %v1661, %v1891
        %v1893 = vpop.f32.mrf.mxu0
        %1894 = vmatprep.mubr.f32.mxu0 0.0
        %1895 = vmatmul.mubr.f32.gmra.mxu0 %v1721
        %v1896 = vpop.f32.mrf.mxu0
        %v1897 = vadd.f32 %v1661, %v1896
        %v1898 = vpop.f32.mrf.mxu0
        %1899 = vmatprep.mubr.f32.mxu0 0.0
        %1900 = vmatmul.mubr.f32.gmra.mxu0 %v1724
        %v1901 = vpop.f32.mrf.mxu0
        %v1902 = vadd.f32 %v1661, %v1901
        %v1903 = vpop.f32.mrf.mxu0
        %1904 = vmatprep.mubr.f32.mxu0 0.0
        %1905 = vmatmul.mubr.f32.gmra.mxu0 %v1727
        %v1906 = vpop.f32.mrf.mxu0
        %v1907 = vadd.f32 %v1661, %v1906
        %v1908 = vpop.f32.mrf.mxu0
        %1909 = vmatprep.mubr.f32.mxu0 0.0
        %1910 = vmatmul.mubr.f32.gmra.mxu0 %v1730
        %v1911 = vpop.f32.mrf.mxu0
        %v1912 = vadd.f32 %v1661, %v1911
        %v1913 = vpop.f32.mrf.mxu0
        %1914 = vmatprep.mubr.f32.mxu0 0.0
        %1915 = vmatmul.mubr.f32.gmra.mxu0 %v1733
        %v1916 = vpop.f32.mrf.mxu0
        %v1917 = vadd.f32 %v1661, %v1916
        %v1918 = vpop.f32.mrf.mxu0
        %1919 = vdwg.mxu0
        %v1920 = vadd.f32 %v1802, %v1620
        %v1921 = vadd.f32 %v1807, %v1621
        %v1922 = vadd.f32 %v1812, %v1622
        %v1923 = vadd.f32 %v1817, %v1623
        %v1924 = vadd.f32 %v1822, %v1624
        %v1925 = vadd.f32 %v1827, %v1625
        %v1926 = vadd.f32 %v1832, %v1626
        %v1927 = vadd.f32 %v1837, %v1627
        %v1928 = vadd.f32 %v1842, %v1628
        %v1929 = vadd.f32 %v1847, %v1629
        %v1930 = vadd.f32 %v1852, %v1630
        %v1931 = vadd.f32 %v1857, %v1631
        %v1932 = vadd.f32 %v1862, %v1632
        %v1933 = vadd.f32 %v1867, %v1633
        %v1934 = vadd.f32 %v1872, %v1634
        %v1935 = vadd.f32 %v1877, %v1635
        %v1936 = vadd.f32 %v1882, %v1636
        %v1937 = vadd.f32 %v1887, %v1637
        %v1938 = vadd.f32 %v1892, %v1638
        %v1939 = vadd.f32 %v1897, %v1639
        %v1940 = vadd.f32 %v1902, %v1640
        %v1941 = vadd.f32 %v1907, %v1641
        %v1942 = vadd.f32 %v1912, %v1642
        %v1943 = vadd.f32 %v1917, %v1643
        %vm1944 = vcmp.ge.f32.partialorder %v1920, 0.0
        %vm1945 = vcmp.ge.f32.partialorder %v1921, 0.0
        %vm1946 = vcmp.ge.f32.partialorder %v1922, 0.0
        %vm1947 = vcmp.ge.f32.partialorder %v1923, 0.0
        %vm1948 = vcmp.ge.f32.partialorder %v1924, 0.0
        %vm1949 = vcmp.ge.f32.partialorder %v1925, 0.0
        %vm1950 = vcmp.ge.f32.partialorder %v1926, 0.0
        %vm1951 = vcmp.ge.f32.partialorder %v1927, 0.0
        %vm1952 = vcmp.ge.f32.partialorder %v1928, 0.0
        %vm1953 = vcmp.ge.f32.partialorder %v1929, 0.0
        %vm1954 = vcmp.ge.f32.partialorder %v1930, 0.0
        %vm1955 = vcmp.ge.f32.partialorder %v1931, 0.0
        %vm1956 = vcmp.ge.f32.partialorder %v1932, 0.0
        %vm1957 = vcmp.ge.f32.partialorder %v1933, 0.0
        %vm1958 = vcmp.ge.f32.partialorder %v1934, 0.0
        %vm1959 = vcmp.ge.f32.partialorder %v1935, 0.0
        %vm1960 = vcmp.ge.f32.partialorder %v1936, 0.0
        %vm1961 = vcmp.ge.f32.partialorder %v1937, 0.0
        %vm1962 = vcmp.ge.f32.partialorder %v1938, 0.0
        %vm1963 = vcmp.ge.f32.partialorder %v1939, 0.0
        %vm1964 = vcmp.ge.f32.partialorder %v1940, 0.0
        %vm1965 = vcmp.ge.f32.partialorder %v1941, 0.0
        %vm1966 = vcmp.ge.f32.partialorder %v1942, 0.0
        %vm1967 = vcmp.ge.f32.partialorder %v1943, 0.0
        %v1968 = vmul.f32 %v1920, 0.2
        %v1969 = vmul.f32 %v1921, 0.2
        %v1970 = vmul.f32 %v1922, 0.2
        %v1971 = vmul.f32 %v1923, 0.2
        %v1972 = vmul.f32 %v1924, 0.2
        %v1973 = vmul.f32 %v1925, 0.2
        %v1974 = vmul.f32 %v1926, 0.2
        %v1975 = vmul.f32 %v1927, 0.2
        %v1976 = vmul.f32 %v1928, 0.2
        %v1977 = vmul.f32 %v1929, 0.2
        %v1978 = vmul.f32 %v1930, 0.2
        %v1979 = vmul.f32 %v1931, 0.2
        %v1980 = vmul.f32 %v1932, 0.2
        %v1981 = vmul.f32 %v1933, 0.2
        %v1982 = vmul.f32 %v1934, 0.2
        %v1983 = vmul.f32 %v1935, 0.2
        %v1984 = vmul.f32 %v1936, 0.2
        %v1985 = vmul.f32 %v1937, 0.2
        %v1986 = vmul.f32 %v1938, 0.2
        %v1987 = vmul.f32 %v1939, 0.2
        %v1988 = vmul.f32 %v1940, 0.2
        %v1989 = vmul.f32 %v1941, 0.2
        %v1990 = vmul.f32 %v1942, 0.2
        %v1991 = vmul.f32 %v1943, 0.2
        %v1992 = vsel %vm1944, %v1920, %v1968
        %v1993 = vsel %vm1945, %v1921, %v1969
        %v1994 = vsel %vm1946, %v1922, %v1970
        %v1995 = vsel %vm1947, %v1923, %v1971
        %v1996 = vsel %vm1948, %v1924, %v1972
        %v1997 = vsel %vm1949, %v1925, %v1973
        %v1998 = vsel %vm1950, %v1926, %v1974
        %v1999 = vsel %vm1951, %v1927, %v1975
        %v2000 = vsel %vm1952, %v1928, %v1976
        %v2001 = vsel %vm1953, %v1929, %v1977
        %v2002 = vsel %vm1954, %v1930, %v1978
        %v2003 = vsel %vm1955, %v1931, %v1979
        %v2004 = vsel %vm1956, %v1932, %v1980
        %v2005 = vsel %vm1957, %v1933, %v1981
        %v2006 = vsel %vm1958, %v1934, %v1982
        %v2007 = vsel %vm1959, %v1935, %v1983
        %v2008 = vsel %vm1960, %v1936, %v1984
        %v2009 = vsel %vm1961, %v1937, %v1985
        %v2010 = vsel %vm1962, %v1938, %v1986
        %v2011 = vsel %vm1963, %v1939, %v1987
        %v2012 = vsel %vm1964, %v1940, %v1988
        %v2013 = vsel %vm1965, %v1941, %v1989
        %v2014 = vsel %vm1966, %v1942, %v1990
        %v2015 = vsel %vm1967, %v1943, %v1991
        %v2016 = vld [vmem:[%s11] sm:$0xff]
        %v2017 = vld [vmem:[%s11 + $0x8] sm:$0xff]
        %v2018 = vld [vmem:[%s11 + $0x10] sm:$0xff]
        %v2019 = vld [vmem:[%s11 + $0x18] sm:$0xff]
        %v2020 = vld [vmem:[%s11 + $0x20] sm:$0xff]
        %v2021 = vld [vmem:[%s11 + $0x28] sm:$0xff]
        %v2022 = vld [vmem:[%s11 + $0x30] sm:$0xff]
        %v2023 = vld [vmem:[%s11 + $0x38] sm:$0xff]
        %v2024 = vld [vmem:[%s11 + $0x40] sm:$0xff]
        %v2025 = vld [vmem:[%s11 + $0x48] sm:$0xff]
        %v2026 = vld [vmem:[%s11 + $0x50] sm:$0xff]
        %v2027 = vld [vmem:[%s11 + $0x58] sm:$0xff]
        %v2028 = vld [vmem:[%s11 + $0x60] sm:$0xff]
        %v2029 = vld [vmem:[%s11 + $0x68] sm:$0xff]
        %v2030 = vld [vmem:[%s11 + $0x70] sm:$0xff]
        %v2031 = vld [vmem:[%s11 + $0x78] sm:$0xff]
        %v2032 = vld [vmem:[%s11 + $0x80] sm:$0xff]
        %v2033 = vld [vmem:[%s11 + $0x88] sm:$0xff]
        %v2034 = vld [vmem:[%s11 + $0x90] sm:$0xff]
        %v2035 = vld [vmem:[%s11 + $0x98] sm:$0xff]
        %v2036 = vld [vmem:[%s11 + $0xa0] sm:$0xff]
        %v2037 = vld [vmem:[%s11 + $0xa8] sm:$0xff]
        %v2038 = vld [vmem:[%s11 + $0xb0] sm:$0xff]
        %v2039 = vld [vmem:[%s11 + $0xb8] sm:$0xff]
        %v2040 = vld [vmem:[%s11 + $0xc0] sm:$0xff]
        %v2041 = vld [vmem:[%s11 + $0xc8] sm:$0xff]
        %v2042 = vld [vmem:[%s11 + $0xd0] sm:$0xff]
        %v2043 = vld [vmem:[%s11 + $0xd8] sm:$0xff]
        %v2044 = vld [vmem:[%s11 + $0xe0] sm:$0xff]
        %v2045 = vld [vmem:[%s11 + $0xe8] sm:$0xff]
        %v2046 = vld [vmem:[%s11 + $0xf0] sm:$0xff]
        %v2047 = vld [vmem:[%s11 + $0xf8] sm:$0xff]
        %v2048 = vld [vmem:[%s11 + $0x100] sm:$0xff]
        %v2049 = vld [vmem:[%s11 + $0x108] sm:$0xff]
        %v2050 = vld [vmem:[%s11 + $0x110] sm:$0xff]
        %v2051 = vld [vmem:[%s11 + $0x118] sm:$0xff]
        %v2052 = vld [vmem:[%s11 + $0x120] sm:$0xff]
        %v2053 = vld [vmem:[%s11 + $0x128] sm:$0xff]
        %v2054 = vld [vmem:[%s11 + $0x130] sm:$0xff]
        %v2055 = vld [vmem:[%s11 + $0x138] sm:$0xff]
        %v2056 = vld [vmem:[%s11 + $0x140] sm:$0xff]
        %v2057 = vld [vmem:[%s11 + $0x148] sm:$0xff]
        %v2058 = vld [vmem:[%s11 + $0x150] sm:$0xff]
        %v2059 = vld [vmem:[%s11 + $0x158] sm:$0xff]
        %v2060 = vld [vmem:[%s11 + $0x160] sm:$0xff]
        %v2061 = vld [vmem:[%s11 + $0x168] sm:$0xff]
        %v2062 = vld [vmem:[%s11 + $0x170] sm:$0xff]
        %v2063 = vld [vmem:[%s11 + $0x178] sm:$0xff]
        %v2065 = vsel %vm1362, %v2017, 0
        %v2068 = vsel %vm1362, %v2019, 0
        %v2071 = vsel %vm1362, %v2021, 0
        %v2074 = vsel %vm1362, %v2023, 0
        %v2077 = vsel %vm1362, %v2025, 0
        %v2080 = vsel %vm1362, %v2027, 0
        %v2083 = vsel %vm1362, %v2029, 0
        %v2086 = vsel %vm1362, %v2031, 0
        %v2089 = vsel %vm1362, %v2033, 0
        %v2092 = vsel %vm1362, %v2035, 0
        %v2095 = vsel %vm1362, %v2037, 0
        %v2098 = vsel %vm1362, %v2039, 0
        %v2101 = vsel %vm1362, %v2041, 0
        %v2104 = vsel %vm1362, %v2043, 0
        %v2107 = vsel %vm1362, %v2045, 0
        %v2110 = vsel %vm1362, %v2047, 0
        %v2113 = vsel %vm1362, %v2049, 0
        %v2116 = vsel %vm1362, %v2051, 0
        %v2119 = vsel %vm1362, %v2053, 0
        %v2122 = vsel %vm1362, %v2055, 0
        %v2125 = vsel %vm1362, %v2057, 0
        %v2128 = vsel %vm1362, %v2059, 0
        %v2131 = vsel %vm1362, %v2061, 0
        %v2134 = vsel %vm1362, %v2063, 0
        %2136 = vmatprep.subr.mxu0 0.0
        %2137 = vmatpush1.msra.mxu0 %v2007
        %2138 = vmatprep.subr.mxu0 0.0
        %2139 = vmatpush1.msra.mxu0 %v2006
        %2140 = vmatprep.subr.mxu0 0.0
        %2141 = vmatpush1.msra.mxu0 %v2005
        %2142 = vmatprep.subr.mxu0 0.0
        %2143 = vmatpush1.msra.mxu0 %v2004
        %2144 = vmatprep.subr.mxu0 0.0
        %2145 = vmatpush1.msra.mxu0 %v2003
        %2146 = vmatprep.subr.mxu0 0.0
        %2147 = vmatpush1.msra.mxu0 %v2002
        %2148 = vmatprep.subr.mxu0 0.0
        %2149 = vmatpush1.msra.mxu0 %v2001
        %2150 = vmatprep.subr.mxu0 0.0
        %2151 = vmatpush1.msra.mxu0 %v2000
        %2152 = vmatprep.subr.mxu0 0.0
        %2153 = vmatpush1.msra.mxu0 %v1999
        %2154 = vmatprep.subr.mxu0 0.0
        %2155 = vmatpush1.msra.mxu0 %v1998
        %2156 = vmatprep.subr.mxu0 0.0
        %2157 = vmatpush1.msra.mxu0 %v1997
        %2158 = vmatprep.subr.mxu0 0.0
        %2159 = vmatpush1.msra.mxu0 %v1996
        %2160 = vmatprep.subr.mxu0 0.0
        %2161 = vmatpush1.msra.mxu0 %v1995
        %2162 = vmatprep.subr.mxu0 0.0
        %2163 = vmatpush1.msra.mxu0 %v1994
        %2164 = vmatprep.subr.mxu0 0.0
        %2165 = vmatpush1.msra.mxu0 %v1993
        %2166 = vmatprep.subr.mxu0 0.0
        %2167 = vmatpush1.msra.mxu0 %v1992
        %2168 = vmatprep.subr.mxu0 0.0
        %2169 = vmatpush2.msra.mxu0 0.0
        %2170 = vmatprep.subr.mxu0 0.0
        %2171 = vmatpush2.msra.mxu0 0.0
        %2172 = vmatprep.subr.mxu0 0.0
        %2173 = vmatpush2.msra.mxu0 0.0
        %2174 = vmatprep.subr.mxu0 0.0
        %2175 = vmatpush2.msra.mxu0 0.0
        %2176 = vmatprep.subr.mxu0 0.0
        %2177 = vmatpush2.msra.mxu0 0.0
        %2178 = vmatprep.subr.mxu0 0.0
        %2179 = vmatpush2.msra.mxu0 0.0
        %2180 = vmatprep.subr.mxu0 0.0
        %2181 = vmatpush2.msra.mxu0 0.0
        %2182 = vmatprep.subr.mxu0 0.0
        %2183 = vmatpush2.msra.mxu0 0.0
        %2184 = vmatprep.subr.mxu0 0.0
        %2185 = vmatpush2.msra.mxu0 %v2015
        %2186 = vmatprep.subr.mxu0 0.0
        %2187 = vmatpush2.msra.mxu0 %v2014
        %2188 = vmatprep.subr.mxu0 0.0
        %2189 = vmatpush2.msra.mxu0 %v2013
        %2190 = vmatprep.subr.mxu0 0.0
        %2191 = vmatpush2.msra.mxu0 %v2012
        %2192 = vmatprep.subr.mxu0 0.0
        %2193 = vmatpush2.msra.mxu0 %v2011
        %2194 = vmatprep.subr.mxu0 0.0
        %2195 = vmatpush2.msra.mxu0 %v2010
        %2196 = vmatprep.subr.mxu0 0.0
        %2197 = vmatpush2.msra.mxu0 %v2009
        %2198 = vmatprep.subr.mxu0 0.0
        %2199 = vmatpush2.msra.mxu0 %v2008
        %2200 = vmatprep.mubr.f32.mxu0 %v2065
        %2201 = vmatmul.mubr.f32.gmra.mxu0 %v2016
        %v2202 = vpop.f32.mrf.mxu0
        %v2203 = vadd.f32 0.0, %v2202
        %v2204 = vpop.f32.mrf.mxu0
        %2205 = vmatprep.mubr.f32.mxu0 %v2068
        %2206 = vmatmul.mubr.f32.gmra.mxu0 %v2018
        %v2207 = vpop.f32.mrf.mxu0
        %v2208 = vadd.f32 0.0, %v2207
        %v2209 = vpop.f32.mrf.mxu0
        %2210 = vmatprep.mubr.f32.mxu0 %v2071
        %2211 = vmatmul.mubr.f32.gmra.mxu0 %v2020
        %v2212 = vpop.f32.mrf.mxu0
        %v2213 = vadd.f32 0.0, %v2212
        %v2214 = vpop.f32.mrf.mxu0
        %2215 = vmatprep.mubr.f32.mxu0 %v2074
        %2216 = vmatmul.mubr.f32.gmra.mxu0 %v2022
        %v2217 = vpop.f32.mrf.mxu0
        %v2218 = vadd.f32 0.0, %v2217
        %v2219 = vpop.f32.mrf.mxu0
        %2220 = vmatprep.mubr.f32.mxu0 %v2077
        %2221 = vmatmul.mubr.f32.gmra.mxu0 %v2024
        %v2222 = vpop.f32.mrf.mxu0
        %v2223 = vadd.f32 0.0, %v2222
        %v2224 = vpop.f32.mrf.mxu0
        %2225 = vmatprep.mubr.f32.mxu0 %v2080
        %2226 = vmatmul.mubr.f32.gmra.mxu0 %v2026
        %v2227 = vpop.f32.mrf.mxu0
        %v2228 = vadd.f32 0.0, %v2227
        %v2229 = vpop.f32.mrf.mxu0
        %2230 = vmatprep.mubr.f32.mxu0 %v2083
        %2231 = vmatmul.mubr.f32.gmra.mxu0 %v2028
        %v2232 = vpop.f32.mrf.mxu0
        %v2233 = vadd.f32 0.0, %v2232
        %v2234 = vpop.f32.mrf.mxu0
        %2235 = vmatprep.mubr.f32.mxu0 %v2086
        %2236 = vmatmul.mubr.f32.gmra.mxu0 %v2030
        %v2237 = vpop.f32.mrf.mxu0
        %v2238 = vadd.f32 0.0, %v2237
        %v2239 = vpop.f32.mrf.mxu0
        %2240 = vmatprep.mubr.f32.mxu0 %v2089
        %2241 = vmatmul.mubr.f32.gmra.mxu0 %v2032
        %v2242 = vpop.f32.mrf.mxu0
        %v2243 = vadd.f32 0.0, %v2242
        %v2244 = vpop.f32.mrf.mxu0
        %2245 = vmatprep.mubr.f32.mxu0 %v2092
        %2246 = vmatmul.mubr.f32.gmra.mxu0 %v2034
        %v2247 = vpop.f32.mrf.mxu0
        %v2248 = vadd.f32 0.0, %v2247
        %v2249 = vpop.f32.mrf.mxu0
        %2250 = vmatprep.mubr.f32.mxu0 %v2095
        %2251 = vmatmul.mubr.f32.gmra.mxu0 %v2036
        %v2252 = vpop.f32.mrf.mxu0
        %v2253 = vadd.f32 0.0, %v2252
        %v2254 = vpop.f32.mrf.mxu0
        %2255 = vmatprep.mubr.f32.mxu0 %v2098
        %2256 = vmatmul.mubr.f32.gmra.mxu0 %v2038
        %v2257 = vpop.f32.mrf.mxu0
        %v2258 = vadd.f32 0.0, %v2257
        %v2259 = vpop.f32.mrf.mxu0
        %2260 = vmatprep.mubr.f32.mxu0 %v2101
        %2261 = vmatmul.mubr.f32.gmra.mxu0 %v2040
        %v2262 = vpop.f32.mrf.mxu0
        %v2263 = vadd.f32 0.0, %v2262
        %v2264 = vpop.f32.mrf.mxu0
        %2265 = vmatprep.mubr.f32.mxu0 %v2104
        %2266 = vmatmul.mubr.f32.gmra.mxu0 %v2042
        %v2267 = vpop.f32.mrf.mxu0
        %v2268 = vadd.f32 0.0, %v2267
        %v2269 = vpop.f32.mrf.mxu0
        %2270 = vmatprep.mubr.f32.mxu0 %v2107
        %2271 = vmatmul.mubr.f32.gmra.mxu0 %v2044
        %v2272 = vpop.f32.mrf.mxu0
        %v2273 = vadd.f32 0.0, %v2272
        %v2274 = vpop.f32.mrf.mxu0
        %2275 = vmatprep.mubr.f32.mxu0 %v2110
        %2276 = vmatmul.mubr.f32.gmra.mxu0 %v2046
        %v2277 = vpop.f32.mrf.mxu0
        %v2278 = vadd.f32 0.0, %v2277
        %v2279 = vpop.f32.mrf.mxu0
        %2280 = vmatprep.mubr.f32.mxu0 %v2113
        %2281 = vmatmul.mubr.f32.gmra.mxu0 %v2048
        %v2282 = vpop.f32.mrf.mxu0
        %v2283 = vadd.f32 0.0, %v2282
        %v2284 = vpop.f32.mrf.mxu0
        %2285 = vmatprep.mubr.f32.mxu0 %v2116
        %2286 = vmatmul.mubr.f32.gmra.mxu0 %v2050
        %v2287 = vpop.f32.mrf.mxu0
        %v2288 = vadd.f32 0.0, %v2287
        %v2289 = vpop.f32.mrf.mxu0
        %2290 = vmatprep.mubr.f32.mxu0 %v2119
        %2291 = vmatmul.mubr.f32.gmra.mxu0 %v2052
        %v2292 = vpop.f32.mrf.mxu0
        %v2293 = vadd.f32 0.0, %v2292
        %v2294 = vpop.f32.mrf.mxu0
        %2295 = vmatprep.mubr.f32.mxu0 %v2122
        %2296 = vmatmul.mubr.f32.gmra.mxu0 %v2054
        %v2297 = vpop.f32.mrf.mxu0
        %v2298 = vadd.f32 0.0, %v2297
        %v2299 = vpop.f32.mrf.mxu0
        %2300 = vmatprep.mubr.f32.mxu0 %v2125
        %2301 = vmatmul.mubr.f32.gmra.mxu0 %v2056
        %v2302 = vpop.f32.mrf.mxu0
        %v2303 = vadd.f32 0.0, %v2302
        %v2304 = vpop.f32.mrf.mxu0
        %2305 = vmatprep.mubr.f32.mxu0 %v2128
        %2306 = vmatmul.mubr.f32.gmra.mxu0 %v2058
        %v2307 = vpop.f32.mrf.mxu0
        %v2308 = vadd.f32 0.0, %v2307
        %v2309 = vpop.f32.mrf.mxu0
        %2310 = vmatprep.mubr.f32.mxu0 %v2131
        %2311 = vmatmul.mubr.f32.gmra.mxu0 %v2060
        %v2312 = vpop.f32.mrf.mxu0
        %v2313 = vadd.f32 0.0, %v2312
        %v2314 = vpop.f32.mrf.mxu0
        %2315 = vmatprep.mubr.f32.mxu0 %v2134
        %2316 = vmatmul.mubr.f32.gmra.mxu0 %v2062
        %v2317 = vpop.f32.mrf.mxu0
        %v2318 = vadd.f32 0.0, %v2317
        %v2319 = vpop.f32.mrf.mxu0
        %2320 = vdwg.mxu0
        %v2321 = vld [vmem:[%s12] sm:$0xff]
        %v2322 = vld [vmem:[%s12 + $0x8] sm:$0xff]
        %v2323 = vld [vmem:[%s12 + $0x10] sm:$0xff]
        %v2324 = vld [vmem:[%s12 + $0x18] sm:$0xff]
        %v2325 = vld [vmem:[%s12 + $0x20] sm:$0xff]
        %v2326 = vld [vmem:[%s12 + $0x28] sm:$0xff]
        %v2327 = vld [vmem:[%s12 + $0x30] sm:$0xff]
        %v2328 = vld [vmem:[%s12 + $0x38] sm:$0xff]
        %v2329 = vld [vmem:[%s12 + $0x40] sm:$0xff]
        %v2330 = vld [vmem:[%s12 + $0x48] sm:$0xff]
        %v2331 = vld [vmem:[%s12 + $0x50] sm:$0xff]
        %v2332 = vld [vmem:[%s12 + $0x58] sm:$0xff]
        %v2333 = vld [vmem:[%s13] sm:$0x1]
        %v2335 = vlaneseq
        %v2336 = vshrl.u32 %v2335, 7
        %v2337 = vsub.s32 0, %v2336
        %v2338 = vrot.slane %v2333, %v2337
        %v2341 = vsel %vm783, %v2203, 0
        %v2344 = vsel %vm783, %v2208, 0
        %v2347 = vsel %vm783, %v2213, 0
        %v2350 = vsel %vm783, %v2218, 0
        %v2353 = vsel %vm783, %v2223, 0
        %v2356 = vsel %vm783, %v2228, 0
        %v2359 = vsel %vm783, %v2233, 0
        %v2362 = vsel %vm783, %v2238, 0
        %v2365 = vsel %vm783, %v2243, 0
        %v2368 = vsel %vm783, %v2248, 0
        %v2371 = vsel %vm783, %v2253, 0
        %v2374 = vsel %vm783, %v2258, 0
        %v2377 = vsel %vm783, %v2263, 0
        %v2380 = vsel %vm783, %v2268, 0
        %v2383 = vsel %vm783, %v2273, 0
        %v2386 = vsel %vm783, %v2278, 0
        %v2389 = vsel %vm783, %v2283, 0
        %v2392 = vsel %vm783, %v2288, 0
        %v2395 = vsel %vm783, %v2293, 0
        %v2398 = vsel %vm783, %v2298, 0
        %v2401 = vsel %vm783, %v2303, 0
        %v2404 = vsel %vm783, %v2308, 0
        %v2407 = vsel %vm783, %v2313, 0
        %v2410 = vsel %vm783, %v2318, 0
        %2412 = vmatprep.subr.mxu0 0.0
        %2413 = vmatpush1.msra.mxu0 0.0
        %2414 = vmatprep.subr.mxu0 0.0
        %2415 = vmatpush1.msra.mxu0 0.0
        %2416 = vmatprep.subr.mxu0 0.0
        %2417 = vmatpush1.msra.mxu0 0.0
        %2418 = vmatprep.subr.mxu0 0.0
        %2419 = vmatpush1.msra.mxu0 0.0
        %2420 = vmatprep.subr.mxu0 0.0
        %2421 = vmatpush1.msra.mxu0 %v2332
        %2422 = vmatprep.subr.mxu0 0.0
        %2423 = vmatpush1.msra.mxu0 %v2331
        %2424 = vmatprep.subr.mxu0 0.0
        %2425 = vmatpush1.msra.mxu0 %v2330
        %2426 = vmatprep.subr.mxu0 0.0
        %2427 = vmatpush1.msra.mxu0 %v2329
        %2428 = vmatprep.subr.mxu0 0.0
        %2429 = vmatpush1.msra.mxu0 %v2328
        %2430 = vmatprep.subr.mxu0 0.0
        %2431 = vmatpush1.msra.mxu0 %v2327
        %2432 = vmatprep.subr.mxu0 0.0
        %2433 = vmatpush1.msra.mxu0 %v2326
        %2434 = vmatprep.subr.mxu0 0.0
        %2435 = vmatpush1.msra.mxu0 %v2325
        %2436 = vmatprep.subr.mxu0 0.0
        %2437 = vmatpush1.msra.mxu0 %v2324
        %2438 = vmatprep.subr.mxu0 0.0
        %2439 = vmatpush1.msra.mxu0 %v2323
        %2440 = vmatprep.subr.mxu0 0.0
        %2441 = vmatpush1.msra.mxu0 %v2322
        %2442 = vmatprep.subr.mxu0 0.0
        %2443 = vmatpush1.msra.mxu0 %v2321
        %2444 = vmatprep.subr.mxu0 0.0
        %2445 = vmatpush2.msra.mxu0 0.0
        %2446 = vmatprep.subr.mxu0 0.0
        %2447 = vmatpush2.msra.mxu0 0.0
        %2448 = vmatprep.subr.mxu0 0.0
        %2449 = vmatpush2.msra.mxu0 0.0
        %2450 = vmatprep.subr.mxu0 0.0
        %2451 = vmatpush2.msra.mxu0 0.0
        %2452 = vmatprep.subr.mxu0 0.0
        %2453 = vmatpush2.msra.mxu0 0.0
        %2454 = vmatprep.subr.mxu0 0.0
        %2455 = vmatpush2.msra.mxu0 0.0
        %2456 = vmatprep.subr.mxu0 0.0
        %2457 = vmatpush2.msra.mxu0 0.0
        %2458 = vmatprep.subr.mxu0 0.0
        %2459 = vmatpush2.msra.mxu0 0.0
        %2460 = vmatprep.subr.mxu0 0.0
        %2461 = vmatpush2.msra.mxu0 0.0
        %2462 = vmatprep.subr.mxu0 0.0
        %2463 = vmatpush2.msra.mxu0 0.0
        %2464 = vmatprep.subr.mxu0 0.0
        %2465 = vmatpush2.msra.mxu0 0.0
        %2466 = vmatprep.subr.mxu0 0.0
        %2467 = vmatpush2.msra.mxu0 0.0
        %2468 = vmatprep.subr.mxu0 0.0
        %2469 = vmatpush2.msra.mxu0 0.0
        %2470 = vmatprep.subr.mxu0 0.0
        %2471 = vmatpush2.msra.mxu0 0.0
        %2472 = vmatprep.subr.mxu0 0.0
        %2473 = vmatpush2.msra.mxu0 0.0
        %2474 = vmatprep.subr.mxu0 0.0
        %2475 = vmatpush2.msra.mxu0 0.0
        %2476 = vmatprep.mubr.f32.mxu0 0.0
        %2477 = vmatmul.mubr.f32.gmra.mxu0 %v2341
        %v2478 = vpop.f32.mrf.mxu0
        %v2479 = vadd.f32 %v2338, %v2478
        %v2480 = vpop.f32.mrf.mxu0
        %2481 = vmatprep.mubr.f32.mxu0 0.0
        %2482 = vmatmul.mubr.f32.gmra.mxu0 %v2344
        %v2483 = vpop.f32.mrf.mxu0
        %v2484 = vadd.f32 %v2338, %v2483
        %v2485 = vpop.f32.mrf.mxu0
        %2486 = vmatprep.mubr.f32.mxu0 0.0
        %2487 = vmatmul.mubr.f32.gmra.mxu0 %v2347
        %v2488 = vpop.f32.mrf.mxu0
        %v2489 = vadd.f32 %v2338, %v2488
        %v2490 = vpop.f32.mrf.mxu0
        %2491 = vmatprep.mubr.f32.mxu0 0.0
        %2492 = vmatmul.mubr.f32.gmra.mxu0 %v2350
        %v2493 = vpop.f32.mrf.mxu0
        %v2494 = vadd.f32 %v2338, %v2493
        %v2495 = vpop.f32.mrf.mxu0
        %2496 = vmatprep.mubr.f32.mxu0 0.0
        %2497 = vmatmul.mubr.f32.gmra.mxu0 %v2353
        %v2498 = vpop.f32.mrf.mxu0
        %v2499 = vadd.f32 %v2338, %v2498
        %v2500 = vpop.f32.mrf.mxu0
        %2501 = vmatprep.mubr.f32.mxu0 0.0
        %2502 = vmatmul.mubr.f32.gmra.mxu0 %v2356
        %v2503 = vpop.f32.mrf.mxu0
        %v2504 = vadd.f32 %v2338, %v2503
        %v2505 = vpop.f32.mrf.mxu0
        %2506 = vmatprep.mubr.f32.mxu0 0.0
        %2507 = vmatmul.mubr.f32.gmra.mxu0 %v2359
        %v2508 = vpop.f32.mrf.mxu0
        %v2509 = vadd.f32 %v2338, %v2508
        %v2510 = vpop.f32.mrf.mxu0
        %2511 = vmatprep.mubr.f32.mxu0 0.0
        %2512 = vmatmul.mubr.f32.gmra.mxu0 %v2362
        %v2513 = vpop.f32.mrf.mxu0
        %v2514 = vadd.f32 %v2338, %v2513
        %v2515 = vpop.f32.mrf.mxu0
        %2516 = vmatprep.mubr.f32.mxu0 0.0
        %2517 = vmatmul.mubr.f32.gmra.mxu0 %v2365
        %v2518 = vpop.f32.mrf.mxu0
        %v2519 = vadd.f32 %v2338, %v2518
        %v2520 = vpop.f32.mrf.mxu0
        %2521 = vmatprep.mubr.f32.mxu0 0.0
        %2522 = vmatmul.mubr.f32.gmra.mxu0 %v2368
        %v2523 = vpop.f32.mrf.mxu0
        %v2524 = vadd.f32 %v2338, %v2523
        %v2525 = vpop.f32.mrf.mxu0
        %2526 = vmatprep.mubr.f32.mxu0 0.0
        %2527 = vmatmul.mubr.f32.gmra.mxu0 %v2371
        %v2528 = vpop.f32.mrf.mxu0
        %v2529 = vadd.f32 %v2338, %v2528
        %v2530 = vpop.f32.mrf.mxu0
        %2531 = vmatprep.mubr.f32.mxu0 0.0
        %2532 = vmatmul.mubr.f32.gmra.mxu0 %v2374
        %v2533 = vpop.f32.mrf.mxu0
        %v2534 = vadd.f32 %v2338, %v2533
        %v2535 = vpop.f32.mrf.mxu0
        %2536 = vmatprep.mubr.f32.mxu0 0.0
        %2537 = vmatmul.mubr.f32.gmra.mxu0 %v2377
        %v2538 = vpop.f32.mrf.mxu0
        %v2539 = vadd.f32 %v2338, %v2538
        %v2540 = vpop.f32.mrf.mxu0
        %2541 = vmatprep.mubr.f32.mxu0 0.0
        %2542 = vmatmul.mubr.f32.gmra.mxu0 %v2380
        %v2543 = vpop.f32.mrf.mxu0
        %v2544 = vadd.f32 %v2338, %v2543
        %v2545 = vpop.f32.mrf.mxu0
        %2546 = vmatprep.mubr.f32.mxu0 0.0
        %2547 = vmatmul.mubr.f32.gmra.mxu0 %v2383
        %v2548 = vpop.f32.mrf.mxu0
        %v2549 = vadd.f32 %v2338, %v2548
        %v2550 = vpop.f32.mrf.mxu0
        %2551 = vmatprep.mubr.f32.mxu0 0.0
        %2552 = vmatmul.mubr.f32.gmra.mxu0 %v2386
        %v2553 = vpop.f32.mrf.mxu0
        %v2554 = vadd.f32 %v2338, %v2553
        %v2555 = vpop.f32.mrf.mxu0
        %2556 = vmatprep.mubr.f32.mxu0 0.0
        %2557 = vmatmul.mubr.f32.gmra.mxu0 %v2389
        %v2558 = vpop.f32.mrf.mxu0
        %v2559 = vadd.f32 %v2338, %v2558
        %v2560 = vpop.f32.mrf.mxu0
        %2561 = vmatprep.mubr.f32.mxu0 0.0
        %2562 = vmatmul.mubr.f32.gmra.mxu0 %v2392
        %v2563 = vpop.f32.mrf.mxu0
        %v2564 = vadd.f32 %v2338, %v2563
        %v2565 = vpop.f32.mrf.mxu0
        %2566 = vmatprep.mubr.f32.mxu0 0.0
        %2567 = vmatmul.mubr.f32.gmra.mxu0 %v2395
        %v2568 = vpop.f32.mrf.mxu0
        %v2569 = vadd.f32 %v2338, %v2568
        %v2570 = vpop.f32.mrf.mxu0
        %2571 = vmatprep.mubr.f32.mxu0 0.0
        %2572 = vmatmul.mubr.f32.gmra.mxu0 %v2398
        %v2573 = vpop.f32.mrf.mxu0
        %v2574 = vadd.f32 %v2338, %v2573
        %v2575 = vpop.f32.mrf.mxu0
        %2576 = vmatprep.mubr.f32.mxu0 0.0
        %2577 = vmatmul.mubr.f32.gmra.mxu0 %v2401
        %v2578 = vpop.f32.mrf.mxu0
        %v2579 = vadd.f32 %v2338, %v2578
        %v2580 = vpop.f32.mrf.mxu0
        %2581 = vmatprep.mubr.f32.mxu0 0.0
        %2582 = vmatmul.mubr.f32.gmra.mxu0 %v2404
        %v2583 = vpop.f32.mrf.mxu0
        %v2584 = vadd.f32 %v2338, %v2583
        %v2585 = vpop.f32.mrf.mxu0
        %2586 = vmatprep.mubr.f32.mxu0 0.0
        %2587 = vmatmul.mubr.f32.gmra.mxu0 %v2407
        %v2588 = vpop.f32.mrf.mxu0
        %v2589 = vadd.f32 %v2338, %v2588
        %v2590 = vpop.f32.mrf.mxu0
        %2591 = vmatprep.mubr.f32.mxu0 0.0
        %2592 = vmatmul.mubr.f32.gmra.mxu0 %v2410
        %v2593 = vpop.f32.mrf.mxu0
        %v2594 = vadd.f32 %v2338, %v2593
        %v2595 = vpop.f32.mrf.mxu0
        %2596 = vdwg.mxu0
        %v2597 = vadd.f32 %v2479, %v2203
        %v2598 = vadd.f32 %v2484, %v2208
        %v2599 = vadd.f32 %v2489, %v2213
        %v2600 = vadd.f32 %v2494, %v2218
        %v2601 = vadd.f32 %v2499, %v2223
        %v2602 = vadd.f32 %v2504, %v2228
        %v2603 = vadd.f32 %v2509, %v2233
        %v2604 = vadd.f32 %v2514, %v2238
        %v2605 = vadd.f32 %v2519, %v2243
        %v2606 = vadd.f32 %v2524, %v2248
        %v2607 = vadd.f32 %v2529, %v2253
        %v2608 = vadd.f32 %v2534, %v2258
        %v2609 = vadd.f32 %v2539, %v2263
        %v2610 = vadd.f32 %v2544, %v2268
        %v2611 = vadd.f32 %v2549, %v2273
        %v2612 = vadd.f32 %v2554, %v2278
        %v2613 = vadd.f32 %v2559, %v2283
        %v2614 = vadd.f32 %v2564, %v2288
        %v2615 = vadd.f32 %v2569, %v2293
        %v2616 = vadd.f32 %v2574, %v2298
        %v2617 = vadd.f32 %v2579, %v2303
        %v2618 = vadd.f32 %v2584, %v2308
        %v2619 = vadd.f32 %v2589, %v2313
        %v2620 = vadd.f32 %v2594, %v2318
        %vm2621 = vcmp.ge.f32.partialorder %v2597, 0.0
        %vm2622 = vcmp.ge.f32.partialorder %v2598, 0.0
        %vm2623 = vcmp.ge.f32.partialorder %v2599, 0.0
        %vm2624 = vcmp.ge.f32.partialorder %v2600, 0.0
        %vm2625 = vcmp.ge.f32.partialorder %v2601, 0.0
        %vm2626 = vcmp.ge.f32.partialorder %v2602, 0.0
        %vm2627 = vcmp.ge.f32.partialorder %v2603, 0.0
        %vm2628 = vcmp.ge.f32.partialorder %v2604, 0.0
        %vm2629 = vcmp.ge.f32.partialorder %v2605, 0.0
        %vm2630 = vcmp.ge.f32.partialorder %v2606, 0.0
        %vm2631 = vcmp.ge.f32.partialorder %v2607, 0.0
        %vm2632 = vcmp.ge.f32.partialorder %v2608, 0.0
        %vm2633 = vcmp.ge.f32.partialorder %v2609, 0.0
        %vm2634 = vcmp.ge.f32.partialorder %v2610, 0.0
        %vm2635 = vcmp.ge.f32.partialorder %v2611, 0.0
        %vm2636 = vcmp.ge.f32.partialorder %v2612, 0.0
        %vm2637 = vcmp.ge.f32.partialorder %v2613, 0.0
        %vm2638 = vcmp.ge.f32.partialorder %v2614, 0.0
        %vm2639 = vcmp.ge.f32.partialorder %v2615, 0.0
        %vm2640 = vcmp.ge.f32.partialorder %v2616, 0.0
        %vm2641 = vcmp.ge.f32.partialorder %v2617, 0.0
        %vm2642 = vcmp.ge.f32.partialorder %v2618, 0.0
        %vm2643 = vcmp.ge.f32.partialorder %v2619, 0.0
        %vm2644 = vcmp.ge.f32.partialorder %v2620, 0.0
        %v2645 = vmul.f32 %v2597, 0.2
        %v2646 = vmul.f32 %v2598, 0.2
        %v2647 = vmul.f32 %v2599, 0.2
        %v2648 = vmul.f32 %v2600, 0.2
        %v2649 = vmul.f32 %v2601, 0.2
        %v2650 = vmul.f32 %v2602, 0.2
        %v2651 = vmul.f32 %v2603, 0.2
        %v2652 = vmul.f32 %v2604, 0.2
        %v2653 = vmul.f32 %v2605, 0.2
        %v2654 = vmul.f32 %v2606, 0.2
        %v2655 = vmul.f32 %v2607, 0.2
        %v2656 = vmul.f32 %v2608, 0.2
        %v2657 = vmul.f32 %v2609, 0.2
        %v2658 = vmul.f32 %v2610, 0.2
        %v2659 = vmul.f32 %v2611, 0.2
        %v2660 = vmul.f32 %v2612, 0.2
        %v2661 = vmul.f32 %v2613, 0.2
        %v2662 = vmul.f32 %v2614, 0.2
        %v2663 = vmul.f32 %v2615, 0.2
        %v2664 = vmul.f32 %v2616, 0.2
        %v2665 = vmul.f32 %v2617, 0.2
        %v2666 = vmul.f32 %v2618, 0.2
        %v2667 = vmul.f32 %v2619, 0.2
        %v2668 = vmul.f32 %v2620, 0.2
        %v2669 = vsel %vm2621, %v2597, %v2645
        %v2670 = vsel %vm2622, %v2598, %v2646
        %v2671 = vsel %vm2623, %v2599, %v2647
        %v2672 = vsel %vm2624, %v2600, %v2648
        %v2673 = vsel %vm2625, %v2601, %v2649
        %v2674 = vsel %vm2626, %v2602, %v2650
        %v2675 = vsel %vm2627, %v2603, %v2651
        %v2676 = vsel %vm2628, %v2604, %v2652
        %v2677 = vsel %vm2629, %v2605, %v2653
        %v2678 = vsel %vm2630, %v2606, %v2654
        %v2679 = vsel %vm2631, %v2607, %v2655
        %v2680 = vsel %vm2632, %v2608, %v2656
        %v2681 = vsel %vm2633, %v2609, %v2657
        %v2682 = vsel %vm2634, %v2610, %v2658
        %v2683 = vsel %vm2635, %v2611, %v2659
        %v2684 = vsel %vm2636, %v2612, %v2660
        %v2685 = vsel %vm2637, %v2613, %v2661
        %v2686 = vsel %vm2638, %v2614, %v2662
        %v2687 = vsel %vm2639, %v2615, %v2663
        %v2688 = vsel %vm2640, %v2616, %v2664
        %v2689 = vsel %vm2641, %v2617, %v2665
        %v2690 = vsel %vm2642, %v2618, %v2666
        %v2691 = vsel %vm2643, %v2619, %v2667
        %v2692 = vsel %vm2644, %v2620, %v2668
        %v2693 = vld [vmem:[%s14] sm:$0xff]
        %v2694 = vld [vmem:[%s14 + $0x8] sm:$0xff]
        %v2695 = vld [vmem:[%s14 + $0x10] sm:$0xff]
        %v2696 = vld [vmem:[%s14 + $0x18] sm:$0xff]
        %v2697 = vld [vmem:[%s14 + $0x20] sm:$0xff]
        %v2698 = vld [vmem:[%s14 + $0x28] sm:$0xff]
        %v2699 = vld [vmem:[%s14 + $0x30] sm:$0xff]
        %v2700 = vld [vmem:[%s14 + $0x38] sm:$0xff]
        %v2701 = vld [vmem:[%s14 + $0x40] sm:$0xff]
        %v2702 = vld [vmem:[%s14 + $0x48] sm:$0xff]
        %v2703 = vld [vmem:[%s14 + $0x50] sm:$0xff]
        %v2704 = vld [vmem:[%s14 + $0x58] sm:$0xff]
        %v2705 = vld [vmem:[%s14 + $0x60] sm:$0xff]
        %v2706 = vld [vmem:[%s14 + $0x68] sm:$0xff]
        %v2707 = vld [vmem:[%s14 + $0x70] sm:$0xff]
        %v2708 = vld [vmem:[%s14 + $0x78] sm:$0xff]
        %v2709 = vld [vmem:[%s14 + $0x80] sm:$0xff]
        %v2710 = vld [vmem:[%s14 + $0x88] sm:$0xff]
        %v2711 = vld [vmem:[%s14 + $0x90] sm:$0xff]
        %v2712 = vld [vmem:[%s14 + $0x98] sm:$0xff]
        %v2713 = vld [vmem:[%s14 + $0xa0] sm:$0xff]
        %v2714 = vld [vmem:[%s14 + $0xa8] sm:$0xff]
        %v2715 = vld [vmem:[%s14 + $0xb0] sm:$0xff]
        %v2716 = vld [vmem:[%s14 + $0xb8] sm:$0xff]
        %v2717 = vld [vmem:[%s14 + $0xc0] sm:$0xff]
        %v2718 = vld [vmem:[%s14 + $0xc8] sm:$0xff]
        %v2719 = vld [vmem:[%s14 + $0xd0] sm:$0xff]
        %v2720 = vld [vmem:[%s14 + $0xd8] sm:$0xff]
        %v2721 = vld [vmem:[%s14 + $0xe0] sm:$0xff]
        %v2722 = vld [vmem:[%s14 + $0xe8] sm:$0xff]
        %v2723 = vld [vmem:[%s14 + $0xf0] sm:$0xff]
        %v2724 = vld [vmem:[%s14 + $0xf8] sm:$0xff]
        %v2725 = vld [vmem:[%s14 + $0x100] sm:$0xff]
        %v2726 = vld [vmem:[%s14 + $0x108] sm:$0xff]
        %v2727 = vld [vmem:[%s14 + $0x110] sm:$0xff]
        %v2728 = vld [vmem:[%s14 + $0x118] sm:$0xff]
        %v2729 = vld [vmem:[%s14 + $0x120] sm:$0xff]
        %v2730 = vld [vmem:[%s14 + $0x128] sm:$0xff]
        %v2731 = vld [vmem:[%s14 + $0x130] sm:$0xff]
        %v2732 = vld [vmem:[%s14 + $0x138] sm:$0xff]
        %v2733 = vld [vmem:[%s14 + $0x140] sm:$0xff]
        %v2734 = vld [vmem:[%s14 + $0x148] sm:$0xff]
        %v2735 = vld [vmem:[%s14 + $0x150] sm:$0xff]
        %v2736 = vld [vmem:[%s14 + $0x158] sm:$0xff]
        %v2737 = vld [vmem:[%s14 + $0x160] sm:$0xff]
        %v2738 = vld [vmem:[%s14 + $0x168] sm:$0xff]
        %v2739 = vld [vmem:[%s14 + $0x170] sm:$0xff]
        %v2740 = vld [vmem:[%s14 + $0x178] sm:$0xff]
        %v2742 = vsel %vm1362, %v2694, 0
        %v2745 = vsel %vm1362, %v2696, 0
        %v2748 = vsel %vm1362, %v2698, 0
        %v2751 = vsel %vm1362, %v2700, 0
        %v2754 = vsel %vm1362, %v2702, 0
        %v2757 = vsel %vm1362, %v2704, 0
        %v2760 = vsel %vm1362, %v2706, 0
        %v2763 = vsel %vm1362, %v2708, 0
        %v2766 = vsel %vm1362, %v2710, 0
        %v2769 = vsel %vm1362, %v2712, 0
        %v2772 = vsel %vm1362, %v2714, 0
        %v2775 = vsel %vm1362, %v2716, 0
        %v2778 = vsel %vm1362, %v2718, 0
        %v2781 = vsel %vm1362, %v2720, 0
        %v2784 = vsel %vm1362, %v2722, 0
        %v2787 = vsel %vm1362, %v2724, 0
        %v2790 = vsel %vm1362, %v2726, 0
        %v2793 = vsel %vm1362, %v2728, 0
        %v2796 = vsel %vm1362, %v2730, 0
        %v2799 = vsel %vm1362, %v2732, 0
        %v2802 = vsel %vm1362, %v2734, 0
        %v2805 = vsel %vm1362, %v2736, 0
        %v2808 = vsel %vm1362, %v2738, 0
        %v2811 = vsel %vm1362, %v2740, 0
        %2813 = vmatprep.subr.mxu0 0.0
        %2814 = vmatpush1.msra.mxu0 %v2684
        %2815 = vmatprep.subr.mxu0 0.0
        %2816 = vmatpush1.msra.mxu0 %v2683
        %2817 = vmatprep.subr.mxu0 0.0
        %2818 = vmatpush1.msra.mxu0 %v2682
        %2819 = vmatprep.subr.mxu0 0.0
        %2820 = vmatpush1.msra.mxu0 %v2681
        %2821 = vmatprep.subr.mxu0 0.0
        %2822 = vmatpush1.msra.mxu0 %v2680
        %2823 = vmatprep.subr.mxu0 0.0
        %2824 = vmatpush1.msra.mxu0 %v2679
        %2825 = vmatprep.subr.mxu0 0.0
        %2826 = vmatpush1.msra.mxu0 %v2678
        %2827 = vmatprep.subr.mxu0 0.0
        %2828 = vmatpush1.msra.mxu0 %v2677
        %2829 = vmatprep.subr.mxu0 0.0
        %2830 = vmatpush1.msra.mxu0 %v2676
        %2831 = vmatprep.subr.mxu0 0.0
        %2832 = vmatpush1.msra.mxu0 %v2675
        %2833 = vmatprep.subr.mxu0 0.0
        %2834 = vmatpush1.msra.mxu0 %v2674
        %2835 = vmatprep.subr.mxu0 0.0
        %2836 = vmatpush1.msra.mxu0 %v2673
        %2837 = vmatprep.subr.mxu0 0.0
        %2838 = vmatpush1.msra.mxu0 %v2672
        %2839 = vmatprep.subr.mxu0 0.0
        %2840 = vmatpush1.msra.mxu0 %v2671
        %2841 = vmatprep.subr.mxu0 0.0
        %2842 = vmatpush1.msra.mxu0 %v2670
        %2843 = vmatprep.subr.mxu0 0.0
        %2844 = vmatpush1.msra.mxu0 %v2669
        %2845 = vmatprep.subr.mxu0 0.0
        %2846 = vmatpush2.msra.mxu0 0.0
        %2847 = vmatprep.subr.mxu0 0.0
        %2848 = vmatpush2.msra.mxu0 0.0
        %2849 = vmatprep.subr.mxu0 0.0
        %2850 = vmatpush2.msra.mxu0 0.0
        %2851 = vmatprep.subr.mxu0 0.0
        %2852 = vmatpush2.msra.mxu0 0.0
        %2853 = vmatprep.subr.mxu0 0.0
        %2854 = vmatpush2.msra.mxu0 0.0
        %2855 = vmatprep.subr.mxu0 0.0
        %2856 = vmatpush2.msra.mxu0 0.0
        %2857 = vmatprep.subr.mxu0 0.0
        %2858 = vmatpush2.msra.mxu0 0.0
        %2859 = vmatprep.subr.mxu0 0.0
        %2860 = vmatpush2.msra.mxu0 0.0
        %2861 = vmatprep.subr.mxu0 0.0
        %2862 = vmatpush2.msra.mxu0 %v2692
        %2863 = vmatprep.subr.mxu0 0.0
        %2864 = vmatpush2.msra.mxu0 %v2691
        %2865 = vmatprep.subr.mxu0 0.0
        %2866 = vmatpush2.msra.mxu0 %v2690
        %2867 = vmatprep.subr.mxu0 0.0
        %2868 = vmatpush2.msra.mxu0 %v2689
        %2869 = vmatprep.subr.mxu0 0.0
        %2870 = vmatpush2.msra.mxu0 %v2688
        %2871 = vmatprep.subr.mxu0 0.0
        %2872 = vmatpush2.msra.mxu0 %v2687
        %2873 = vmatprep.subr.mxu0 0.0
        %2874 = vmatpush2.msra.mxu0 %v2686
        %2875 = vmatprep.subr.mxu0 0.0
        %2876 = vmatpush2.msra.mxu0 %v2685
        %2877 = vmatprep.mubr.f32.mxu0 %v2742
        %2878 = vmatmul.mubr.f32.gmra.mxu0 %v2693
        %v2879 = vpop.f32.mrf.mxu0
        %v2880 = vadd.f32 0.0, %v2879
        %v2881 = vpop.f32.mrf.mxu0
        %2882 = vmatprep.mubr.f32.mxu0 %v2745
        %2883 = vmatmul.mubr.f32.gmra.mxu0 %v2695
        %v2884 = vpop.f32.mrf.mxu0
        %v2885 = vadd.f32 0.0, %v2884
        %v2886 = vpop.f32.mrf.mxu0
        %2887 = vmatprep.mubr.f32.mxu0 %v2748
        %2888 = vmatmul.mubr.f32.gmra.mxu0 %v2697
        %v2889 = vpop.f32.mrf.mxu0
        %v2890 = vadd.f32 0.0, %v2889
        %v2891 = vpop.f32.mrf.mxu0
        %2892 = vmatprep.mubr.f32.mxu0 %v2751
        %2893 = vmatmul.mubr.f32.gmra.mxu0 %v2699
        %v2894 = vpop.f32.mrf.mxu0
        %v2895 = vadd.f32 0.0, %v2894
        %v2896 = vpop.f32.mrf.mxu0
        %2897 = vmatprep.mubr.f32.mxu0 %v2754
        %2898 = vmatmul.mubr.f32.gmra.mxu0 %v2701
        %v2899 = vpop.f32.mrf.mxu0
        %v2900 = vadd.f32 0.0, %v2899
        %v2901 = vpop.f32.mrf.mxu0
        %2902 = vmatprep.mubr.f32.mxu0 %v2757
        %2903 = vmatmul.mubr.f32.gmra.mxu0 %v2703
        %v2904 = vpop.f32.mrf.mxu0
        %v2905 = vadd.f32 0.0, %v2904
        %v2906 = vpop.f32.mrf.mxu0
        %2907 = vmatprep.mubr.f32.mxu0 %v2760
        %2908 = vmatmul.mubr.f32.gmra.mxu0 %v2705
        %v2909 = vpop.f32.mrf.mxu0
        %v2910 = vadd.f32 0.0, %v2909
        %v2911 = vpop.f32.mrf.mxu0
        %2912 = vmatprep.mubr.f32.mxu0 %v2763
        %2913 = vmatmul.mubr.f32.gmra.mxu0 %v2707
        %v2914 = vpop.f32.mrf.mxu0
        %v2915 = vadd.f32 0.0, %v2914
        %v2916 = vpop.f32.mrf.mxu0
        %2917 = vmatprep.mubr.f32.mxu0 %v2766
        %2918 = vmatmul.mubr.f32.gmra.mxu0 %v2709
        %v2919 = vpop.f32.mrf.mxu0
        %v2920 = vadd.f32 0.0, %v2919
        %v2921 = vpop.f32.mrf.mxu0
        %2922 = vmatprep.mubr.f32.mxu0 %v2769
        %2923 = vmatmul.mubr.f32.gmra.mxu0 %v2711
        %v2924 = vpop.f32.mrf.mxu0
        %v2925 = vadd.f32 0.0, %v2924
        %v2926 = vpop.f32.mrf.mxu0
        %2927 = vmatprep.mubr.f32.mxu0 %v2772
        %2928 = vmatmul.mubr.f32.gmra.mxu0 %v2713
        %v2929 = vpop.f32.mrf.mxu0
        %v2930 = vadd.f32 0.0, %v2929
        %v2931 = vpop.f32.mrf.mxu0
        %2932 = vmatprep.mubr.f32.mxu0 %v2775
        %2933 = vmatmul.mubr.f32.gmra.mxu0 %v2715
        %v2934 = vpop.f32.mrf.mxu0
        %v2935 = vadd.f32 0.0, %v2934
        %v2936 = vpop.f32.mrf.mxu0
        %2937 = vmatprep.mubr.f32.mxu0 %v2778
        %2938 = vmatmul.mubr.f32.gmra.mxu0 %v2717
        %v2939 = vpop.f32.mrf.mxu0
        %v2940 = vadd.f32 0.0, %v2939
        %v2941 = vpop.f32.mrf.mxu0
        %2942 = vmatprep.mubr.f32.mxu0 %v2781
        %2943 = vmatmul.mubr.f32.gmra.mxu0 %v2719
        %v2944 = vpop.f32.mrf.mxu0
        %v2945 = vadd.f32 0.0, %v2944
        %v2946 = vpop.f32.mrf.mxu0
        %2947 = vmatprep.mubr.f32.mxu0 %v2784
        %2948 = vmatmul.mubr.f32.gmra.mxu0 %v2721
        %v2949 = vpop.f32.mrf.mxu0
        %v2950 = vadd.f32 0.0, %v2949
        %v2951 = vpop.f32.mrf.mxu0
        %2952 = vmatprep.mubr.f32.mxu0 %v2787
        %2953 = vmatmul.mubr.f32.gmra.mxu0 %v2723
        %v2954 = vpop.f32.mrf.mxu0
        %v2955 = vadd.f32 0.0, %v2954
        %v2956 = vpop.f32.mrf.mxu0
        %2957 = vmatprep.mubr.f32.mxu0 %v2790
        %2958 = vmatmul.mubr.f32.gmra.mxu0 %v2725
        %v2959 = vpop.f32.mrf.mxu0
        %v2960 = vadd.f32 0.0, %v2959
        %v2961 = vpop.f32.mrf.mxu0
        %2962 = vmatprep.mubr.f32.mxu0 %v2793
        %2963 = vmatmul.mubr.f32.gmra.mxu0 %v2727
        %v2964 = vpop.f32.mrf.mxu0
        %v2965 = vadd.f32 0.0, %v2964
        %v2966 = vpop.f32.mrf.mxu0
        %2967 = vmatprep.mubr.f32.mxu0 %v2796
        %2968 = vmatmul.mubr.f32.gmra.mxu0 %v2729
        %v2969 = vpop.f32.mrf.mxu0
        %v2970 = vadd.f32 0.0, %v2969
        %v2971 = vpop.f32.mrf.mxu0
        %2972 = vmatprep.mubr.f32.mxu0 %v2799
        %2973 = vmatmul.mubr.f32.gmra.mxu0 %v2731
        %v2974 = vpop.f32.mrf.mxu0
        %v2975 = vadd.f32 0.0, %v2974
        %v2976 = vpop.f32.mrf.mxu0
        %2977 = vmatprep.mubr.f32.mxu0 %v2802
        %2978 = vmatmul.mubr.f32.gmra.mxu0 %v2733
        %v2979 = vpop.f32.mrf.mxu0
        %v2980 = vadd.f32 0.0, %v2979
        %v2981 = vpop.f32.mrf.mxu0
        %2982 = vmatprep.mubr.f32.mxu0 %v2805
        %2983 = vmatmul.mubr.f32.gmra.mxu0 %v2735
        %v2984 = vpop.f32.mrf.mxu0
        %v2985 = vadd.f32 0.0, %v2984
        %v2986 = vpop.f32.mrf.mxu0
        %2987 = vmatprep.mubr.f32.mxu0 %v2808
        %2988 = vmatmul.mubr.f32.gmra.mxu0 %v2737
        %v2989 = vpop.f32.mrf.mxu0
        %v2990 = vadd.f32 0.0, %v2989
        %v2991 = vpop.f32.mrf.mxu0
        %2992 = vmatprep.mubr.f32.mxu0 %v2811
        %2993 = vmatmul.mubr.f32.gmra.mxu0 %v2739
        %v2994 = vpop.f32.mrf.mxu0
        %v2995 = vadd.f32 0.0, %v2994
        %v2996 = vpop.f32.mrf.mxu0
        %2997 = vdwg.mxu0
        %v2999 = vsel %vm1362, %v1318, 0
        %v3002 = vsel %vm1362, %v1324, 0
        %v3005 = vsel %vm1362, %v1330, 0
        %v3008 = vsel %vm1362, %v1336, 0
        %v3011 = vsel %vm1362, %v1342, 0
        %v3014 = vsel %vm1362, %v1348, 0
        %v3017 = vsel %vm1362, %v1354, 0
        %v3020 = vsel %vm1362, %v1360, 0
        %3022 = vmatprep.subr.mxu0 0.0
        %3023 = vmatpush1.msra.mxu0 %v2955
        %3024 = vmatprep.subr.mxu0 0.0
        %3025 = vmatpush1.msra.mxu0 %v2950
        %3026 = vmatprep.subr.mxu0 0.0
        %3027 = vmatpush1.msra.mxu0 %v2945
        %3028 = vmatprep.subr.mxu0 0.0
        %3029 = vmatpush1.msra.mxu0 %v2940
        %3030 = vmatprep.subr.mxu0 0.0
        %3031 = vmatpush1.msra.mxu0 %v2935
        %3032 = vmatprep.subr.mxu0 0.0
        %3033 = vmatpush1.msra.mxu0 %v2930
        %3034 = vmatprep.subr.mxu0 0.0
        %3035 = vmatpush1.msra.mxu0 %v2925
        %3036 = vmatprep.subr.mxu0 0.0
        %3037 = vmatpush1.msra.mxu0 %v2920
        %3038 = vmatprep.subr.mxu0 0.0
        %3039 = vmatpush1.msra.mxu0 %v2915
        %3040 = vmatprep.subr.mxu0 0.0
        %3041 = vmatpush1.msra.mxu0 %v2910
        %3042 = vmatprep.subr.mxu0 0.0
        %3043 = vmatpush1.msra.mxu0 %v2905
        %3044 = vmatprep.subr.mxu0 0.0
        %3045 = vmatpush1.msra.mxu0 %v2900
        %3046 = vmatprep.subr.mxu0 0.0
        %3047 = vmatpush1.msra.mxu0 %v2895
        %3048 = vmatprep.subr.mxu0 0.0
        %3049 = vmatpush1.msra.mxu0 %v2890
        %3050 = vmatprep.subr.mxu0 0.0
        %3051 = vmatpush1.msra.mxu0 %v2885
        %3052 = vmatprep.subr.mxu0 0.0
        %3053 = vmatpush1.msra.mxu0 %v2880
        %3054 = vmatprep.subr.mxu0 0.0
        %3055 = vmatpush2.msra.mxu0 0.0
        %3056 = vmatprep.subr.mxu0 0.0
        %3057 = vmatpush2.msra.mxu0 0.0
        %3058 = vmatprep.subr.mxu0 0.0
        %3059 = vmatpush2.msra.mxu0 0.0
        %3060 = vmatprep.subr.mxu0 0.0
        %3061 = vmatpush2.msra.mxu0 0.0
        %3062 = vmatprep.subr.mxu0 0.0
        %3063 = vmatpush2.msra.mxu0 0.0
        %3064 = vmatprep.subr.mxu0 0.0
        %3065 = vmatpush2.msra.mxu0 0.0
        %3066 = vmatprep.subr.mxu0 0.0
        %3067 = vmatpush2.msra.mxu0 0.0
        %3068 = vmatprep.subr.mxu0 0.0
        %3069 = vmatpush2.msra.mxu0 0.0
        %3070 = vmatprep.subr.mxu0 0.0
        %3071 = vmatpush2.msra.mxu0 %v2995
        %3072 = vmatprep.subr.mxu0 0.0
        %3073 = vmatpush2.msra.mxu0 %v2990
        %3074 = vmatprep.subr.mxu0 0.0
        %3075 = vmatpush2.msra.mxu0 %v2985
        %3076 = vmatprep.subr.mxu0 0.0
        %3077 = vmatpush2.msra.mxu0 %v2980
        %3078 = vmatprep.subr.mxu0 0.0
        %3079 = vmatpush2.msra.mxu0 %v2975
        %3080 = vmatprep.subr.mxu0 0.0
        %3081 = vmatpush2.msra.mxu0 %v2970
        %3082 = vmatprep.subr.mxu0 0.0
        %3083 = vmatpush2.msra.mxu0 %v2965
        %3084 = vmatprep.subr.mxu0 0.0
        %3085 = vmatpush2.msra.mxu0 %v2960
        %3086 = vmatprep.mubr.f32.mxu0 %v2999
        %3087 = vmatmul.mubr.f32.gmra.mxu0 %v1316
        %v3088 = vpop.f32.mrf.mxu0
        %v3089 = vadd.f32 0.0, %v3088
        %v3090 = vpop.f32.mrf.mxu0
        %3091 = vmatprep.mubr.f32.mxu0 %v3002
        %3092 = vmatmul.mubr.f32.gmra.mxu0 %v1322
        %v3093 = vpop.f32.mrf.mxu0
        %v3094 = vadd.f32 0.0, %v3093
        %v3095 = vpop.f32.mrf.mxu0
        %3096 = vmatprep.mubr.f32.mxu0 %v3005
        %3097 = vmatmul.mubr.f32.gmra.mxu0 %v1328
        %v3098 = vpop.f32.mrf.mxu0
        %v3099 = vadd.f32 0.0, %v3098
        %v3100 = vpop.f32.mrf.mxu0
        %3101 = vmatprep.mubr.f32.mxu0 %v3008
        %3102 = vmatmul.mubr.f32.gmra.mxu0 %v1334
        %v3103 = vpop.f32.mrf.mxu0
        %v3104 = vadd.f32 0.0, %v3103
        %v3105 = vpop.f32.mrf.mxu0
        %3106 = vmatprep.mubr.f32.mxu0 %v3011
        %3107 = vmatmul.mubr.f32.gmra.mxu0 %v1340
        %v3108 = vpop.f32.mrf.mxu0
        %v3109 = vadd.f32 0.0, %v3108
        %v3110 = vpop.f32.mrf.mxu0
        %3111 = vmatprep.mubr.f32.mxu0 %v3014
        %3112 = vmatmul.mubr.f32.gmra.mxu0 %v1346
        %v3113 = vpop.f32.mrf.mxu0
        %v3114 = vadd.f32 0.0, %v3113
        %v3115 = vpop.f32.mrf.mxu0
        %3116 = vmatprep.mubr.f32.mxu0 %v3017
        %3117 = vmatmul.mubr.f32.gmra.mxu0 %v1352
        %v3118 = vpop.f32.mrf.mxu0
        %v3119 = vadd.f32 0.0, %v3118
        %v3120 = vpop.f32.mrf.mxu0
        %3121 = vmatprep.mubr.f32.mxu0 %v3020
        %3122 = vmatmul.mubr.f32.gmra.mxu0 %v1358
        %v3123 = vpop.f32.mrf.mxu0
        %v3124 = vadd.f32 0.0, %v3123
        %v3125 = vpop.f32.mrf.mxu0
        %3126 = vdwg.mxu0
        %v3127 = vld [vmem:[%s15] sm:$0xff]
        %v3128 = vld [vmem:[%s15 + $0x8] sm:$0xff]
        %v3129 = vld [vmem:[%s15 + $0x10] sm:$0xff]
        %v3130 = vld [vmem:[%s15 + $0x18] sm:$0xff]
        %v3131 = vld [vmem:[%s15 + $0x20] sm:$0xff]
        %v3132 = vld [vmem:[%s15 + $0x28] sm:$0xff]
        %v3133 = vld [vmem:[%s15 + $0x30] sm:$0xff]
        %v3134 = vld [vmem:[%s15 + $0x38] sm:$0xff]
        %v3135 = vld [vmem:[%s15 + $0x40] sm:$0xff]
        %v3136 = vld [vmem:[%s15 + $0x48] sm:$0xff]
        %v3137 = vld [vmem:[%s15 + $0x50] sm:$0xff]
        %v3138 = vld [vmem:[%s15 + $0x58] sm:$0xff]
        %v3139 = vld [vmem:[%s16] sm:$0x1]
        %v3141 = vlaneseq
        %v3142 = vshrl.u32 %v3141, 7
        %v3143 = vsub.s32 0, %v3142
        %v3144 = vrot.slane %v3139, %v3143
        %v3147 = vsel %vm783, %v3089, 0
        %v3150 = vsel %vm783, %v3094, 0
        %v3153 = vsel %vm783, %v3099, 0
        %v3156 = vsel %vm783, %v3104, 0
        %v3159 = vsel %vm783, %v3109, 0
        %v3162 = vsel %vm783, %v3114, 0
        %v3165 = vsel %vm783, %v3119, 0
        %v3168 = vsel %vm783, %v3124, 0
        %3170 = vmatprep.subr.mxu0 0.0
        %3171 = vmatpush1.msra.mxu0 0.0
        %3172 = vmatprep.subr.mxu0 0.0
        %3173 = vmatpush1.msra.mxu0 0.0
        %3174 = vmatprep.subr.mxu0 0.0
        %3175 = vmatpush1.msra.mxu0 0.0
        %3176 = vmatprep.subr.mxu0 0.0
        %3177 = vmatpush1.msra.mxu0 0.0
        %3178 = vmatprep.subr.mxu0 0.0
        %3179 = vmatpush1.msra.mxu0 %v3138
        %3180 = vmatprep.subr.mxu0 0.0
        %3181 = vmatpush1.msra.mxu0 %v3137
        %3182 = vmatprep.subr.mxu0 0.0
        %3183 = vmatpush1.msra.mxu0 %v3136
        %3184 = vmatprep.subr.mxu0 0.0
        %3185 = vmatpush1.msra.mxu0 %v3135
        %3186 = vmatprep.subr.mxu0 0.0
        %3187 = vmatpush1.msra.mxu0 %v3134
        %3188 = vmatprep.subr.mxu0 0.0
        %3189 = vmatpush1.msra.mxu0 %v3133
        %3190 = vmatprep.subr.mxu0 0.0
        %3191 = vmatpush1.msra.mxu0 %v3132
        %3192 = vmatprep.subr.mxu0 0.0
        %3193 = vmatpush1.msra.mxu0 %v3131
        %3194 = vmatprep.subr.mxu0 0.0
        %3195 = vmatpush1.msra.mxu0 %v3130
        %3196 = vmatprep.subr.mxu0 0.0
        %3197 = vmatpush1.msra.mxu0 %v3129
        %3198 = vmatprep.subr.mxu0 0.0
        %3199 = vmatpush1.msra.mxu0 %v3128
        %3200 = vmatprep.subr.mxu0 0.0
        %3201 = vmatpush1.msra.mxu0 %v3127
        %3202 = vmatprep.subr.mxu0 0.0
        %3203 = vmatpush2.msra.mxu0 0.0
        %3204 = vmatprep.subr.mxu0 0.0
        %3205 = vmatpush2.msra.mxu0 0.0
        %3206 = vmatprep.subr.mxu0 0.0
        %3207 = vmatpush2.msra.mxu0 0.0
        %3208 = vmatprep.subr.mxu0 0.0
        %3209 = vmatpush2.msra.mxu0 0.0
        %3210 = vmatprep.subr.mxu0 0.0
        %3211 = vmatpush2.msra.mxu0 0.0
        %3212 = vmatprep.subr.mxu0 0.0
        %3213 = vmatpush2.msra.mxu0 0.0
        %3214 = vmatprep.subr.mxu0 0.0
        %3215 = vmatpush2.msra.mxu0 0.0
        %3216 = vmatprep.subr.mxu0 0.0
        %3217 = vmatpush2.msra.mxu0 0.0
        %3218 = vmatprep.subr.mxu0 0.0
        %3219 = vmatpush2.msra.mxu0 0.0
        %3220 = vmatprep.subr.mxu0 0.0
        %3221 = vmatpush2.msra.mxu0 0.0
        %3222 = vmatprep.subr.mxu0 0.0
        %3223 = vmatpush2.msra.mxu0 0.0
        %3224 = vmatprep.subr.mxu0 0.0
        %3225 = vmatpush2.msra.mxu0 0.0
        %3226 = vmatprep.subr.mxu0 0.0
        %3227 = vmatpush2.msra.mxu0 0.0
        %3228 = vmatprep.subr.mxu0 0.0
        %3229 = vmatpush2.msra.mxu0 0.0
        %3230 = vmatprep.subr.mxu0 0.0
        %3231 = vmatpush2.msra.mxu0 0.0
        %3232 = vmatprep.subr.mxu0 0.0
        %3233 = vmatpush2.msra.mxu0 0.0
        %3234 = vmatprep.mubr.f32.mxu0 0.0
        %3235 = vmatmul.mubr.f32.gmra.mxu0 %v3147
        %v3236 = vpop.f32.mrf.mxu0
        %v3237 = vadd.f32 %v3144, %v3236
        %v3238 = vpop.f32.mrf.mxu0
        %3239 = vmatprep.mubr.f32.mxu0 0.0
        %3240 = vmatmul.mubr.f32.gmra.mxu0 %v3150
        %v3241 = vpop.f32.mrf.mxu0
        %v3242 = vadd.f32 %v3144, %v3241
        %v3243 = vpop.f32.mrf.mxu0
        %3244 = vmatprep.mubr.f32.mxu0 0.0
        %3245 = vmatmul.mubr.f32.gmra.mxu0 %v3153
        %v3246 = vpop.f32.mrf.mxu0
        %v3247 = vadd.f32 %v3144, %v3246
        %v3248 = vpop.f32.mrf.mxu0
        %3249 = vmatprep.mubr.f32.mxu0 0.0
        %3250 = vmatmul.mubr.f32.gmra.mxu0 %v3156
        %v3251 = vpop.f32.mrf.mxu0
        %v3252 = vadd.f32 %v3144, %v3251
        %v3253 = vpop.f32.mrf.mxu0
        %3254 = vmatprep.mubr.f32.mxu0 0.0
        %3255 = vmatmul.mubr.f32.gmra.mxu0 %v3159
        %v3256 = vpop.f32.mrf.mxu0
        %v3257 = vadd.f32 %v3144, %v3256
        %v3258 = vpop.f32.mrf.mxu0
        %3259 = vmatprep.mubr.f32.mxu0 0.0
        %3260 = vmatmul.mubr.f32.gmra.mxu0 %v3162
        %v3261 = vpop.f32.mrf.mxu0
        %v3262 = vadd.f32 %v3144, %v3261
        %v3263 = vpop.f32.mrf.mxu0
        %3264 = vmatprep.mubr.f32.mxu0 0.0
        %3265 = vmatmul.mubr.f32.gmra.mxu0 %v3165
        %v3266 = vpop.f32.mrf.mxu0
        %v3267 = vadd.f32 %v3144, %v3266
        %v3268 = vpop.f32.mrf.mxu0
        %3269 = vmatprep.mubr.f32.mxu0 0.0
        %3270 = vmatmul.mubr.f32.gmra.mxu0 %v3168
        %v3271 = vpop.f32.mrf.mxu0
        %v3272 = vadd.f32 %v3144, %v3271
        %v3273 = vpop.f32.mrf.mxu0
        %3274 = vdwg.mxu0
        %v3275 = vadd.f32 %v599, %v3237
        %v3276 = vadd.f32 %v600, %v3242
        %v3277 = vadd.f32 %v601, %v3247
        %v3278 = vadd.f32 %v602, %v3252
        %v3279 = vadd.f32 %v603, %v3257
        %v3280 = vadd.f32 %v604, %v3262
        %v3281 = vadd.f32 %v605, %v3267
        %v3282 = vadd.f32 %v606, %v3272
        %v3283 = vadd.f32 %v3275, %v607
        %v3284 = vadd.f32 %v3276, %v608
        %v3285 = vadd.f32 %v3277, %v609
        %v3286 = vadd.f32 %v3278, %v610
        %v3287 = vadd.f32 %v3279, %v611
        %v3288 = vadd.f32 %v3280, %v612
        %v3289 = vadd.f32 %v3281, %v613
        %v3290 = vadd.f32 %v3282, %v614
        %3291 = vst.msk [vmem:[%s571] sm:$0xff] %vm783, %v3283
        %3292 = vst.msk [vmem:[%s571 + $0x8] sm:$0xff] %vm783, %v3284
        %3293 = vst.msk [vmem:[%s571 + $0x10] sm:$0xff] %vm783, %v3285
        %3294 = vst.msk [vmem:[%s571 + $0x18] sm:$0xff] %vm783, %v3286
        %3295 = vst.msk [vmem:[%s571 + $0x20] sm:$0xff] %vm783, %v3287
        %3296 = vst.msk [vmem:[%s571 + $0x28] sm:$0xff] %vm783, %v3288
        %3297 = vst.msk [vmem:[%s571 + $0x30] sm:$0xff] %vm783, %v3289
        %3298 = vst.msk [vmem:[%s571 + $0x38] sm:$0xff] %vm783, %v3290
        %s3299 = sand.u32 %s411, 1
        %s3300 = scalar_lea.sflag [#allocation3], %s3299
        %s3301 = sand.u32 %s411, 1
        %s3302 = smul.addr %s3301, 64
        %s3303 = scalar_lea.vmem [#allocation2], %s3302
        // Predicated region
        $region89: #{gru_forward.1} parent=87 // pred_check
          %p3304 = pneg %p421
        $region90: #{gru_forward.1} parent=87 // pred_check_branch
          %3306 = sbr.rel (%p3304) target = $region92
        $region91: #{gru_forward.1} parent=87 // pred_region
          %s3308 = ssub.s32 1024, 1024
          %3309 = vsyncadd %s3300, %s3308
          %s3310 = smul.addr %s31, 8
          %s3311 = smul.addr %s3310, 128
          %s3312 = scalar_lea.hbm %s17, %s3311
          %s3313 = sshll.u32 %s3303, 4
          %s3314 = int_to_ptr.vmem [resolvable:$true] %s3313
          %3319 = dma.vmem_to_hbm [thread:$0]  %s3314, 1024, %s3312, %s3300, 128, 128, 8
        $region92: #{gru_forward.1} parent=87 // pred_fallthru
          _
      $region88: #{gru_forward.1} parent=5 // pred_fallthru
        _
      %p3320 = scmp.le.s32.totalorder 2, %s26
      // Predicated region
      $region93: #{gru_forward.1} parent=5 // pred_check
        %p3321 = pneg %p3320
      $region94: #{gru_forward.1} parent=5 // pred_check_branch
        %3323 = sbr.rel (%p3321) target = $region96
      $region95: #{gru_forward.1} parent=5 // pred_region
        %s3324 = ssub.s32 %s26, 2
        // Predicated region
        $region97: #{gru_forward.1} parent=95 // pred_check
          %p3325 = pneg %p427
        $region98: #{gru_forward.1} parent=95 // pred_check_branch
          %3327 = sbr.rel (%p3325) target = $region100
        $region99: #{gru_forward.1} parent=95 // pred_region
          %s3328 = sand.u32 %s412, 1
          %s3329 = scalar_lea.sflag [#allocation3], %s3328
          %s3330 = sand.u32 %s412, 1
          %s3331 = smul.addr %s3330, 64
          %s3332 = scalar_lea.vmem [#allocation2], %s3331
          %3333 = dma.done %s3329, 1024
        $region100: #{gru_forward.1} parent=95 // pred_fallthru
          _
      $region96: #{gru_forward.1} parent=5 // pred_fallthru
        _
    $region6: #{gru_forward.1} parent=1 // loop_footer
      %s30 = sadd.s32 1, %s26
    $region7: #{gru_forward.1} parent=1 // loop_footer_branch
      %25 = sbr.rel target = $region3
    $region8: #{gru_forward.1} parent=1 // loop_exit
      _
    %3334 = vsyncpa [#allocation3], 1
    %s3335 = scalar_lea.sflag [#allocation3], 1
    %3336 = vsyncpa %s3335, 1

</llo_original>
